<compile_context>
chip_gen: v7x
topology: tpu7x:2x2x1
jax: 0.10.0
libtpu: 0.0.40
codegen_flags: <defaults>
</compile_context>

<pallas_src>
import math
from functools import partial

import numpy as np
import jax
import jax.numpy as jnp
from jax import lax
from jax.experimental import pallas as pl
from jax.experimental.pallas import tpu as pltpu


def calc_conv_pad(in_len, out_len, kernel, stride):
    return int(math.ceil(((out_len - 1) * stride + kernel - in_len) / 2))


LANEPAD = 512    # padded input lane width (W=384 -> 512, multiple of 128)


# --------------------------------------------------------------------------
# Fused kernel: conv1(+im2col) + ReLU, conv2 stack (+ shared-weight receptive
# layers), MaxPool2d((1,2)), (dropout=identity), fc1∘output Linear, Softmax.
# --------------------------------------------------------------------------
def splintr_kernel(x_ref, s0_ref, m1_ref, b1_ref,
                   m2p_ref, m2c_ref, m2n_ref, b2_ref,
                   m3p_ref, m3c_ref, m3n_ref, b3_ref,
                   wfc_ref, mask_ref, foldm_ref, rsel_ref, bcomb_ref,
                   out_ref, *, main_kernel, receptive_layers):
    f32 = jnp.float32
    x = x_ref[...]                         # [B*Cin*H, LANEPAD]
    L = x.shape[1]
    rows1 = m1_ref.shape[0] // main_kernel

    # ---- conv1 (k=main_kernel, stride 3) + ReLU.
    # Each tap = lane-roll of x (XLU) + ONE stride-3 gather matmul against s0
    # (conv padding folded into s0), then a block-diag channel-mix matmul.
    tap = jnp.dot(x, s0_ref[...], preferred_element_type=f32)        # [rx, 128]
    h = jnp.dot(m1_ref[pl.ds(0, rows1), :], tap, preferred_element_type=f32)
    for k in range(1, main_kernel):
        xk = pltpu.roll(x, shift=L - k, axis=1)                      # x[(l+k)%L]
        tap = jnp.dot(xk, s0_ref[...], preferred_element_type=f32)
        h = h + jnp.dot(m1_ref[pl.ds(k * rows1, rows1), :], tap,
                        preferred_element_type=f32)
    h = jnp.maximum(h + b1_ref[...], 0.0)                            # [rows1, 128]
    Wd = h.shape[1]

    # Boundary masks for the pad-1 / k=3 convs (applied post-matmul, so one
    # hoisted mask of the output shape works for every conv layer).
    rows2 = m2p_ref.shape[0]
    lane = lax.broadcasted_iota(jnp.int32, (rows2, Wd), 1)
    not_first = (lane != 0).astype(f32)
    not_last = (lane != Wd - 1).astype(f32)

    def conv1x3(h, mp_ref, mc_ref, mn_ref, b_ref):
        prev = pltpu.roll(h, shift=1, axis=1)                        # in[w-1]
        nxt = pltpu.roll(h, shift=Wd - 1, axis=1)                    # in[w+1]
        o = (jnp.dot(mp_ref[...], prev, preferred_element_type=f32) * not_first
             + jnp.dot(mc_ref[...], h, preferred_element_type=f32)
             + jnp.dot(mn_ref[...], nxt, preferred_element_type=f32) * not_last
             + b_ref[...])
        return jnp.maximum(o, 0.0)

    h = conv1x3(h, m2p_ref, m2c_ref, m2n_ref, b2_ref)                # conv2
    for _ in range(receptive_layers):                                # shared weights
        h = conv1x3(h, m3p_ref, m3c_ref, m3n_ref, b3_ref)

    # MaxPool2d((1,2)); the stride-2 compaction is folded into wfc (its odd
    # contraction rows are zero), so the contaminated wrap lane is discarded.
    pooled = jnp.maximum(h, pltpu.roll(h, shift=Wd - 1, axis=1))     # [rows2, 128]

    # TODO(synk): train-mode dropout before fc1 not implemented (eval = identity).

    # fc1 composed with the output Linear (and maxpool selection), per-group:
    # lanes of t enumerate (g, class).  Precomputed {0,1} mask keeps only each
    # row's own group block; rsel collapses rows per batch element; foldm sums
    # the G class-blocks.  Then bias + softmax(dim=1).
    t = jnp.dot(pooled, wfc_ref[...], preferred_element_type=f32)    # [rows2, G*NC]
    t = t * mask_ref[...]
    z = jnp.dot(rsel_ref[...], t, preferred_element_type=f32)        # [B, G*NC]
    logits = jnp.dot(z, foldm_ref[...], preferred_element_type=f32) + bcomb_ref[...]

    m = jnp.max(logits, axis=-1, keepdims=True)
    e = jnp.exp(logits - m)
    out_ref[...] = e * pl.reciprocal(jnp.sum(e, axis=-1, keepdims=True), approx=True)


# --------------------------------------------------------------------------
# One-time repack of torch-convention weights into kernel-ready arrays.
# All compositions done on host in float64, then cast to float32.
# --------------------------------------------------------------------------
def pack_params(p, hp, B, num_classes, Cin=4, H=4, W=384):
    F1, F2 = hp['filter1'], hp['filter2']
    K1, fc_out = hp['main_kernel'], hp['fc_out']
    NC = num_classes
    R = B * H
    G = H * F2
    pad1 = calc_conv_pad(W, 128, K1, 3)
    W1 = (W + 2 * pad1 - K1) // 3 + 1
    Wp = W1 // 2
    assert W1 == 128 and W1 % 2 == 0, "kernel assumes a 128-wide, even conv axis"
    assert W + 2 * pad1 <= LANEPAD, "input wider than the padded lane slab"

    f64 = np.float64
    w1 = np.asarray(p['w1'], f64); b1 = np.asarray(p['b1'], f64)
    w2 = np.asarray(p['w2'], f64); b2 = np.asarray(p['b2'], f64)
    w3 = np.asarray(p['w3'], f64); b3 = np.asarray(p['b3'], f64)
    wfc1 = np.asarray(p['wfc1'], f64); bfc1 = np.asarray(p['bfc1'], f64)
    wout = np.asarray(p['wout'], f64); bout = np.asarray(p['bout'], f64)
    assert wfc1.shape == (fc_out, F2 * H * Wp)

    # conv1: one stride-3 lane-gather matrix shared by all taps (conv padding
    # folded in: out-of-range source lanes land in the zero-padded region).
    s0 = np.zeros((LANEPAD, W1), f64)
    for w in range(W1):
        s0[(3 * w - 1) % LANEPAD, w] = 1.0

    # conv1 channel mix, one block per tap, stacked along rows; X rows are
    # ordered (b, c, h), conv output rows are ordered (b, h, f).
    rows_x = B * Cin * H
    rows1 = R * F1
    m1 = np.zeros((K1 * rows1, rows_x), f64)
    for b in range(B):
        for hh in range(H):
            for f in range(F1):
                for c in range(Cin):
                    for k in range(K1):
                        m1[k * rows1 + (b * H + hh) * F1 + f,
                           (b * Cin + c) * H + hh] = w1[f, c, 0, k]

    # conv2 / receptive layers: per-tap block-diagonal channel mixes.
    eye_r = np.eye(R, dtype=f64)

    def taps(w):                                       # w: [Co, Ci, 1, 3]
        return [np.kron(eye_r, w[:, :, 0, t]) for t in range(3)]

    m2p, m2c, m2n = taps(w2)
    m3p, m3c, m3n = taps(w3)

    # fc1 composed with the output Linear AND the maxpool stride-2 selection.
    # Torch flatten order of pooled activations is (c, h, wp); group g=h*F2+c.
    V = wfc1.reshape(fc_out, F2, H, Wp)                # (o, c, hh, wp)
    wcomb = np.einsum('ochw,no->hcwn', V, wout)        # (hh, c, wp, n)
    wcomb = wcomb.reshape(G, Wp, NC)                   # g = hh*F2 + c
    wfc = np.zeros((W1, G * NC), f64)                  # odd rows stay zero
    wfc[0::2, :] = wcomb.transpose(1, 0, 2).reshape(Wp, G * NC)
    bcomb = bfc1 @ wout.T + bout                       # [NC]

    rows2 = R * F2
    mask = (np.arange(rows2)[:, None] % G ==
            np.arange(G * NC)[None, :] // NC).astype(f64)     # [rows2, G*NC]
    foldm = np.tile(np.eye(NC, dtype=f64), (G, 1))            # [G*NC, NC]
    rsel = (np.arange(rows2)[None, :] // G ==
            np.arange(B)[:, None]).astype(f64)                # [B, rows2]

    def jf(a):
        return jnp.asarray(np.asarray(a, np.float32))

    return dict(
        s0=jf(s0), m1=jf(m1), b1=jf(np.tile(b1, R)[:, None]),
        m2p=jf(m2p), m2c=jf(m2c), m2n=jf(m2n), b2=jf(np.tile(b2, R)[:, None]),
        m3p=jf(m3p), m3c=jf(m3c), m3n=jf(m3n), b3=jf(np.tile(b3, R)[:, None]),
        wfc=jf(wfc), mask=jf(mask), foldm=jf(foldm), rsel=jf(rsel),
        bcomb=jf(bcomb[None, :]))


# --------------------------------------------------------------------------
# Forward wrapper: reshape + zero-pad only, then one fused pallas_call.
# --------------------------------------------------------------------------
def splintr_forward(x, kp, hp, num_classes):
    B, Cin, H, W = x.shape
    assert W <= LANEPAD
    X = jnp.pad(x.reshape(B * Cin * H, W), ((0, 0), (0, LANEPAD - W)))

    vmem = pl.BlockSpec(memory_space=pltpu.MemorySpace.VMEM)
    kern = partial(splintr_kernel,
                   main_kernel=hp['main_kernel'],
                   receptive_layers=hp['receptive_layers'])
    return pl.pallas_call(
        kern,
        out_shape=jax.ShapeDtypeStruct((B, num_classes), jnp.float32),
        in_specs=[vmem] * 17,
        out_specs=vmem,
    )(X, kp['s0'], kp['m1'], kp['b1'],
      kp['m2p'], kp['m2c'], kp['m2n'], kp['b2'],
      kp['m3p'], kp['m3c'], kp['m3n'], kp['b3'],
      kp['wfc'], kp['mask'], kp['foldm'], kp['rsel'], kp['bcomb'])


# --------------------------------------------------------------------------
# Deterministic parameter init (torch-convention shapes) and pure-JAX reference.
# --------------------------------------------------------------------------
def init_params(key, num_classes, hp):
    F1, F2, K1, fc_out = hp['filter1'], hp['filter2'], hp['main_kernel'], hp['fc_out']
    fc_in = int(F2 * 4 * 64)
    ks = jax.random.split(key, 10)

    def w(k, shape, fan_in):
        return jax.random.normal(k, shape, jnp.float32) / math.sqrt(fan_in)

    return {
        'w1': w(ks[0], (F1, 4, 1, K1), 4 * K1),
        'b1': 0.1 * jax.random.normal(ks[1], (F1,), jnp.float32),
        'w2': w(ks[2], (F2, F1, 1, 3), F1 * 3),
        'b2': 0.1 * jax.random.normal(ks[3], (F2,), jnp.float32),
        'w3': w(ks[4], (F2, F2, 1, 3), F2 * 3),
        'b3': 0.1 * jax.random.normal(ks[5], (F2,), jnp.float32),
        'wfc1': w(ks[6], (fc_out, fc_in), fc_in),
        'bfc1': 0.1 * jax.random.normal(ks[7], (fc_out,), jnp.float32),
        'wout': w(ks[8], (num_classes, fc_out), fc_out),
        'bout': 0.1 * jax.random.normal(ks[9], (num_classes,), jnp.float32),
    }


def reference_forward(x, p, hp):
    dn = ('NCHW', 'OIHW', 'NCHW')
    hi = lax.Precision.HIGHEST
    pad1 = calc_conv_pad(x.shape[-1], 128, hp['main_kernel'], 3)
    h = lax.conv_general_dilated(x, p['w1'], (1, 3), [(0, 0), (pad1, pad1)],
                                 dimension_numbers=dn, precision=hi)
    h = jnp.maximum(h + p['b1'][None, :, None, None], 0.0)
    h = lax.conv_general_dilated(h, p['w2'], (1, 1), [(0, 0), (1, 1)],
                                 dimension_numbers=dn, precision=hi)
    h = jnp.maximum(h + p['b2'][None, :, None, None], 0.0)
    for _ in range(hp['receptive_layers']):
        h = lax.conv_general_dilated(h, p['w3'], (1, 1), [(0, 0), (1, 1)],
                                     dimension_numbers=dn, precision=hi)
        h = jnp.maximum(h + p['b3'][None, :, None, None], 0.0)
    h = jnp.maximum(h[..., 0::2], h[..., 1::2])          # MaxPool2d((1, 2))
    flat = h.reshape(x.shape[0], -1)
    z1 = jnp.dot(flat, p['wfc1'].T, precision=hi) + p['bfc1']
    z2 = jnp.dot(z1, p['wout'].T, precision=hi) + p['bout']
    return jax.nn.softmax(z2, axis=1)


if __name__ == "__main__":
    hp = dict(filter1=8, filter2=8, main_kernel=5, receptive_layers=1,
              dropout=0.25, fc_out=32)
    num_classes = 6
    B, Cin, H, W = 2, 4, 4, 384                      # width 384 implied by module

    key = jax.random.PRNGKey(0)
    kx, kparam = jax.random.split(key)
    x = jax.random.normal(kx, (B, Cin, H, W), jnp.float32)
    params = init_params(kparam, num_classes, hp)

    packed = pack_params(params, hp, B, num_classes, Cin=Cin, H=H, W=W)
    fwd = jax.jit(lambda xx, pp: splintr_forward(xx, pp, hp, num_classes))

    probs = jax.block_until_ready(fwd(x, packed))

    ref = reference_forward(x, params, hp)
    assert probs.shape == (B, num_classes)
    err = float(jnp.max(jnp.abs(probs - ref)))
    if err > 2e-3:
        raise AssertionError(f"kernel/reference mismatch: max abs err {err}")
    print("KERNEL_OK")
</pallas_src>

<mosaic_0001>
module attributes {stable_mosaic.version = 11 : i64} {
  func.func @splintr_kernel(%arg0: memref<32x512xf32, #tpu.memory_space<vmem>>, %arg1: memref<512x128xf32, #tpu.memory_space<vmem>>, %arg2: memref<320x32xf32, #tpu.memory_space<vmem>>, %arg3: memref<64x1xf32, #tpu.memory_space<vmem>>, %arg4: memref<64x64xf32, #tpu.memory_space<vmem>>, %arg5: memref<64x64xf32, #tpu.memory_space<vmem>>, %arg6: memref<64x64xf32, #tpu.memory_space<vmem>>, %arg7: memref<64x1xf32, #tpu.memory_space<vmem>>, %arg8: memref<64x64xf32, #tpu.memory_space<vmem>>, %arg9: memref<64x64xf32, #tpu.memory_space<vmem>>, %arg10: memref<64x64xf32, #tpu.memory_space<vmem>>, %arg11: memref<64x1xf32, #tpu.memory_space<vmem>>, %arg12: memref<128x192xf32, #tpu.memory_space<vmem>>, %arg13: memref<64x192xf32, #tpu.memory_space<vmem>>, %arg14: memref<192x6xf32, #tpu.memory_space<vmem>>, %arg15: memref<2x64xf32, #tpu.memory_space<vmem>>, %arg16: memref<1x6xf32, #tpu.memory_space<vmem>>, %arg17: memref<2x6xf32, #tpu.memory_space<vmem>>) attributes {dimension_semantics = [], scalar_prefetch = 0 : i64, scratch_operands = 0 : i64, tpu.core_type = #tpu.core_type<tc>} {
    %c0 = arith.constant 0 : index
    %c0_0 = arith.constant 0 : index
    %0 = vector.load %arg0[%c0, %c0_0] : memref<32x512xf32, #tpu.memory_space<vmem>>, vector<32x512xf32>
    %c0_1 = arith.constant 0 : index
    %c0_2 = arith.constant 0 : index
    %1 = vector.load %arg1[%c0_1, %c0_2] : memref<512x128xf32, #tpu.memory_space<vmem>>, vector<512x128xf32>
    %cst = arith.constant dense<0.000000e+00> : vector<32x128xf32>
    %2 = tpu.matmul %0, %1, %cst {dimension_numbers = #tpu.dot_dimension_numbers<[1], [0], [0], [1], [0, 0, 1, 1], [], []>} : vector<32x512xf32>, vector<512x128xf32>, vector<32x128xf32> -> vector<32x128xf32>
    %c0_3 = arith.constant 0 : index
    %c0_4 = arith.constant 0 : index
    %3 = vector.load %arg2[%c0_3, %c0_4] : memref<320x32xf32, #tpu.memory_space<vmem>>, vector<64x32xf32>
    %cst_5 = arith.constant dense<0.000000e+00> : vector<64x128xf32>
    %4 = tpu.matmul %3, %2, %cst_5 {dimension_numbers = #tpu.dot_dimension_numbers<[1], [0], [0], [1], [0, 0, 1, 1], [], []>} : vector<64x32xf32>, vector<32x128xf32>, vector<64x128xf32> -> vector<64x128xf32>
    %c511_i32 = arith.constant 511 : i32
    %5 = tpu.dynamic_rotate %0 by %c511_i32 dim 1 : vector<32x512xf32>, i32 -> vector<32x512xf32>
    %c0_6 = arith.constant 0 : index
    %c0_7 = arith.constant 0 : index
    %6 = vector.load %arg1[%c0_6, %c0_7] : memref<512x128xf32, #tpu.memory_space<vmem>>, vector<512x128xf32>
    %cst_8 = arith.constant dense<0.000000e+00> : vector<32x128xf32>
    %7 = tpu.matmul %5, %6, %cst_8 {dimension_numbers = #tpu.dot_dimension_numbers<[1], [0], [0], [1], [0, 0, 1, 1], [], []>} : vector<32x512xf32>, vector<512x128xf32>, vector<32x128xf32> -> vector<32x128xf32>
    %c64 = arith.constant 64 : index
    %c0_9 = arith.constant 0 : index
    %8 = vector.load %arg2[%c64, %c0_9] : memref<320x32xf32, #tpu.memory_space<vmem>>, vector<64x32xf32>
    %cst_10 = arith.constant dense<0.000000e+00> : vector<64x128xf32>
    %9 = tpu.matmul %8, %7, %cst_10 {dimension_numbers = #tpu.dot_dimension_numbers<[1], [0], [0], [1], [0, 0, 1, 1], [], []>} : vector<64x32xf32>, vector<32x128xf32>, vector<64x128xf32> -> vector<64x128xf32>
    %10 = arith.addf %4, %9 : vector<64x128xf32>
    %c510_i32 = arith.constant 510 : i32
    %11 = tpu.dynamic_rotate %0 by %c510_i32 dim 1 : vector<32x512xf32>, i32 -> vector<32x512xf32>
    %c0_11 = arith.constant 0 : index
    %c0_12 = arith.constant 0 : index
    %12 = vector.load %arg1[%c0_11, %c0_12] : memref<512x128xf32, #tpu.memory_space<vmem>>, vector<512x128xf32>
    %cst_13 = arith.constant dense<0.000000e+00> : vector<32x128xf32>
    %13 = tpu.matmul %11, %12, %cst_13 {dimension_numbers = #tpu.dot_dimension_numbers<[1], [0], [0], [1], [0, 0, 1, 1], [], []>} : vector<32x512xf32>, vector<512x128xf32>, vector<32x128xf32> -> vector<32x128xf32>
    %c128 = arith.constant 128 : index
    %c0_14 = arith.constant 0 : index
    %14 = vector.load %arg2[%c128, %c0_14] : memref<320x32xf32, #tpu.memory_space<vmem>>, vector<64x32xf32>
    %cst_15 = arith.constant dense<0.000000e+00> : vector<64x128xf32>
    %15 = tpu.matmul %14, %13, %cst_15 {dimension_numbers = #tpu.dot_dimension_numbers<[1], [0], [0], [1], [0, 0, 1, 1], [], []>} : vector<64x32xf32>, vector<32x128xf32>, vector<64x128xf32> -> vector<64x128xf32>
    %16 = arith.addf %10, %15 : vector<64x128xf32>
    %c509_i32 = arith.constant 509 : i32
    %17 = tpu.dynamic_rotate %0 by %c509_i32 dim 1 : vector<32x512xf32>, i32 -> vector<32x512xf32>
    %c0_16 = arith.constant 0 : index
    %c0_17 = arith.constant 0 : index
    %18 = vector.load %arg1[%c0_16, %c0_17] : memref<512x128xf32, #tpu.memory_space<vmem>>, vector<512x128xf32>
    %cst_18 = arith.constant dense<0.000000e+00> : vector<32x128xf32>
    %19 = tpu.matmul %17, %18, %cst_18 {dimension_numbers = #tpu.dot_dimension_numbers<[1], [0], [0], [1], [0, 0, 1, 1], [], []>} : vector<32x512xf32>, vector<512x128xf32>, vector<32x128xf32> -> vector<32x128xf32>
    %c192 = arith.constant 192 : index
    %c0_19 = arith.constant 0 : index
    %20 = vector.load %arg2[%c192, %c0_19] : memref<320x32xf32, #tpu.memory_space<vmem>>, vector<64x32xf32>
    %cst_20 = arith.constant dense<0.000000e+00> : vector<64x128xf32>
    %21 = tpu.matmul %20, %19, %cst_20 {dimension_numbers = #tpu.dot_dimension_numbers<[1], [0], [0], [1], [0, 0, 1, 1], [], []>} : vector<64x32xf32>, vector<32x128xf32>, vector<64x128xf32> -> vector<64x128xf32>
    %22 = arith.addf %16, %21 : vector<64x128xf32>
    %c508_i32 = arith.constant 508 : i32
    %23 = tpu.dynamic_rotate %0 by %c508_i32 dim 1 : vector<32x512xf32>, i32 -> vector<32x512xf32>
    %c0_21 = arith.constant 0 : index
    %c0_22 = arith.constant 0 : index
    %24 = vector.load %arg1[%c0_21, %c0_22] : memref<512x128xf32, #tpu.memory_space<vmem>>, vector<512x128xf32>
    %cst_23 = arith.constant dense<0.000000e+00> : vector<32x128xf32>
    %25 = tpu.matmul %23, %24, %cst_23 {dimension_numbers = #tpu.dot_dimension_numbers<[1], [0], [0], [1], [0, 0, 1, 1], [], []>} : vector<32x512xf32>, vector<512x128xf32>, vector<32x128xf32> -> vector<32x128xf32>
    %c256 = arith.constant 256 : index
    %c0_24 = arith.constant 0 : index
    %26 = vector.load %arg2[%c256, %c0_24] : memref<320x32xf32, #tpu.memory_space<vmem>>, vector<64x32xf32>
    %cst_25 = arith.constant dense<0.000000e+00> : vector<64x128xf32>
    %27 = tpu.matmul %26, %25, %cst_25 {dimension_numbers = #tpu.dot_dimension_numbers<[1], [0], [0], [1], [0, 0, 1, 1], [], []>} : vector<64x32xf32>, vector<32x128xf32>, vector<64x128xf32> -> vector<64x128xf32>
    %28 = arith.addf %22, %27 : vector<64x128xf32>
    %c0_26 = arith.constant 0 : index
    %c0_27 = arith.constant 0 : index
    %29 = vector.load %arg3[%c0_26, %c0_27] : memref<64x1xf32, #tpu.memory_space<vmem>>, vector<64x1xf32>
    %30 = vector.broadcast %29 : vector<64x1xf32> to vector<64x128xf32>
    %31 = arith.addf %28, %30 : vector<64x128xf32>
    %cst_28 = arith.constant 0.000000e+00 : f32
    %32 = vector.broadcast %cst_28 : f32 to vector<64x128xf32>
    %33 = arith.maximumf %31, %32 : vector<64x128xf32>
    %34 = tpu.iota {dimensions = array<i32: 1>} : vector<64x128xi32>
    %c0_i32 = arith.constant 0 : i32
    %35 = vector.broadcast %c0_i32 : i32 to vector<64x128xi32>
    %36 = arith.cmpi ne, %34, %35 : vector<64x128xi32>
    %37 = arith.extui %36 : vector<64x128xi1> to vector<64x128xi32>
    %38 = arith.sitofp %37 : vector<64x128xi32> to vector<64x128xf32>
    %c127_i32 = arith.constant 127 : i32
    %39 = vector.broadcast %c127_i32 : i32 to vector<64x128xi32>
    %40 = arith.cmpi ne, %34, %39 : vector<64x128xi32>
    %41 = arith.extui %40 : vector<64x128xi1> to vector<64x128xi32>
    %42 = arith.sitofp %41 : vector<64x128xi32> to vector<64x128xf32>
    %c1_i32 = arith.constant 1 : i32
    %43 = tpu.dynamic_rotate %33 by %c1_i32 dim 1 : vector<64x128xf32>, i32 -> vector<64x128xf32>
    %c127_i32_29 = arith.constant 127 : i32
    %44 = tpu.dynamic_rotate %33 by %c127_i32_29 dim 1 : vector<64x128xf32>, i32 -> vector<64x128xf32>
    %c0_30 = arith.constant 0 : index
    %c0_31 = arith.constant 0 : index
    %45 = vector.load %arg4[%c0_30, %c0_31] : memref<64x64xf32, #tpu.memory_space<vmem>>, vector<64x64xf32>
    %cst_32 = arith.constant dense<0.000000e+00> : vector<64x128xf32>
    %46 = tpu.matmul %45, %43, %cst_32 {dimension_numbers = #tpu.dot_dimension_numbers<[1], [0], [0], [1], [0, 0, 1, 1], [], []>} : vector<64x64xf32>, vector<64x128xf32>, vector<64x128xf32> -> vector<64x128xf32>
    %47 = arith.mulf %46, %38 : vector<64x128xf32>
    %c0_33 = arith.constant 0 : index
    %c0_34 = arith.constant 0 : index
    %48 = vector.load %arg5[%c0_33, %c0_34] : memref<64x64xf32, #tpu.memory_space<vmem>>, vector<64x64xf32>
    %cst_35 = arith.constant dense<0.000000e+00> : vector<64x128xf32>
    %49 = tpu.matmul %48, %33, %cst_35 {dimension_numbers = #tpu.dot_dimension_numbers<[1], [0], [0], [1], [0, 0, 1, 1], [], []>} : vector<64x64xf32>, vector<64x128xf32>, vector<64x128xf32> -> vector<64x128xf32>
    %50 = arith.addf %47, %49 : vector<64x128xf32>
    %c0_36 = arith.constant 0 : index
    %c0_37 = arith.constant 0 : index
    %51 = vector.load %arg6[%c0_36, %c0_37] : memref<64x64xf32, #tpu.memory_space<vmem>>, vector<64x64xf32>
    %cst_38 = arith.constant dense<0.000000e+00> : vector<64x128xf32>
    %52 = tpu.matmul %51, %44, %cst_38 {dimension_numbers = #tpu.dot_dimension_numbers<[1], [0], [0], [1], [0, 0, 1, 1], [], []>} : vector<64x64xf32>, vector<64x128xf32>, vector<64x128xf32> -> vector<64x128xf32>
    %53 = arith.mulf %52, %42 : vector<64x128xf32>
    %54 = arith.addf %50, %53 : vector<64x128xf32>
    %c0_39 = arith.constant 0 : index
    %c0_40 = arith.constant 0 : index
    %55 = vector.load %arg7[%c0_39, %c0_40] : memref<64x1xf32, #tpu.memory_space<vmem>>, vector<64x1xf32>
    %56 = vector.broadcast %55 : vector<64x1xf32> to vector<64x128xf32>
    %57 = arith.addf %54, %56 : vector<64x128xf32>
    %cst_41 = arith.constant 0.000000e+00 : f32
    %58 = vector.broadcast %cst_41 : f32 to vector<64x128xf32>
    %59 = arith.maximumf %57, %58 : vector<64x128xf32>
    %c1_i32_42 = arith.constant 1 : i32
    %60 = tpu.dynamic_rotate %59 by %c1_i32_42 dim 1 : vector<64x128xf32>, i32 -> vector<64x128xf32>
    %c127_i32_43 = arith.constant 127 : i32
    %61 = tpu.dynamic_rotate %59 by %c127_i32_43 dim 1 : vector<64x128xf32>, i32 -> vector<64x128xf32>
    %c0_44 = arith.constant 0 : index
    %c0_45 = arith.constant 0 : index
    %62 = vector.load %arg8[%c0_44, %c0_45] : memref<64x64xf32, #tpu.memory_space<vmem>>, vector<64x64xf32>
    %cst_46 = arith.constant dense<0.000000e+00> : vector<64x128xf32>
    %63 = tpu.matmul %62, %60, %cst_46 {dimension_numbers = #tpu.dot_dimension_numbers<[1], [0], [0], [1], [0, 0, 1, 1], [], []>} : vector<64x64xf32>, vector<64x128xf32>, vector<64x128xf32> -> vector<64x128xf32>
    %64 = arith.mulf %63, %38 : vector<64x128xf32>
    %c0_47 = arith.constant 0 : index
    %c0_48 = arith.constant 0 : index
    %65 = vector.load %arg9[%c0_47, %c0_48] : memref<64x64xf32, #tpu.memory_space<vmem>>, vector<64x64xf32>
    %cst_49 = arith.constant dense<0.000000e+00> : vector<64x128xf32>
    %66 = tpu.matmul %65, %59, %cst_49 {dimension_numbers = #tpu.dot_dimension_numbers<[1], [0], [0], [1], [0, 0, 1, 1], [], []>} : vector<64x64xf32>, vector<64x128xf32>, vector<64x128xf32> -> vector<64x128xf32>
    %67 = arith.addf %64, %66 : vector<64x128xf32>
    %c0_50 = arith.constant 0 : index
    %c0_51 = arith.constant 0 : index
    %68 = vector.load %arg10[%c0_50, %c0_51] : memref<64x64xf32, #tpu.memory_space<vmem>>, vector<64x64xf32>
    %cst_52 = arith.constant dense<0.000000e+00> : vector<64x128xf32>
    %69 = tpu.matmul %68, %61, %cst_52 {dimension_numbers = #tpu.dot_dimension_numbers<[1], [0], [0], [1], [0, 0, 1, 1], [], []>} : vector<64x64xf32>, vector<64x128xf32>, vector<64x128xf32> -> vector<64x128xf32>
    %70 = arith.mulf %69, %42 : vector<64x128xf32>
    %71 = arith.addf %67, %70 : vector<64x128xf32>
    %c0_53 = arith.constant 0 : index
    %c0_54 = arith.constant 0 : index
    %72 = vector.load %arg11[%c0_53, %c0_54] : memref<64x1xf32, #tpu.memory_space<vmem>>, vector<64x1xf32>
    %73 = vector.broadcast %72 : vector<64x1xf32> to vector<64x128xf32>
    %74 = arith.addf %71, %73 : vector<64x128xf32>
    %cst_55 = arith.constant 0.000000e+00 : f32
    %75 = vector.broadcast %cst_55 : f32 to vector<64x128xf32>
    %76 = arith.maximumf %74, %75 : vector<64x128xf32>
    %c127_i32_56 = arith.constant 127 : i32
    %77 = tpu.dynamic_rotate %76 by %c127_i32_56 dim 1 : vector<64x128xf32>, i32 -> vector<64x128xf32>
    %78 = arith.maximumf %76, %77 : vector<64x128xf32>
    %c0_57 = arith.constant 0 : index
    %c0_58 = arith.constant 0 : index
    %79 = vector.load %arg12[%c0_57, %c0_58] : memref<128x192xf32, #tpu.memory_space<vmem>>, vector<128x192xf32>
    %cst_59 = arith.constant dense<0.000000e+00> : vector<64x192xf32>
    %80 = tpu.matmul %78, %79, %cst_59 {dimension_numbers = #tpu.dot_dimension_numbers<[1], [0], [0], [1], [0, 0, 1, 1], [], []>} : vector<64x128xf32>, vector<128x192xf32>, vector<64x192xf32> -> vector<64x192xf32>
    %c0_60 = arith.constant 0 : index
    %c0_61 = arith.constant 0 : index
    %81 = vector.load %arg13[%c0_60, %c0_61] : memref<64x192xf32, #tpu.memory_space<vmem>>, vector<64x192xf32>
    %82 = arith.mulf %80, %81 : vector<64x192xf32>
    %c0_62 = arith.constant 0 : index
    %c0_63 = arith.constant 0 : index
    %83 = vector.load %arg15[%c0_62, %c0_63] : memref<2x64xf32, #tpu.memory_space<vmem>>, vector<2x64xf32>
    %cst_64 = arith.constant dense<0.000000e+00> : vector<2x192xf32>
    %84 = tpu.matmul %83, %82, %cst_64 {dimension_numbers = #tpu.dot_dimension_numbers<[1], [0], [0], [1], [0, 0, 1, 1], [], []>} : vector<2x64xf32>, vector<64x192xf32>, vector<2x192xf32> -> vector<2x192xf32>
    %c0_65 = arith.constant 0 : index
    %c0_66 = arith.constant 0 : index
    %85 = vector.load %arg14[%c0_65, %c0_66] : memref<192x6xf32, #tpu.memory_space<vmem>>, vector<192x6xf32>
    %cst_67 = arith.constant dense<0.000000e+00> : vector<2x6xf32>
    %86 = tpu.matmul %84, %85, %cst_67 {dimension_numbers = #tpu.dot_dimension_numbers<[1], [0], [0], [1], [0, 0, 1, 1], [], []>} : vector<2x192xf32>, vector<192x6xf32>, vector<2x6xf32> -> vector<2x6xf32>
    %c0_68 = arith.constant 0 : index
    %c0_69 = arith.constant 0 : index
    %87 = vector.load %arg16[%c0_68, %c0_69] : memref<1x6xf32, #tpu.memory_space<vmem>>, vector<1x6xf32>
    %88 = vector.broadcast %87 : vector<1x6xf32> to vector<2x6xf32>
    %89 = arith.addf %86, %88 : vector<2x6xf32>
    %cst_70 = arith.constant dense<0xFF800000> : vector<2xf32>
    %90 = vector.multi_reduction <maximumf>, %89, %cst_70 [1] : vector<2x6xf32> to vector<2xf32>
    %91 = vector.shape_cast %90 : vector<2xf32> to vector<2x1xf32>
    %92 = vector.broadcast %91 : vector<2x1xf32> to vector<2x6xf32>
    %93 = arith.subf %89, %92 : vector<2x6xf32>
    %94 = math.exp %93 : vector<2x6xf32>
    %cst_71 = arith.constant dense<0.000000e+00> : vector<2xf32>
    %95 = vector.multi_reduction <add>, %94, %cst_71 [1] : vector<2x6xf32> to vector<2xf32>
    %96 = vector.shape_cast %95 : vector<2xf32> to vector<2x1xf32>
    %97 = tpu.reciprocal %96 {approx = true} : vector<2x1xf32> -> vector<2x1xf32>
    %98 = vector.broadcast %97 : vector<2x1xf32> to vector<2x6xf32>
    %99 = arith.mulf %94, %98 : vector<2x6xf32>
    %c0_72 = arith.constant 0 : index
    %c0_73 = arith.constant 0 : index
    %100 = vector.load %arg17[%c0_72, %c0_73] : memref<2x6xf32, #tpu.memory_space<vmem>>, vector<2x6xf32>
    tpu.vector_store %arg17[%c0_72, %c0_73], %99 {strides = array<i32>} : memref<2x6xf32, #tpu.memory_space<vmem>>, vector<2x6xf32>,
    return
  }
}

</mosaic_0001>

<llo_original>
// kernel: _lambda_.1
$region0: #{_lambda_.1}
  #allocation0 [shape = 'u32[]', space=smem, size = 0x4, offset = 0x4, fixed_abs, tag = 'smem constant byte address 0x4 - core index']
  #allocation1 [shape = 'u32[144,128]{1,0:T(1,128)}', space=vmem, size = 0x12000, scoped, tag = 'internal scratch']
  %s0 = inlined_call_operand.vmem [shape: f32[32,512], index: 0, kind: input, shape index: {}]
  %s1 = inlined_call_operand.vmem [shape: f32[512,128], index: 1, kind: input, shape index: {}]
  %s2 = inlined_call_operand.vmem [shape: f32[320,32], index: 2, kind: input, shape index: {}]
  %s3 = inlined_call_operand.vmem [shape: f32[64,1], index: 3, kind: input, shape index: {}]
  %s4 = inlined_call_operand.vmem [shape: f32[64,64], index: 4, kind: input, shape index: {}]
  %s5 = inlined_call_operand.vmem [shape: f32[64,64], index: 5, kind: input, shape index: {}]
  %s6 = inlined_call_operand.vmem [shape: f32[64,64], index: 6, kind: input, shape index: {}]
  %s7 = inlined_call_operand.vmem [shape: f32[64,1], index: 7, kind: input, shape index: {}]
  %s8 = inlined_call_operand.vmem [shape: f32[64,64], index: 8, kind: input, shape index: {}]
  %s9 = inlined_call_operand.vmem [shape: f32[64,64], index: 9, kind: input, shape index: {}]
  %s10 = inlined_call_operand.vmem [shape: f32[64,64], index: 10, kind: input, shape index: {}]
  %s11 = inlined_call_operand.vmem [shape: f32[64,1], index: 11, kind: input, shape index: {}]
  %s12 = inlined_call_operand.vmem [shape: f32[128,192], index: 12, kind: input, shape index: {}]
  %s13 = inlined_call_operand.vmem [shape: f32[64,192], index: 13, kind: input, shape index: {}]
  %s14 = inlined_call_operand.vmem [shape: f32[192,6], index: 14, kind: input, shape index: {}]
  %s15 = inlined_call_operand.vmem [shape: f32[2,64], index: 15, kind: input, shape index: {}]
  %s16 = inlined_call_operand.vmem [shape: f32[1,6], index: 16, kind: input, shape index: {}]
  %s17 = inlined_call_operand.hbm [shape: f32[2,6], index: 17, kind: output, shape index: {}]
  %s18 = sld [smem:[#allocation0]]
  $region78: #{_lambda_.1} parent=0
    _
  %s20 = ssub.s32 1, %s18
  %s21 = scalar_select 0, %s20, %s18
  $region1: #{_lambda_.1} parent=0
    #allocation2 [shape = 'u8[1024]{0}', space=vmem, size = 0x400, scoped, tag = 'output window, operand 0, single buffered']
    #allocation3 [shape = 's32[1]{0}', space=sflag, size = 0x4, scoped, tag = 'scoped memory for _lambda_.1']
    %22 = vsyncpa [#allocation3], 0
    // Predicated region
    $region2: #{_lambda_.1} parent=1 // pred_check
      _
    $region3: #{_lambda_.1} parent=1 // pred_check_branch
      %24 = sbr.rel (0) target = $region5
    $region4: #{_lambda_.1} parent=1 // pred_region
      _
    $region5: #{_lambda_.1} parent=1 // pred_fallthru
      _
    // Predicated region
    $region6: #{_lambda_.1} parent=1 // pred_check
      _
    $region7: #{_lambda_.1} parent=1 // pred_check_branch
      %26 = sbr.rel (0) target = $region9
    $region8: #{_lambda_.1} parent=1 // pred_region
      _
    $region9: #{_lambda_.1} parent=1 // pred_fallthru
      _
    // Predicated region
    $region10: #{_lambda_.1} parent=1 // pred_check
      _
    $region11: #{_lambda_.1} parent=1 // pred_check_branch
      %28 = sbr.rel (0) target = $region13
    $region12: #{_lambda_.1} parent=1 // pred_region
      _
    $region13: #{_lambda_.1} parent=1 // pred_fallthru
      _
    // Predicated region
    $region14: #{_lambda_.1} parent=1 // pred_check
      _
    $region15: #{_lambda_.1} parent=1 // pred_check_branch
      %30 = sbr.rel (0) target = $region17
    $region16: #{_lambda_.1} parent=1 // pred_region
      _
    $region17: #{_lambda_.1} parent=1 // pred_fallthru
      _
    // Predicated region
    $region18: #{_lambda_.1} parent=1 // pred_check
      _
    $region19: #{_lambda_.1} parent=1 // pred_check_branch
      %32 = sbr.rel (0) target = $region21
    $region20: #{_lambda_.1} parent=1 // pred_region
      _
    $region21: #{_lambda_.1} parent=1 // pred_fallthru
      _
    // Predicated region
    $region22: #{_lambda_.1} parent=1 // pred_check
      _
    $region23: #{_lambda_.1} parent=1 // pred_check_branch
      %34 = sbr.rel (0) target = $region25
    $region24: #{_lambda_.1} parent=1 // pred_region
      _
    $region25: #{_lambda_.1} parent=1 // pred_fallthru
      _
    // Predicated region
    $region26: #{_lambda_.1} parent=1 // pred_check
      _
    $region27: #{_lambda_.1} parent=1 // pred_check_branch
      %36 = sbr.rel (0) target = $region29
    $region28: #{_lambda_.1} parent=1 // pred_region
      _
    $region29: #{_lambda_.1} parent=1 // pred_fallthru
      _
    // Predicated region
    $region30: #{_lambda_.1} parent=1 // pred_check
      _
    $region31: #{_lambda_.1} parent=1 // pred_check_branch
      %38 = sbr.rel (0) target = $region33
    $region32: #{_lambda_.1} parent=1 // pred_region
      _
    $region33: #{_lambda_.1} parent=1 // pred_fallthru
      _
    // Predicated region
    $region34: #{_lambda_.1} parent=1 // pred_check
      _
    $region35: #{_lambda_.1} parent=1 // pred_check_branch
      %40 = sbr.rel (0) target = $region37
    $region36: #{_lambda_.1} parent=1 // pred_region
      _
    $region37: #{_lambda_.1} parent=1 // pred_fallthru
      _
    // Predicated region
    $region38: #{_lambda_.1} parent=1 // pred_check
      _
    $region39: #{_lambda_.1} parent=1 // pred_check_branch
      %42 = sbr.rel (0) target = $region41
    $region40: #{_lambda_.1} parent=1 // pred_region
      _
    $region41: #{_lambda_.1} parent=1 // pred_fallthru
      _
    // Predicated region
    $region42: #{_lambda_.1} parent=1 // pred_check
      _
    $region43: #{_lambda_.1} parent=1 // pred_check_branch
      %44 = sbr.rel (0) target = $region45
    $region44: #{_lambda_.1} parent=1 // pred_region
      _
    $region45: #{_lambda_.1} parent=1 // pred_fallthru
      _
    // Predicated region
    $region46: #{_lambda_.1} parent=1 // pred_check
      _
    $region47: #{_lambda_.1} parent=1 // pred_check_branch
      %46 = sbr.rel (0) target = $region49
    $region48: #{_lambda_.1} parent=1 // pred_region
      _
    $region49: #{_lambda_.1} parent=1 // pred_fallthru
      _
    // Predicated region
    $region50: #{_lambda_.1} parent=1 // pred_check
      _
    $region51: #{_lambda_.1} parent=1 // pred_check_branch
      %48 = sbr.rel (0) target = $region53
    $region52: #{_lambda_.1} parent=1 // pred_region
      _
    $region53: #{_lambda_.1} parent=1 // pred_fallthru
      _
    // Predicated region
    $region54: #{_lambda_.1} parent=1 // pred_check
      _
    $region55: #{_lambda_.1} parent=1 // pred_check_branch
      %50 = sbr.rel (0) target = $region57
    $region56: #{_lambda_.1} parent=1 // pred_region
      _
    $region57: #{_lambda_.1} parent=1 // pred_fallthru
      _
    // Predicated region
    $region58: #{_lambda_.1} parent=1 // pred_check
      _
    $region59: #{_lambda_.1} parent=1 // pred_check_branch
      %52 = sbr.rel (0) target = $region61
    $region60: #{_lambda_.1} parent=1 // pred_region
      _
    $region61: #{_lambda_.1} parent=1 // pred_fallthru
      _
    // Predicated region
    $region62: #{_lambda_.1} parent=1 // pred_check
      _
    $region63: #{_lambda_.1} parent=1 // pred_check_branch
      %54 = sbr.rel (0) target = $region65
    $region64: #{_lambda_.1} parent=1 // pred_region
      _
    $region65: #{_lambda_.1} parent=1 // pred_fallthru
      _
    // Predicated region
    $region66: #{_lambda_.1} parent=1 // pred_check
      _
    $region67: #{_lambda_.1} parent=1 // pred_check_branch
      %56 = sbr.rel (0) target = $region69
    $region68: #{_lambda_.1} parent=1 // pred_region
      _
    $region69: #{_lambda_.1} parent=1 // pred_fallthru
      _
    %v57 = vld [vmem:[%s0] sm:$0xff]
    %v58 = vld [vmem:[%s0 + $0x8] sm:$0xff]
    %v59 = vld [vmem:[%s0 + $0x10] sm:$0xff]
    %v60 = vld [vmem:[%s0 + $0x18] sm:$0xff]
    %v61 = vld [vmem:[%s0 + $0x20] sm:$0xff]
    %v62 = vld [vmem:[%s0 + $0x28] sm:$0xff]
    %v63 = vld [vmem:[%s0 + $0x30] sm:$0xff]
    %v64 = vld [vmem:[%s0 + $0x38] sm:$0xff]
    %v65 = vld [vmem:[%s0 + $0x40] sm:$0xff]
    %v66 = vld [vmem:[%s0 + $0x48] sm:$0xff]
    %v67 = vld [vmem:[%s0 + $0x50] sm:$0xff]
    %v68 = vld [vmem:[%s0 + $0x58] sm:$0xff]
    %v69 = vld [vmem:[%s0 + $0x60] sm:$0xff]
    %v70 = vld [vmem:[%s0 + $0x68] sm:$0xff]
    %v71 = vld [vmem:[%s0 + $0x70] sm:$0xff]
    %v72 = vld [vmem:[%s0 + $0x78] sm:$0xff]
    %v73 = vld [vmem:[%s1] sm:$0xff]
    %v74 = vld [vmem:[%s1 + $0x8] sm:$0xff]
    %v75 = vld [vmem:[%s1 + $0x10] sm:$0xff]
    %v76 = vld [vmem:[%s1 + $0x18] sm:$0xff]
    %v77 = vld [vmem:[%s1 + $0x20] sm:$0xff]
    %v78 = vld [vmem:[%s1 + $0x28] sm:$0xff]
    %v79 = vld [vmem:[%s1 + $0x30] sm:$0xff]
    %v80 = vld [vmem:[%s1 + $0x38] sm:$0xff]
    %v81 = vld [vmem:[%s1 + $0x40] sm:$0xff]
    %v82 = vld [vmem:[%s1 + $0x48] sm:$0xff]
    %v83 = vld [vmem:[%s1 + $0x50] sm:$0xff]
    %v84 = vld [vmem:[%s1 + $0x58] sm:$0xff]
    %v85 = vld [vmem:[%s1 + $0x60] sm:$0xff]
    %v86 = vld [vmem:[%s1 + $0x68] sm:$0xff]
    %v87 = vld [vmem:[%s1 + $0x70] sm:$0xff]
    %v88 = vld [vmem:[%s1 + $0x78] sm:$0xff]
    %v89 = vld [vmem:[%s1 + $0x80] sm:$0xff]
    %v90 = vld [vmem:[%s1 + $0x88] sm:$0xff]
    %v91 = vld [vmem:[%s1 + $0x90] sm:$0xff]
    %v92 = vld [vmem:[%s1 + $0x98] sm:$0xff]
    %v93 = vld [vmem:[%s1 + $0xa0] sm:$0xff]
    %v94 = vld [vmem:[%s1 + $0xa8] sm:$0xff]
    %v95 = vld [vmem:[%s1 + $0xb0] sm:$0xff]
    %v96 = vld [vmem:[%s1 + $0xb8] sm:$0xff]
    %v97 = vld [vmem:[%s1 + $0xc0] sm:$0xff]
    %v98 = vld [vmem:[%s1 + $0xc8] sm:$0xff]
    %v99 = vld [vmem:[%s1 + $0xd0] sm:$0xff]
    %v100 = vld [vmem:[%s1 + $0xd8] sm:$0xff]
    %v101 = vld [vmem:[%s1 + $0xe0] sm:$0xff]
    %v102 = vld [vmem:[%s1 + $0xe8] sm:$0xff]
    %v103 = vld [vmem:[%s1 + $0xf0] sm:$0xff]
    %v104 = vld [vmem:[%s1 + $0xf8] sm:$0xff]
    %v105 = vld [vmem:[%s1 + $0x100] sm:$0xff]
    %v106 = vld [vmem:[%s1 + $0x108] sm:$0xff]
    %v107 = vld [vmem:[%s1 + $0x110] sm:$0xff]
    %v108 = vld [vmem:[%s1 + $0x118] sm:$0xff]
    %v109 = vld [vmem:[%s1 + $0x120] sm:$0xff]
    %v110 = vld [vmem:[%s1 + $0x128] sm:$0xff]
    %v111 = vld [vmem:[%s1 + $0x130] sm:$0xff]
    %v112 = vld [vmem:[%s1 + $0x138] sm:$0xff]
    %v113 = vld [vmem:[%s1 + $0x140] sm:$0xff]
    %v114 = vld [vmem:[%s1 + $0x148] sm:$0xff]
    %v115 = vld [vmem:[%s1 + $0x150] sm:$0xff]
    %v116 = vld [vmem:[%s1 + $0x158] sm:$0xff]
    %v117 = vld [vmem:[%s1 + $0x160] sm:$0xff]
    %v118 = vld [vmem:[%s1 + $0x168] sm:$0xff]
    %v119 = vld [vmem:[%s1 + $0x170] sm:$0xff]
    %v120 = vld [vmem:[%s1 + $0x178] sm:$0xff]
    %v121 = vld [vmem:[%s1 + $0x180] sm:$0xff]
    %v122 = vld [vmem:[%s1 + $0x188] sm:$0xff]
    %v123 = vld [vmem:[%s1 + $0x190] sm:$0xff]
    %v124 = vld [vmem:[%s1 + $0x198] sm:$0xff]
    %v125 = vld [vmem:[%s1 + $0x1a0] sm:$0xff]
    %v126 = vld [vmem:[%s1 + $0x1a8] sm:$0xff]
    %v127 = vld [vmem:[%s1 + $0x1b0] sm:$0xff]
    %v128 = vld [vmem:[%s1 + $0x1b8] sm:$0xff]
    %v129 = vld [vmem:[%s1 + $0x1c0] sm:$0xff]
    %v130 = vld [vmem:[%s1 + $0x1c8] sm:$0xff]
    %v131 = vld [vmem:[%s1 + $0x1d0] sm:$0xff]
    %v132 = vld [vmem:[%s1 + $0x1d8] sm:$0xff]
    %v133 = vld [vmem:[%s1 + $0x1e0] sm:$0xff]
    %v134 = vld [vmem:[%s1 + $0x1e8] sm:$0xff]
    %v135 = vld [vmem:[%s1 + $0x1f0] sm:$0xff]
    %v136 = vld [vmem:[%s1 + $0x1f8] sm:$0xff]
    %137 = vmatprep.subr.mxu0 0.0
    %138 = vmatpush1.msra.mxu0 %v73
    %139 = vmatprep.subr.mxu0 0.0
    %140 = vmatpush1.msra.mxu0 %v74
    %141 = vmatprep.subr.mxu0 0.0
    %142 = vmatpush1.msra.mxu0 %v75
    %143 = vmatprep.subr.mxu0 0.0
    %144 = vmatpush1.msra.mxu0 %v76
    %145 = vmatprep.subr.mxu0 0.0
    %146 = vmatpush1.msra.mxu0 %v77
    %147 = vmatprep.subr.mxu0 0.0
    %148 = vmatpush1.msra.mxu0 %v78
    %149 = vmatprep.subr.mxu0 0.0
    %150 = vmatpush1.msra.mxu0 %v79
    %151 = vmatprep.subr.mxu0 0.0
    %152 = vmatpush1.msra.mxu0 %v80
    %153 = vmatprep.subr.mxu0 0.0
    %154 = vmatpush1.msra.mxu0 %v81
    %155 = vmatprep.subr.mxu0 0.0
    %156 = vmatpush1.msra.mxu0 %v82
    %157 = vmatprep.subr.mxu0 0.0
    %158 = vmatpush1.msra.mxu0 %v83
    %159 = vmatprep.subr.mxu0 0.0
    %160 = vmatpush1.msra.mxu0 %v84
    %161 = vmatprep.subr.mxu0 0.0
    %162 = vmatpush1.msra.mxu0 %v85
    %163 = vmatprep.subr.mxu0 0.0
    %164 = vmatpush1.msra.mxu0 %v86
    %165 = vmatprep.subr.mxu0 0.0
    %166 = vmatpush1.msra.mxu0 %v87
    %167 = vmatprep.subr.mxu0 0.0
    %168 = vmatpush1.msra.mxu0 %v88
    %169 = vmatprep.subr.mxu0 0.0
    %170 = vmatpush1.msra.mxu0 %v89
    %171 = vmatprep.subr.mxu0 0.0
    %172 = vmatpush1.msra.mxu0 %v90
    %173 = vmatprep.subr.mxu0 0.0
    %174 = vmatpush1.msra.mxu0 %v91
    %175 = vmatprep.subr.mxu0 0.0
    %176 = vmatpush1.msra.mxu0 %v92
    %177 = vmatprep.subr.mxu0 0.0
    %178 = vmatpush1.msra.mxu0 %v93
    %179 = vmatprep.subr.mxu0 0.0
    %180 = vmatpush1.msra.mxu0 %v94
    %181 = vmatprep.subr.mxu0 0.0
    %182 = vmatpush1.msra.mxu0 %v95
    %183 = vmatprep.subr.mxu0 0.0
    %184 = vmatpush1.msra.mxu0 %v96
    %185 = vmatprep.subr.mxu0 0.0
    %186 = vmatpush1.msra.mxu0 %v97
    %187 = vmatprep.subr.mxu0 0.0
    %188 = vmatpush1.msra.mxu0 %v98
    %189 = vmatprep.subr.mxu0 0.0
    %190 = vmatpush1.msra.mxu0 %v99
    %191 = vmatprep.subr.mxu0 0.0
    %192 = vmatpush1.msra.mxu0 %v100
    %193 = vmatprep.subr.mxu0 0.0
    %194 = vmatpush1.msra.mxu0 %v101
    %195 = vmatprep.subr.mxu0 0.0
    %196 = vmatpush1.msra.mxu0 %v102
    %197 = vmatprep.subr.mxu0 0.0
    %198 = vmatpush1.msra.mxu0 %v103
    %199 = vmatprep.subr.mxu0 0.0
    %200 = vmatpush1.msra.mxu0 %v104
    %201 = vmatprep.mubr.f32.mxu0 %v58
    %202 = vmatmul.mubr.f32.gmra.mrb[0].mxu0 %v57
    %v203 = vpop.f32.mrb[0].mxu0
    %v204 = vadd.f32 0.0, %v203
    %v205 = vpop.f32.mrb[0].mxu0
    %206 = vmatprep.mubr.f32.mxu0 %v62
    %207 = vmatmul.mubr.f32.gmra.mrb[0].mxu0 %v61
    %v208 = vpop.f32.mrb[0].mxu0
    %v209 = vadd.f32 0.0, %v208
    %v210 = vpop.f32.mrb[0].mxu0
    %211 = vmatprep.mubr.f32.mxu0 %v66
    %212 = vmatmul.mubr.f32.gmra.mrb[0].mxu0 %v65
    %v213 = vpop.f32.mrb[0].mxu0
    %v214 = vadd.f32 0.0, %v213
    %v215 = vpop.f32.mrb[0].mxu0
    %216 = vmatprep.mubr.f32.mxu0 %v70
    %217 = vmatmul.mubr.f32.gmra.mrb[0].mxu0 %v69
    %v218 = vpop.f32.mrb[0].mxu0
    %v219 = vadd.f32 0.0, %v218
    %v220 = vpop.f32.mrb[0].mxu0
    %221 = vdwg.mxu0
    %222 = vmatprep.subr.mxu0 0.0
    %223 = vmatpush1.msra.mxu0 %v105
    %224 = vmatprep.subr.mxu0 0.0
    %225 = vmatpush1.msra.mxu0 %v106
    %226 = vmatprep.subr.mxu0 0.0
    %227 = vmatpush1.msra.mxu0 %v107
    %228 = vmatprep.subr.mxu0 0.0
    %229 = vmatpush1.msra.mxu0 %v108
    %230 = vmatprep.subr.mxu0 0.0
    %231 = vmatpush1.msra.mxu0 %v109
    %232 = vmatprep.subr.mxu0 0.0
    %233 = vmatpush1.msra.mxu0 %v110
    %234 = vmatprep.subr.mxu0 0.0
    %235 = vmatpush1.msra.mxu0 %v111
    %236 = vmatprep.subr.mxu0 0.0
    %237 = vmatpush1.msra.mxu0 %v112
    %238 = vmatprep.subr.mxu0 0.0
    %239 = vmatpush1.msra.mxu0 %v113
    %240 = vmatprep.subr.mxu0 0.0
    %241 = vmatpush1.msra.mxu0 %v114
    %242 = vmatprep.subr.mxu0 0.0
    %243 = vmatpush1.msra.mxu0 %v115
    %244 = vmatprep.subr.mxu0 0.0
    %245 = vmatpush1.msra.mxu0 %v116
    %246 = vmatprep.subr.mxu0 0.0
    %247 = vmatpush1.msra.mxu0 %v117
    %248 = vmatprep.subr.mxu0 0.0
    %249 = vmatpush1.msra.mxu0 %v118
    %250 = vmatprep.subr.mxu0 0.0
    %251 = vmatpush1.msra.mxu0 %v119
    %252 = vmatprep.subr.mxu0 0.0
    %253 = vmatpush1.msra.mxu0 %v120
    %254 = vmatprep.subr.mxu0 0.0
    %255 = vmatpush1.msra.mxu0 %v121
    %256 = vmatprep.subr.mxu0 0.0
    %257 = vmatpush1.msra.mxu0 %v122
    %258 = vmatprep.subr.mxu0 0.0
    %259 = vmatpush1.msra.mxu0 %v123
    %260 = vmatprep.subr.mxu0 0.0
    %261 = vmatpush1.msra.mxu0 %v124
    %262 = vmatprep.subr.mxu0 0.0
    %263 = vmatpush1.msra.mxu0 %v125
    %264 = vmatprep.subr.mxu0 0.0
    %265 = vmatpush1.msra.mxu0 %v126
    %266 = vmatprep.subr.mxu0 0.0
    %267 = vmatpush1.msra.mxu0 %v127
    %268 = vmatprep.subr.mxu0 0.0
    %269 = vmatpush1.msra.mxu0 %v128
    %270 = vmatprep.subr.mxu0 0.0
    %271 = vmatpush1.msra.mxu0 %v129
    %272 = vmatprep.subr.mxu0 0.0
    %273 = vmatpush1.msra.mxu0 %v130
    %274 = vmatprep.subr.mxu0 0.0
    %275 = vmatpush1.msra.mxu0 %v131
    %276 = vmatprep.subr.mxu0 0.0
    %277 = vmatpush1.msra.mxu0 %v132
    %278 = vmatprep.subr.mxu0 0.0
    %279 = vmatpush1.msra.mxu0 %v133
    %280 = vmatprep.subr.mxu0 0.0
    %281 = vmatpush1.msra.mxu0 %v134
    %282 = vmatprep.subr.mxu0 0.0
    %283 = vmatpush1.msra.mxu0 %v135
    %284 = vmatprep.subr.mxu0 0.0
    %285 = vmatpush1.msra.mxu0 %v136
    %286 = vmatprep.mubr.f32.mxu0 %v60
    %287 = vmatmul.mubr.f32.gmra.mrb[0].mxu0 %v59
    %v288 = vpop.f32.mrb[0].mxu0
    %v289 = vadd.f32 %v204, %v288
    %v290 = vpop.f32.mrb[0].mxu0
    %291 = vmatprep.mubr.f32.mxu0 %v64
    %292 = vmatmul.mubr.f32.gmra.mrb[0].mxu0 %v63
    %v293 = vpop.f32.mrb[0].mxu0
    %v294 = vadd.f32 %v209, %v293
    %v295 = vpop.f32.mrb[0].mxu0
    %296 = vmatprep.mubr.f32.mxu0 %v68
    %297 = vmatmul.mubr.f32.gmra.mrb[0].mxu0 %v67
    %v298 = vpop.f32.mrb[0].mxu0
    %v299 = vadd.f32 %v214, %v298
    %v300 = vpop.f32.mrb[0].mxu0
    %301 = vmatprep.mubr.f32.mxu0 %v72
    %302 = vmatmul.mubr.f32.gmra.mrb[0].mxu0 %v71
    %v303 = vpop.f32.mrb[0].mxu0
    %v304 = vadd.f32 %v219, %v303
    %v305 = vpop.f32.mrb[0].mxu0
    %306 = vdwg.mxu0
    %v307 = vld [vmem:[%s2] sm:$0xff]
    %v308 = vld [vmem:[%s2 + $0x8] sm:$0xff]
    %v309 = vld [vmem:[%s2 + $0x10] sm:$0xff]
    %v310 = vld [vmem:[%s2 + $0x18] sm:$0xff]
    %v311 = vld [vmem:[%s2 + $0x20] sm:$0xff]
    %v312 = vld [vmem:[%s2 + $0x28] sm:$0xff]
    %v313 = vld [vmem:[%s2 + $0x30] sm:$0xff]
    %v314 = vld [vmem:[%s2 + $0x38] sm:$0xff]
    %315 = vrot.lane.b32.xlu0 %v57, 127
    %v316 = vpop.permute.xlu0 %315
    %317 = vrot.lane.b32.xlu0 %v61, 127
    %v318 = vpop.permute.xlu0 %317
    %319 = vrot.lane.b32.xlu0 %v65, 127
    %v320 = vpop.permute.xlu0 %319
    %321 = vrot.lane.b32.xlu0 %v69, 127
    %v322 = vpop.permute.xlu0 %321
    %323 = vrot.lane.b32.xlu0 %v58, 127
    %v324 = vpop.permute.xlu0 %323
    %325 = vrot.lane.b32.xlu0 %v62, 127
    %v326 = vpop.permute.xlu0 %325
    %327 = vrot.lane.b32.xlu0 %v66, 127
    %v328 = vpop.permute.xlu0 %327
    %329 = vrot.lane.b32.xlu0 %v70, 127
    %v330 = vpop.permute.xlu0 %329
    %331 = vrot.lane.b32.xlu0 %v59, 127
    %v332 = vpop.permute.xlu0 %331
    %333 = vrot.lane.b32.xlu0 %v63, 127
    %v334 = vpop.permute.xlu0 %333
    %335 = vrot.lane.b32.xlu0 %v67, 127
    %v336 = vpop.permute.xlu0 %335
    %337 = vrot.lane.b32.xlu0 %v71, 127
    %v338 = vpop.permute.xlu0 %337
    %339 = vrot.lane.b32.xlu0 %v60, 127
    %v340 = vpop.permute.xlu0 %339
    %341 = vrot.lane.b32.xlu0 %v64, 127
    %v342 = vpop.permute.xlu0 %341
    %343 = vrot.lane.b32.xlu0 %v68, 127
    %v344 = vpop.permute.xlu0 %343
    %345 = vrot.lane.b32.xlu0 %v72, 127
    %v346 = vpop.permute.xlu0 %345
    %v347 = vlaneseq
    %v348 = vand.u32 %v347, 127
    %vm349 = vcmp.lt.s32.totalorder %v348, 127
    %v350 = vsel %vm349, %v332, %v340
    %v351 = vsel %vm349, %v334, %v342
    %v352 = vsel %vm349, %v336, %v344
    %v353 = vsel %vm349, %v338, %v346
    %v354 = vsel %vm349, %v324, %v332
    %v355 = vsel %vm349, %v326, %v334
    %v356 = vsel %vm349, %v328, %v336
    %v357 = vsel %vm349, %v330, %v338
    %v358 = vsel %vm349, %v316, %v324
    %v359 = vsel %vm349, %v318, %v326
    %v360 = vsel %vm349, %v320, %v328
    %v361 = vsel %vm349, %v322, %v330
    %v362 = vsel %vm349, %v340, %v316
    %v363 = vsel %vm349, %v342, %v318
    %v364 = vsel %vm349, %v344, %v320
    %v365 = vsel %vm349, %v346, %v322
    %366 = vmatprep.subr.mxu0 0.0
    %367 = vmatpush1.msra.mxu0 %v73
    %368 = vmatprep.subr.mxu0 0.0
    %369 = vmatpush1.msra.mxu0 %v74
    %370 = vmatprep.subr.mxu0 0.0
    %371 = vmatpush1.msra.mxu0 %v75
    %372 = vmatprep.subr.mxu0 0.0
    %373 = vmatpush1.msra.mxu0 %v76
    %374 = vmatprep.subr.mxu0 0.0
    %375 = vmatpush1.msra.mxu0 %v77
    %376 = vmatprep.subr.mxu0 0.0
    %377 = vmatpush1.msra.mxu0 %v78
    %378 = vmatprep.subr.mxu0 0.0
    %379 = vmatpush1.msra.mxu0 %v79
    %380 = vmatprep.subr.mxu0 0.0
    %381 = vmatpush1.msra.mxu0 %v80
    %382 = vmatprep.subr.mxu0 0.0
    %383 = vmatpush1.msra.mxu0 %v81
    %384 = vmatprep.subr.mxu0 0.0
    %385 = vmatpush1.msra.mxu0 %v82
    %386 = vmatprep.subr.mxu0 0.0
    %387 = vmatpush1.msra.mxu0 %v83
    %388 = vmatprep.subr.mxu0 0.0
    %389 = vmatpush1.msra.mxu0 %v84
    %390 = vmatprep.subr.mxu0 0.0
    %391 = vmatpush1.msra.mxu0 %v85
    %392 = vmatprep.subr.mxu0 0.0
    %393 = vmatpush1.msra.mxu0 %v86
    %394 = vmatprep.subr.mxu0 0.0
    %395 = vmatpush1.msra.mxu0 %v87
    %396 = vmatprep.subr.mxu0 0.0
    %397 = vmatpush1.msra.mxu0 %v88
    %398 = vmatprep.subr.mxu0 0.0
    %399 = vmatpush1.msra.mxu0 %v89
    %400 = vmatprep.subr.mxu0 0.0
    %401 = vmatpush1.msra.mxu0 %v90
    %402 = vmatprep.subr.mxu0 0.0
    %403 = vmatpush1.msra.mxu0 %v91
    %404 = vmatprep.subr.mxu0 0.0
    %405 = vmatpush1.msra.mxu0 %v92
    %406 = vmatprep.subr.mxu0 0.0
    %407 = vmatpush1.msra.mxu0 %v93
    %408 = vmatprep.subr.mxu0 0.0
    %409 = vmatpush1.msra.mxu0 %v94
    %410 = vmatprep.subr.mxu0 0.0
    %411 = vmatpush1.msra.mxu0 %v95
    %412 = vmatprep.subr.mxu0 0.0
    %413 = vmatpush1.msra.mxu0 %v96
    %414 = vmatprep.subr.mxu0 0.0
    %415 = vmatpush1.msra.mxu0 %v97
    %416 = vmatprep.subr.mxu0 0.0
    %417 = vmatpush1.msra.mxu0 %v98
    %418 = vmatprep.subr.mxu0 0.0
    %419 = vmatpush1.msra.mxu0 %v99
    %420 = vmatprep.subr.mxu0 0.0
    %421 = vmatpush1.msra.mxu0 %v100
    %422 = vmatprep.subr.mxu0 0.0
    %423 = vmatpush1.msra.mxu0 %v101
    %424 = vmatprep.subr.mxu0 0.0
    %425 = vmatpush1.msra.mxu0 %v102
    %426 = vmatprep.subr.mxu0 0.0
    %427 = vmatpush1.msra.mxu0 %v103
    %428 = vmatprep.subr.mxu0 0.0
    %429 = vmatpush1.msra.mxu0 %v104
    %430 = vmatprep.mubr.f32.mxu0 %v354
    %431 = vmatmul.mubr.f32.gmra.mrb[0].mxu0 %v358
    %v432 = vpop.f32.mrb[0].mxu0
    %v433 = vadd.f32 0.0, %v432
    %v434 = vpop.f32.mrb[0].mxu0
    %435 = vmatprep.mubr.f32.mxu0 %v355
    %436 = vmatmul.mubr.f32.gmra.mrb[0].mxu0 %v359
    %v437 = vpop.f32.mrb[0].mxu0
    %v438 = vadd.f32 0.0, %v437
    %v439 = vpop.f32.mrb[0].mxu0
    %440 = vmatprep.mubr.f32.mxu0 %v356
    %441 = vmatmul.mubr.f32.gmra.mrb[0].mxu0 %v360
    %v442 = vpop.f32.mrb[0].mxu0
    %v443 = vadd.f32 0.0, %v442
    %v444 = vpop.f32.mrb[0].mxu0
    %445 = vmatprep.mubr.f32.mxu0 %v357
    %446 = vmatmul.mubr.f32.gmra.mrb[0].mxu0 %v361
    %v447 = vpop.f32.mrb[0].mxu0
    %v448 = vadd.f32 0.0, %v447
    %v449 = vpop.f32.mrb[0].mxu0
    %450 = vdwg.mxu0
    %451 = vmatprep.subr.mxu0 0.0
    %452 = vmatpush1.msra.mxu0 %v105
    %453 = vmatprep.subr.mxu0 0.0
    %454 = vmatpush1.msra.mxu0 %v106
    %455 = vmatprep.subr.mxu0 0.0
    %456 = vmatpush1.msra.mxu0 %v107
    %457 = vmatprep.subr.mxu0 0.0
    %458 = vmatpush1.msra.mxu0 %v108
    %459 = vmatprep.subr.mxu0 0.0
    %460 = vmatpush1.msra.mxu0 %v109
    %461 = vmatprep.subr.mxu0 0.0
    %462 = vmatpush1.msra.mxu0 %v110
    %463 = vmatprep.subr.mxu0 0.0
    %464 = vmatpush1.msra.mxu0 %v111
    %465 = vmatprep.subr.mxu0 0.0
    %466 = vmatpush1.msra.mxu0 %v112
    %467 = vmatprep.subr.mxu0 0.0
    %468 = vmatpush1.msra.mxu0 %v113
    %469 = vmatprep.subr.mxu0 0.0
    %470 = vmatpush1.msra.mxu0 %v114
    %471 = vmatprep.subr.mxu0 0.0
    %472 = vmatpush1.msra.mxu0 %v115
    %473 = vmatprep.subr.mxu0 0.0
    %474 = vmatpush1.msra.mxu0 %v116
    %475 = vmatprep.subr.mxu0 0.0
    %476 = vmatpush1.msra.mxu0 %v117
    %477 = vmatprep.subr.mxu0 0.0
    %478 = vmatpush1.msra.mxu0 %v118
    %479 = vmatprep.subr.mxu0 0.0
    %480 = vmatpush1.msra.mxu0 %v119
    %481 = vmatprep.subr.mxu0 0.0
    %482 = vmatpush1.msra.mxu0 %v120
    %483 = vmatprep.subr.mxu0 0.0
    %484 = vmatpush1.msra.mxu0 %v121
    %485 = vmatprep.subr.mxu0 0.0
    %486 = vmatpush1.msra.mxu0 %v122
    %487 = vmatprep.subr.mxu0 0.0
    %488 = vmatpush1.msra.mxu0 %v123
    %489 = vmatprep.subr.mxu0 0.0
    %490 = vmatpush1.msra.mxu0 %v124
    %491 = vmatprep.subr.mxu0 0.0
    %492 = vmatpush1.msra.mxu0 %v125
    %493 = vmatprep.subr.mxu0 0.0
    %494 = vmatpush1.msra.mxu0 %v126
    %495 = vmatprep.subr.mxu0 0.0
    %496 = vmatpush1.msra.mxu0 %v127
    %497 = vmatprep.subr.mxu0 0.0
    %498 = vmatpush1.msra.mxu0 %v128
    %499 = vmatprep.subr.mxu0 0.0
    %500 = vmatpush1.msra.mxu0 %v129
    %501 = vmatprep.subr.mxu0 0.0
    %502 = vmatpush1.msra.mxu0 %v130
    %503 = vmatprep.subr.mxu0 0.0
    %504 = vmatpush1.msra.mxu0 %v131
    %505 = vmatprep.subr.mxu0 0.0
    %506 = vmatpush1.msra.mxu0 %v132
    %507 = vmatprep.subr.mxu0 0.0
    %508 = vmatpush1.msra.mxu0 %v133
    %509 = vmatprep.subr.mxu0 0.0
    %510 = vmatpush1.msra.mxu0 %v134
    %511 = vmatprep.subr.mxu0 0.0
    %512 = vmatpush1.msra.mxu0 %v135
    %513 = vmatprep.subr.mxu0 0.0
    %514 = vmatpush1.msra.mxu0 %v136
    %515 = vmatprep.mubr.f32.mxu0 %v362
    %516 = vmatmul.mubr.f32.gmra.mrb[0].mxu0 %v350
    %v517 = vpop.f32.mrb[0].mxu0
    %v518 = vadd.f32 %v433, %v517
    %v519 = vpop.f32.mrb[0].mxu0
    %520 = vmatprep.mubr.f32.mxu0 %v363
    %521 = vmatmul.mubr.f32.gmra.mrb[0].mxu0 %v351
    %v522 = vpop.f32.mrb[0].mxu0
    %v523 = vadd.f32 %v438, %v522
    %v524 = vpop.f32.mrb[0].mxu0
    %525 = vmatprep.mubr.f32.mxu0 %v364
    %526 = vmatmul.mubr.f32.gmra.mrb[0].mxu0 %v352
    %v527 = vpop.f32.mrb[0].mxu0
    %v528 = vadd.f32 %v443, %v527
    %v529 = vpop.f32.mrb[0].mxu0
    %530 = vmatprep.mubr.f32.mxu0 %v365
    %531 = vmatmul.mubr.f32.gmra.mrb[0].mxu0 %v353
    %v532 = vpop.f32.mrb[0].mxu0
    %v533 = vadd.f32 %v448, %v532
    %v534 = vpop.f32.mrb[0].mxu0
    %535 = vdwg.mxu0
    %v536 = vld [vmem:[%s2 + $0x40] sm:$0xff]
    %v537 = vld [vmem:[%s2 + $0x48] sm:$0xff]
    %v538 = vld [vmem:[%s2 + $0x50] sm:$0xff]
    %v539 = vld [vmem:[%s2 + $0x58] sm:$0xff]
    %v540 = vld [vmem:[%s2 + $0x60] sm:$0xff]
    %v541 = vld [vmem:[%s2 + $0x68] sm:$0xff]
    %v542 = vld [vmem:[%s2 + $0x70] sm:$0xff]
    %v543 = vld [vmem:[%s2 + $0x78] sm:$0xff]
    %vm544 = vcmask 261120
    %v546 = vsel %vm544, %v536, 0
    %v549 = vsel %vm544, %v537, 0
    %v552 = vsel %vm544, %v538, 0
    %v555 = vsel %vm544, %v539, 0
    %v558 = vsel %vm544, %v540, 0
    %v561 = vsel %vm544, %v541, 0
    %v564 = vsel %vm544, %v542, 0
    %v567 = vsel %vm544, %v543, 0
    %569 = vmatprep.subr.mxu0 0.0
    %570 = vmatpush1.msra.mxu0 %v518
    %571 = vmatprep.subr.mxu0 0.0
    %572 = vmatpush1.msra.mxu0 %v523
    %573 = vmatprep.subr.mxu0 0.0
    %574 = vmatpush1.msra.mxu0 %v528
    %575 = vmatprep.subr.mxu0 0.0
    %576 = vmatpush1.msra.mxu0 %v533
    %577 = vmatprep.subr.mxu0 0.0
    %578 = vmatpush1.msra.mxu0 0.0
    %579 = vmatprep.subr.mxu0 0.0
    %580 = vmatpush1.msra.mxu0 0.0
    %581 = vmatprep.subr.mxu0 0.0
    %582 = vmatpush1.msra.mxu0 0.0
    %583 = vmatprep.subr.mxu0 0.0
    %584 = vmatpush1.msra.mxu0 0.0
    %585 = vmatprep.subr.mxu0 0.0
    %586 = vmatpush1.msra.mxu0 0.0
    %587 = vmatprep.subr.mxu0 0.0
    %588 = vmatpush1.msra.mxu0 0.0
    %589 = vmatprep.subr.mxu0 0.0
    %590 = vmatpush1.msra.mxu0 0.0
    %591 = vmatprep.subr.mxu0 0.0
    %592 = vmatpush1.msra.mxu0 0.0
    %593 = vmatprep.subr.mxu0 0.0
    %594 = vmatpush1.msra.mxu0 0.0
    %595 = vmatprep.subr.mxu0 0.0
    %596 = vmatpush1.msra.mxu0 0.0
    %597 = vmatprep.subr.mxu0 0.0
    %598 = vmatpush1.msra.mxu0 0.0
    %599 = vmatprep.subr.mxu0 0.0
    %600 = vmatpush1.msra.mxu0 0.0
    %601 = vmatprep.subr.mxu0 0.0
    %602 = vmatpush1.msra.mxu0 0.0
    %603 = vmatprep.subr.mxu0 0.0
    %604 = vmatpush1.msra.mxu0 0.0
    %605 = vmatprep.subr.mxu0 0.0
    %606 = vmatpush1.msra.mxu0 0.0
    %607 = vmatprep.subr.mxu0 0.0
    %608 = vmatpush1.msra.mxu0 0.0
    %609 = vmatprep.subr.mxu0 0.0
    %610 = vmatpush1.msra.mxu0 0.0
    %611 = vmatprep.subr.mxu0 0.0
    %612 = vmatpush1.msra.mxu0 0.0
    %613 = vmatprep.subr.mxu0 0.0
    %614 = vmatpush1.msra.mxu0 0.0
    %615 = vmatprep.subr.mxu0 0.0
    %616 = vmatpush1.msra.mxu0 0.0
    %617 = vmatprep.subr.mxu0 0.0
    %618 = vmatpush1.msra.mxu0 0.0
    %619 = vmatprep.subr.mxu0 0.0
    %620 = vmatpush1.msra.mxu0 0.0
    %621 = vmatprep.subr.mxu0 0.0
    %622 = vmatpush1.msra.mxu0 0.0
    %623 = vmatprep.subr.mxu0 0.0
    %624 = vmatpush1.msra.mxu0 0.0
    %625 = vmatprep.subr.mxu0 0.0
    %626 = vmatpush1.msra.mxu0 0.0
    %627 = vmatprep.subr.mxu0 0.0
    %628 = vmatpush1.msra.mxu0 0.0
    %629 = vmatprep.subr.mxu0 0.0
    %630 = vmatpush1.msra.mxu0 0.0
    %631 = vmatprep.subr.mxu0 0.0
    %632 = vmatpush1.msra.mxu0 0.0
    %633 = vmatprep.mubr.f32.mxu0 0.0
    %634 = vmatmul.mubr.f32.gmra.mrb[0].mxu0 %v546
    %v635 = vpop.f32.mrb[0].mxu0
    %v636 = vadd.f32 0.0, %v635
    %v637 = vpop.f32.mrb[0].mxu0
    %638 = vmatprep.mubr.f32.mxu0 0.0
    %639 = vmatmul.mubr.f32.gmra.mrb[0].mxu0 %v549
    %v640 = vpop.f32.mrb[0].mxu0
    %v641 = vadd.f32 0.0, %v640
    %v642 = vpop.f32.mrb[0].mxu0
    %643 = vmatprep.mubr.f32.mxu0 0.0
    %644 = vmatmul.mubr.f32.gmra.mrb[0].mxu0 %v552
    %v645 = vpop.f32.mrb[0].mxu0
    %v646 = vadd.f32 0.0, %v645
    %v647 = vpop.f32.mrb[0].mxu0
    %648 = vmatprep.mubr.f32.mxu0 0.0
    %649 = vmatmul.mubr.f32.gmra.mrb[0].mxu0 %v555
    %v650 = vpop.f32.mrb[0].mxu0
    %v651 = vadd.f32 0.0, %v650
    %v652 = vpop.f32.mrb[0].mxu0
    %653 = vmatprep.mubr.f32.mxu0 0.0
    %654 = vmatmul.mubr.f32.gmra.mrb[0].mxu0 %v558
    %v655 = vpop.f32.mrb[0].mxu0
    %v656 = vadd.f32 0.0, %v655
    %v657 = vpop.f32.mrb[0].mxu0
    %658 = vmatprep.mubr.f32.mxu0 0.0
    %659 = vmatmul.mubr.f32.gmra.mrb[0].mxu0 %v561
    %v660 = vpop.f32.mrb[0].mxu0
    %v661 = vadd.f32 0.0, %v660
    %v662 = vpop.f32.mrb[0].mxu0
    %663 = vmatprep.mubr.f32.mxu0 0.0
    %664 = vmatmul.mubr.f32.gmra.mrb[0].mxu0 %v564
    %v665 = vpop.f32.mrb[0].mxu0
    %v666 = vadd.f32 0.0, %v665
    %v667 = vpop.f32.mrb[0].mxu0
    %668 = vmatprep.mubr.f32.mxu0 0.0
    %669 = vmatmul.mubr.f32.gmra.mrb[0].mxu0 %v567
    %v670 = vpop.f32.mrb[0].mxu0
    %v671 = vadd.f32 0.0, %v670
    %v672 = vpop.f32.mrb[0].mxu0
    %673 = vdwg.mxu0
    %v675 = vsel %vm544, %v307, 0
    %v678 = vsel %vm544, %v308, 0
    %v681 = vsel %vm544, %v309, 0
    %v684 = vsel %vm544, %v310, 0
    %v687 = vsel %vm544, %v311, 0
    %v690 = vsel %vm544, %v312, 0
    %v693 = vsel %vm544, %v313, 0
    %v696 = vsel %vm544, %v314, 0
    %698 = vmatprep.subr.mxu0 0.0
    %699 = vmatpush1.msra.mxu0 %v289
    %700 = vmatprep.subr.mxu0 0.0
    %701 = vmatpush1.msra.mxu0 %v294
    %702 = vmatprep.subr.mxu0 0.0
    %703 = vmatpush1.msra.mxu0 %v299
    %704 = vmatprep.subr.mxu0 0.0
    %705 = vmatpush1.msra.mxu0 %v304
    %706 = vmatprep.subr.mxu0 0.0
    %707 = vmatpush1.msra.mxu0 0.0
    %708 = vmatprep.subr.mxu0 0.0
    %709 = vmatpush1.msra.mxu0 0.0
    %710 = vmatprep.subr.mxu0 0.0
    %711 = vmatpush1.msra.mxu0 0.0
    %712 = vmatprep.subr.mxu0 0.0
    %713 = vmatpush1.msra.mxu0 0.0
    %714 = vmatprep.subr.mxu0 0.0
    %715 = vmatpush1.msra.mxu0 0.0
    %716 = vmatprep.subr.mxu0 0.0
    %717 = vmatpush1.msra.mxu0 0.0
    %718 = vmatprep.subr.mxu0 0.0
    %719 = vmatpush1.msra.mxu0 0.0
    %720 = vmatprep.subr.mxu0 0.0
    %721 = vmatpush1.msra.mxu0 0.0
    %722 = vmatprep.subr.mxu0 0.0
    %723 = vmatpush1.msra.mxu0 0.0
    %724 = vmatprep.subr.mxu0 0.0
    %725 = vmatpush1.msra.mxu0 0.0
    %726 = vmatprep.subr.mxu0 0.0
    %727 = vmatpush1.msra.mxu0 0.0
    %728 = vmatprep.subr.mxu0 0.0
    %729 = vmatpush1.msra.mxu0 0.0
    %730 = vmatprep.subr.mxu0 0.0
    %731 = vmatpush1.msra.mxu0 0.0
    %732 = vmatprep.subr.mxu0 0.0
    %733 = vmatpush1.msra.mxu0 0.0
    %734 = vmatprep.subr.mxu0 0.0
    %735 = vmatpush1.msra.mxu0 0.0
    %736 = vmatprep.subr.mxu0 0.0
    %737 = vmatpush1.msra.mxu0 0.0
    %738 = vmatprep.subr.mxu0 0.0
    %739 = vmatpush1.msra.mxu0 0.0
    %740 = vmatprep.subr.mxu0 0.0
    %741 = vmatpush1.msra.mxu0 0.0
    %742 = vmatprep.subr.mxu0 0.0
    %743 = vmatpush1.msra.mxu0 0.0
    %744 = vmatprep.subr.mxu0 0.0
    %745 = vmatpush1.msra.mxu0 0.0
    %746 = vmatprep.subr.mxu0 0.0
    %747 = vmatpush1.msra.mxu0 0.0
    %748 = vmatprep.subr.mxu0 0.0
    %749 = vmatpush1.msra.mxu0 0.0
    %750 = vmatprep.subr.mxu0 0.0
    %751 = vmatpush1.msra.mxu0 0.0
    %752 = vmatprep.subr.mxu0 0.0
    %753 = vmatpush1.msra.mxu0 0.0
    %754 = vmatprep.subr.mxu0 0.0
    %755 = vmatpush1.msra.mxu0 0.0
    %756 = vmatprep.subr.mxu0 0.0
    %757 = vmatpush1.msra.mxu0 0.0
    %758 = vmatprep.subr.mxu0 0.0
    %759 = vmatpush1.msra.mxu0 0.0
    %760 = vmatprep.subr.mxu0 0.0
    %761 = vmatpush1.msra.mxu0 0.0
    %762 = vmatprep.mubr.f32.mxu0 0.0
    %763 = vmatmul.mubr.f32.gmra.mrb[0].mxu0 %v675
    %v764 = vpop.f32.mrb[0].mxu0
    %v765 = vadd.f32 %v636, %v764
    %v766 = vpop.f32.mrb[0].mxu0
    %767 = vmatprep.mubr.f32.mxu0 0.0
    %768 = vmatmul.mubr.f32.gmra.mrb[0].mxu0 %v678
    %v769 = vpop.f32.mrb[0].mxu0
    %v770 = vadd.f32 %v641, %v769
    %v771 = vpop.f32.mrb[0].mxu0
    %772 = vmatprep.mubr.f32.mxu0 0.0
    %773 = vmatmul.mubr.f32.gmra.mrb[0].mxu0 %v681
    %v774 = vpop.f32.mrb[0].mxu0
    %v775 = vadd.f32 %v646, %v774
    %v776 = vpop.f32.mrb[0].mxu0
    %777 = vmatprep.mubr.f32.mxu0 0.0
    %778 = vmatmul.mubr.f32.gmra.mrb[0].mxu0 %v684
    %v779 = vpop.f32.mrb[0].mxu0
    %v780 = vadd.f32 %v651, %v779
    %v781 = vpop.f32.mrb[0].mxu0
    %782 = vmatprep.mubr.f32.mxu0 0.0
    %783 = vmatmul.mubr.f32.gmra.mrb[0].mxu0 %v687
    %v784 = vpop.f32.mrb[0].mxu0
    %v785 = vadd.f32 %v656, %v784
    %v786 = vpop.f32.mrb[0].mxu0
    %787 = vmatprep.mubr.f32.mxu0 0.0
    %788 = vmatmul.mubr.f32.gmra.mrb[0].mxu0 %v690
    %v789 = vpop.f32.mrb[0].mxu0
    %v790 = vadd.f32 %v661, %v789
    %v791 = vpop.f32.mrb[0].mxu0
    %792 = vmatprep.mubr.f32.mxu0 0.0
    %793 = vmatmul.mubr.f32.gmra.mrb[0].mxu0 %v693
    %v794 = vpop.f32.mrb[0].mxu0
    %v795 = vadd.f32 %v666, %v794
    %v796 = vpop.f32.mrb[0].mxu0
    %797 = vmatprep.mubr.f32.mxu0 0.0
    %798 = vmatmul.mubr.f32.gmra.mrb[0].mxu0 %v696
    %v799 = vpop.f32.mrb[0].mxu0
    %v800 = vadd.f32 %v671, %v799
    %v801 = vpop.f32.mrb[0].mxu0
    %802 = vdwg.mxu0
    %803 = vrot.lane.b32.xlu0 %v57, 126
    %v804 = vpop.permute.xlu0 %803
    %805 = vrot.lane.b32.xlu0 %v61, 126
    %v806 = vpop.permute.xlu0 %805
    %807 = vrot.lane.b32.xlu0 %v65, 126
    %v808 = vpop.permute.xlu0 %807
    %809 = vrot.lane.b32.xlu0 %v69, 126
    %v810 = vpop.permute.xlu0 %809
    %811 = vrot.lane.b32.xlu0 %v58, 126
    %v812 = vpop.permute.xlu0 %811
    %813 = vrot.lane.b32.xlu0 %v62, 126
    %v814 = vpop.permute.xlu0 %813
    %815 = vrot.lane.b32.xlu0 %v66, 126
    %v816 = vpop.permute.xlu0 %815
    %817 = vrot.lane.b32.xlu0 %v70, 126
    %v818 = vpop.permute.xlu0 %817
    %819 = vrot.lane.b32.xlu0 %v59, 126
    %v820 = vpop.permute.xlu0 %819
    %821 = vrot.lane.b32.xlu0 %v63, 126
    %v822 = vpop.permute.xlu0 %821
    %823 = vrot.lane.b32.xlu0 %v67, 126
    %v824 = vpop.permute.xlu0 %823
    %825 = vrot.lane.b32.xlu0 %v71, 126
    %v826 = vpop.permute.xlu0 %825
    %827 = vrot.lane.b32.xlu0 %v60, 126
    %v828 = vpop.permute.xlu0 %827
    %829 = vrot.lane.b32.xlu0 %v64, 126
    %v830 = vpop.permute.xlu0 %829
    %831 = vrot.lane.b32.xlu0 %v68, 126
    %v832 = vpop.permute.xlu0 %831
    %833 = vrot.lane.b32.xlu0 %v72, 126
    %v834 = vpop.permute.xlu0 %833
    %vm835 = vcmp.lt.s32.totalorder %v348, 126
    %v836 = vsel %vm835, %v820, %v828
    %v837 = vsel %vm835, %v822, %v830
    %v838 = vsel %vm835, %v824, %v832
    %v839 = vsel %vm835, %v826, %v834
    %v840 = vsel %vm835, %v812, %v820
    %v841 = vsel %vm835, %v814, %v822
    %v842 = vsel %vm835, %v816, %v824
    %v843 = vsel %vm835, %v818, %v826
    %v844 = vsel %vm835, %v804, %v812
    %v845 = vsel %vm835, %v806, %v814
    %v846 = vsel %vm835, %v808, %v816
    %v847 = vsel %vm835, %v810, %v818
    %v848 = vsel %vm835, %v828, %v804
    %v849 = vsel %vm835, %v830, %v806
    %v850 = vsel %vm835, %v832, %v808
    %v851 = vsel %vm835, %v834, %v810
    %852 = vmatprep.subr.mxu0 0.0
    %853 = vmatpush1.msra.mxu0 %v73
    %854 = vmatprep.subr.mxu0 0.0
    %855 = vmatpush1.msra.mxu0 %v74
    %856 = vmatprep.subr.mxu0 0.0
    %857 = vmatpush1.msra.mxu0 %v75
    %858 = vmatprep.subr.mxu0 0.0
    %859 = vmatpush1.msra.mxu0 %v76
    %860 = vmatprep.subr.mxu0 0.0
    %861 = vmatpush1.msra.mxu0 %v77
    %862 = vmatprep.subr.mxu0 0.0
    %863 = vmatpush1.msra.mxu0 %v78
    %864 = vmatprep.subr.mxu0 0.0
    %865 = vmatpush1.msra.mxu0 %v79
    %866 = vmatprep.subr.mxu0 0.0
    %867 = vmatpush1.msra.mxu0 %v80
    %868 = vmatprep.subr.mxu0 0.0
    %869 = vmatpush1.msra.mxu0 %v81
    %870 = vmatprep.subr.mxu0 0.0
    %871 = vmatpush1.msra.mxu0 %v82
    %872 = vmatprep.subr.mxu0 0.0
    %873 = vmatpush1.msra.mxu0 %v83
    %874 = vmatprep.subr.mxu0 0.0
    %875 = vmatpush1.msra.mxu0 %v84
    %876 = vmatprep.subr.mxu0 0.0
    %877 = vmatpush1.msra.mxu0 %v85
    %878 = vmatprep.subr.mxu0 0.0
    %879 = vmatpush1.msra.mxu0 %v86
    %880 = vmatprep.subr.mxu0 0.0
    %881 = vmatpush1.msra.mxu0 %v87
    %882 = vmatprep.subr.mxu0 0.0
    %883 = vmatpush1.msra.mxu0 %v88
    %884 = vmatprep.subr.mxu0 0.0
    %885 = vmatpush1.msra.mxu0 %v89
    %886 = vmatprep.subr.mxu0 0.0
    %887 = vmatpush1.msra.mxu0 %v90
    %888 = vmatprep.subr.mxu0 0.0
    %889 = vmatpush1.msra.mxu0 %v91
    %890 = vmatprep.subr.mxu0 0.0
    %891 = vmatpush1.msra.mxu0 %v92
    %892 = vmatprep.subr.mxu0 0.0
    %893 = vmatpush1.msra.mxu0 %v93
    %894 = vmatprep.subr.mxu0 0.0
    %895 = vmatpush1.msra.mxu0 %v94
    %896 = vmatprep.subr.mxu0 0.0
    %897 = vmatpush1.msra.mxu0 %v95
    %898 = vmatprep.subr.mxu0 0.0
    %899 = vmatpush1.msra.mxu0 %v96
    %900 = vmatprep.subr.mxu0 0.0
    %901 = vmatpush1.msra.mxu0 %v97
    %902 = vmatprep.subr.mxu0 0.0
    %903 = vmatpush1.msra.mxu0 %v98
    %904 = vmatprep.subr.mxu0 0.0
    %905 = vmatpush1.msra.mxu0 %v99
    %906 = vmatprep.subr.mxu0 0.0
    %907 = vmatpush1.msra.mxu0 %v100
    %908 = vmatprep.subr.mxu0 0.0
    %909 = vmatpush1.msra.mxu0 %v101
    %910 = vmatprep.subr.mxu0 0.0
    %911 = vmatpush1.msra.mxu0 %v102
    %912 = vmatprep.subr.mxu0 0.0
    %913 = vmatpush1.msra.mxu0 %v103
    %914 = vmatprep.subr.mxu0 0.0
    %915 = vmatpush1.msra.mxu0 %v104
    %916 = vmatprep.mubr.f32.mxu0 %v840
    %917 = vmatmul.mubr.f32.gmra.mrb[0].mxu0 %v844
    %v918 = vpop.f32.mrb[0].mxu0
    %v919 = vadd.f32 0.0, %v918
    %v920 = vpop.f32.mrb[0].mxu0
    %921 = vmatprep.mubr.f32.mxu0 %v841
    %922 = vmatmul.mubr.f32.gmra.mrb[0].mxu0 %v845
    %v923 = vpop.f32.mrb[0].mxu0
    %v924 = vadd.f32 0.0, %v923
    %v925 = vpop.f32.mrb[0].mxu0
    %926 = vmatprep.mubr.f32.mxu0 %v842
    %927 = vmatmul.mubr.f32.gmra.mrb[0].mxu0 %v846
    %v928 = vpop.f32.mrb[0].mxu0
    %v929 = vadd.f32 0.0, %v928
    %v930 = vpop.f32.mrb[0].mxu0
    %931 = vmatprep.mubr.f32.mxu0 %v843
    %932 = vmatmul.mubr.f32.gmra.mrb[0].mxu0 %v847
    %v933 = vpop.f32.mrb[0].mxu0
    %v934 = vadd.f32 0.0, %v933
    %v935 = vpop.f32.mrb[0].mxu0
    %936 = vdwg.mxu0
    %937 = vmatprep.subr.mxu0 0.0
    %938 = vmatpush1.msra.mxu0 %v105
    %939 = vmatprep.subr.mxu0 0.0
    %940 = vmatpush1.msra.mxu0 %v106
    %941 = vmatprep.subr.mxu0 0.0
    %942 = vmatpush1.msra.mxu0 %v107
    %943 = vmatprep.subr.mxu0 0.0
    %944 = vmatpush1.msra.mxu0 %v108
    %945 = vmatprep.subr.mxu0 0.0
    %946 = vmatpush1.msra.mxu0 %v109
    %947 = vmatprep.subr.mxu0 0.0
    %948 = vmatpush1.msra.mxu0 %v110
    %949 = vmatprep.subr.mxu0 0.0
    %950 = vmatpush1.msra.mxu0 %v111
    %951 = vmatprep.subr.mxu0 0.0
    %952 = vmatpush1.msra.mxu0 %v112
    %953 = vmatprep.subr.mxu0 0.0
    %954 = vmatpush1.msra.mxu0 %v113
    %955 = vmatprep.subr.mxu0 0.0
    %956 = vmatpush1.msra.mxu0 %v114
    %957 = vmatprep.subr.mxu0 0.0
    %958 = vmatpush1.msra.mxu0 %v115
    %959 = vmatprep.subr.mxu0 0.0
    %960 = vmatpush1.msra.mxu0 %v116
    %961 = vmatprep.subr.mxu0 0.0
    %962 = vmatpush1.msra.mxu0 %v117
    %963 = vmatprep.subr.mxu0 0.0
    %964 = vmatpush1.msra.mxu0 %v118
    %965 = vmatprep.subr.mxu0 0.0
    %966 = vmatpush1.msra.mxu0 %v119
    %967 = vmatprep.subr.mxu0 0.0
    %968 = vmatpush1.msra.mxu0 %v120
    %969 = vmatprep.subr.mxu0 0.0
    %970 = vmatpush1.msra.mxu0 %v121
    %971 = vmatprep.subr.mxu0 0.0
    %972 = vmatpush1.msra.mxu0 %v122
    %973 = vmatprep.subr.mxu0 0.0
    %974 = vmatpush1.msra.mxu0 %v123
    %975 = vmatprep.subr.mxu0 0.0
    %976 = vmatpush1.msra.mxu0 %v124
    %977 = vmatprep.subr.mxu0 0.0
    %978 = vmatpush1.msra.mxu0 %v125
    %979 = vmatprep.subr.mxu0 0.0
    %980 = vmatpush1.msra.mxu0 %v126
    %981 = vmatprep.subr.mxu0 0.0
    %982 = vmatpush1.msra.mxu0 %v127
    %983 = vmatprep.subr.mxu0 0.0
    %984 = vmatpush1.msra.mxu0 %v128
    %985 = vmatprep.subr.mxu0 0.0
    %986 = vmatpush1.msra.mxu0 %v129
    %987 = vmatprep.subr.mxu0 0.0
    %988 = vmatpush1.msra.mxu0 %v130
    %989 = vmatprep.subr.mxu0 0.0
    %990 = vmatpush1.msra.mxu0 %v131
    %991 = vmatprep.subr.mxu0 0.0
    %992 = vmatpush1.msra.mxu0 %v132
    %993 = vmatprep.subr.mxu0 0.0
    %994 = vmatpush1.msra.mxu0 %v133
    %995 = vmatprep.subr.mxu0 0.0
    %996 = vmatpush1.msra.mxu0 %v134
    %997 = vmatprep.subr.mxu0 0.0
    %998 = vmatpush1.msra.mxu0 %v135
    %999 = vmatprep.subr.mxu0 0.0
    %1000 = vmatpush1.msra.mxu0 %v136
    %1001 = vmatprep.mubr.f32.mxu0 %v848
    %1002 = vmatmul.mubr.f32.gmra.mrb[0].mxu0 %v836
    %v1003 = vpop.f32.mrb[0].mxu0
    %v1004 = vadd.f32 %v919, %v1003
    %v1005 = vpop.f32.mrb[0].mxu0
    %1006 = vmatprep.mubr.f32.mxu0 %v849
    %1007 = vmatmul.mubr.f32.gmra.mrb[0].mxu0 %v837
    %v1008 = vpop.f32.mrb[0].mxu0
    %v1009 = vadd.f32 %v924, %v1008
    %v1010 = vpop.f32.mrb[0].mxu0
    %1011 = vmatprep.mubr.f32.mxu0 %v850
    %1012 = vmatmul.mubr.f32.gmra.mrb[0].mxu0 %v838
    %v1013 = vpop.f32.mrb[0].mxu0
    %v1014 = vadd.f32 %v929, %v1013
    %v1015 = vpop.f32.mrb[0].mxu0
    %1016 = vmatprep.mubr.f32.mxu0 %v851
    %1017 = vmatmul.mubr.f32.gmra.mrb[0].mxu0 %v839
    %v1018 = vpop.f32.mrb[0].mxu0
    %v1019 = vadd.f32 %v934, %v1018
    %v1020 = vpop.f32.mrb[0].mxu0
    %1021 = vdwg.mxu0
    %v1022 = vld [vmem:[%s2 + $0x80] sm:$0xff]
    %v1023 = vld [vmem:[%s2 + $0x88] sm:$0xff]
    %v1024 = vld [vmem:[%s2 + $0x90] sm:$0xff]
    %v1025 = vld [vmem:[%s2 + $0x98] sm:$0xff]
    %v1026 = vld [vmem:[%s2 + $0xa0] sm:$0xff]
    %v1027 = vld [vmem:[%s2 + $0xa8] sm:$0xff]
    %v1028 = vld [vmem:[%s2 + $0xb0] sm:$0xff]
    %v1029 = vld [vmem:[%s2 + $0xb8] sm:$0xff]
    %v1031 = vsel %vm544, %v1022, 0
    %v1034 = vsel %vm544, %v1023, 0
    %v1037 = vsel %vm544, %v1024, 0
    %v1040 = vsel %vm544, %v1025, 0
    %v1043 = vsel %vm544, %v1026, 0
    %v1046 = vsel %vm544, %v1027, 0
    %v1049 = vsel %vm544, %v1028, 0
    %v1052 = vsel %vm544, %v1029, 0
    %1054 = vmatprep.subr.mxu0 0.0
    %1055 = vmatpush1.msra.mxu0 %v1004
    %1056 = vmatprep.subr.mxu0 0.0
    %1057 = vmatpush1.msra.mxu0 %v1009
    %1058 = vmatprep.subr.mxu0 0.0
    %1059 = vmatpush1.msra.mxu0 %v1014
    %1060 = vmatprep.subr.mxu0 0.0
    %1061 = vmatpush1.msra.mxu0 %v1019
    %1062 = vmatprep.subr.mxu0 0.0
    %1063 = vmatpush1.msra.mxu0 0.0
    %1064 = vmatprep.subr.mxu0 0.0
    %1065 = vmatpush1.msra.mxu0 0.0
    %1066 = vmatprep.subr.mxu0 0.0
    %1067 = vmatpush1.msra.mxu0 0.0
    %1068 = vmatprep.subr.mxu0 0.0
    %1069 = vmatpush1.msra.mxu0 0.0
    %1070 = vmatprep.subr.mxu0 0.0
    %1071 = vmatpush1.msra.mxu0 0.0
    %1072 = vmatprep.subr.mxu0 0.0
    %1073 = vmatpush1.msra.mxu0 0.0
    %1074 = vmatprep.subr.mxu0 0.0
    %1075 = vmatpush1.msra.mxu0 0.0
    %1076 = vmatprep.subr.mxu0 0.0
    %1077 = vmatpush1.msra.mxu0 0.0
    %1078 = vmatprep.subr.mxu0 0.0
    %1079 = vmatpush1.msra.mxu0 0.0
    %1080 = vmatprep.subr.mxu0 0.0
    %1081 = vmatpush1.msra.mxu0 0.0
    %1082 = vmatprep.subr.mxu0 0.0
    %1083 = vmatpush1.msra.mxu0 0.0
    %1084 = vmatprep.subr.mxu0 0.0
    %1085 = vmatpush1.msra.mxu0 0.0
    %1086 = vmatprep.subr.mxu0 0.0
    %1087 = vmatpush1.msra.mxu0 0.0
    %1088 = vmatprep.subr.mxu0 0.0
    %1089 = vmatpush1.msra.mxu0 0.0
    %1090 = vmatprep.subr.mxu0 0.0
    %1091 = vmatpush1.msra.mxu0 0.0
    %1092 = vmatprep.subr.mxu0 0.0
    %1093 = vmatpush1.msra.mxu0 0.0
    %1094 = vmatprep.subr.mxu0 0.0
    %1095 = vmatpush1.msra.mxu0 0.0
    %1096 = vmatprep.subr.mxu0 0.0
    %1097 = vmatpush1.msra.mxu0 0.0
    %1098 = vmatprep.subr.mxu0 0.0
    %1099 = vmatpush1.msra.mxu0 0.0
    %1100 = vmatprep.subr.mxu0 0.0
    %1101 = vmatpush1.msra.mxu0 0.0
    %1102 = vmatprep.subr.mxu0 0.0
    %1103 = vmatpush1.msra.mxu0 0.0
    %1104 = vmatprep.subr.mxu0 0.0
    %1105 = vmatpush1.msra.mxu0 0.0
    %1106 = vmatprep.subr.mxu0 0.0
    %1107 = vmatpush1.msra.mxu0 0.0
    %1108 = vmatprep.subr.mxu0 0.0
    %1109 = vmatpush1.msra.mxu0 0.0
    %1110 = vmatprep.subr.mxu0 0.0
    %1111 = vmatpush1.msra.mxu0 0.0
    %1112 = vmatprep.subr.mxu0 0.0
    %1113 = vmatpush1.msra.mxu0 0.0
    %1114 = vmatprep.subr.mxu0 0.0
    %1115 = vmatpush1.msra.mxu0 0.0
    %1116 = vmatprep.subr.mxu0 0.0
    %1117 = vmatpush1.msra.mxu0 0.0
    %1118 = vmatprep.mubr.f32.mxu0 0.0
    %1119 = vmatmul.mubr.f32.gmra.mrb[0].mxu0 %v1031
    %v1120 = vpop.f32.mrb[0].mxu0
    %v1121 = vadd.f32 0.0, %v1120
    %v1122 = vpop.f32.mrb[0].mxu0
    %1123 = vmatprep.mubr.f32.mxu0 0.0
    %1124 = vmatmul.mubr.f32.gmra.mrb[0].mxu0 %v1034
    %v1125 = vpop.f32.mrb[0].mxu0
    %v1126 = vadd.f32 0.0, %v1125
    %v1127 = vpop.f32.mrb[0].mxu0
    %1128 = vmatprep.mubr.f32.mxu0 0.0
    %1129 = vmatmul.mubr.f32.gmra.mrb[0].mxu0 %v1037
    %v1130 = vpop.f32.mrb[0].mxu0
    %v1131 = vadd.f32 0.0, %v1130
    %v1132 = vpop.f32.mrb[0].mxu0
    %1133 = vmatprep.mubr.f32.mxu0 0.0
    %1134 = vmatmul.mubr.f32.gmra.mrb[0].mxu0 %v1040
    %v1135 = vpop.f32.mrb[0].mxu0
    %v1136 = vadd.f32 0.0, %v1135
    %v1137 = vpop.f32.mrb[0].mxu0
    %1138 = vmatprep.mubr.f32.mxu0 0.0
    %1139 = vmatmul.mubr.f32.gmra.mrb[0].mxu0 %v1043
    %v1140 = vpop.f32.mrb[0].mxu0
    %v1141 = vadd.f32 0.0, %v1140
    %v1142 = vpop.f32.mrb[0].mxu0
    %1143 = vmatprep.mubr.f32.mxu0 0.0
    %1144 = vmatmul.mubr.f32.gmra.mrb[0].mxu0 %v1046
    %v1145 = vpop.f32.mrb[0].mxu0
    %v1146 = vadd.f32 0.0, %v1145
    %v1147 = vpop.f32.mrb[0].mxu0
    %1148 = vmatprep.mubr.f32.mxu0 0.0
    %1149 = vmatmul.mubr.f32.gmra.mrb[0].mxu0 %v1049
    %v1150 = vpop.f32.mrb[0].mxu0
    %v1151 = vadd.f32 0.0, %v1150
    %v1152 = vpop.f32.mrb[0].mxu0
    %1153 = vmatprep.mubr.f32.mxu0 0.0
    %1154 = vmatmul.mubr.f32.gmra.mrb[0].mxu0 %v1052
    %v1155 = vpop.f32.mrb[0].mxu0
    %v1156 = vadd.f32 0.0, %v1155
    %v1157 = vpop.f32.mrb[0].mxu0
    %1158 = vdwg.mxu0
    %v1159 = vadd.f32 %v765, %v1121
    %v1160 = vadd.f32 %v770, %v1126
    %v1161 = vadd.f32 %v775, %v1131
    %v1162 = vadd.f32 %v780, %v1136
    %v1163 = vadd.f32 %v785, %v1141
    %v1164 = vadd.f32 %v790, %v1146
    %v1165 = vadd.f32 %v795, %v1151
    %v1166 = vadd.f32 %v800, %v1156
    %1167 = vrot.lane.b32.xlu0 %v57, 125
    %v1168 = vpop.permute.xlu0 %1167
    %1169 = vrot.lane.b32.xlu0 %v61, 125
    %v1170 = vpop.permute.xlu0 %1169
    %1171 = vrot.lane.b32.xlu0 %v65, 125
    %v1172 = vpop.permute.xlu0 %1171
    %1173 = vrot.lane.b32.xlu0 %v69, 125
    %v1174 = vpop.permute.xlu0 %1173
    %1175 = vrot.lane.b32.xlu0 %v58, 125
    %v1176 = vpop.permute.xlu0 %1175
    %1177 = vrot.lane.b32.xlu0 %v62, 125
    %v1178 = vpop.permute.xlu0 %1177
    %1179 = vrot.lane.b32.xlu0 %v66, 125
    %v1180 = vpop.permute.xlu0 %1179
    %1181 = vrot.lane.b32.xlu0 %v70, 125
    %v1182 = vpop.permute.xlu0 %1181
    %1183 = vrot.lane.b32.xlu0 %v59, 125
    %v1184 = vpop.permute.xlu0 %1183
    %1185 = vrot.lane.b32.xlu0 %v63, 125
    %v1186 = vpop.permute.xlu0 %1185
    %1187 = vrot.lane.b32.xlu0 %v67, 125
    %v1188 = vpop.permute.xlu0 %1187
    %1189 = vrot.lane.b32.xlu0 %v71, 125
    %v1190 = vpop.permute.xlu0 %1189
    %1191 = vrot.lane.b32.xlu0 %v60, 125
    %v1192 = vpop.permute.xlu0 %1191
    %1193 = vrot.lane.b32.xlu0 %v64, 125
    %v1194 = vpop.permute.xlu0 %1193
    %1195 = vrot.lane.b32.xlu0 %v68, 125
    %v1196 = vpop.permute.xlu0 %1195
    %1197 = vrot.lane.b32.xlu0 %v72, 125
    %v1198 = vpop.permute.xlu0 %1197
    %vm1199 = vcmp.lt.s32.totalorder %v348, 125
    %v1200 = vsel %vm1199, %v1184, %v1192
    %v1201 = vsel %vm1199, %v1186, %v1194
    %v1202 = vsel %vm1199, %v1188, %v1196
    %v1203 = vsel %vm1199, %v1190, %v1198
    %v1204 = vsel %vm1199, %v1176, %v1184
    %v1205 = vsel %vm1199, %v1178, %v1186
    %v1206 = vsel %vm1199, %v1180, %v1188
    %v1207 = vsel %vm1199, %v1182, %v1190
    %v1208 = vsel %vm1199, %v1168, %v1176
    %v1209 = vsel %vm1199, %v1170, %v1178
    %v1210 = vsel %vm1199, %v1172, %v1180
    %v1211 = vsel %vm1199, %v1174, %v1182
    %v1212 = vsel %vm1199, %v1192, %v1168
    %v1213 = vsel %vm1199, %v1194, %v1170
    %v1214 = vsel %vm1199, %v1196, %v1172
    %v1215 = vsel %vm1199, %v1198, %v1174
    %1216 = vmatprep.subr.mxu0 0.0
    %1217 = vmatpush1.msra.mxu0 %v73
    %1218 = vmatprep.subr.mxu0 0.0
    %1219 = vmatpush1.msra.mxu0 %v74
    %1220 = vmatprep.subr.mxu0 0.0
    %1221 = vmatpush1.msra.mxu0 %v75
    %1222 = vmatprep.subr.mxu0 0.0
    %1223 = vmatpush1.msra.mxu0 %v76
    %1224 = vmatprep.subr.mxu0 0.0
    %1225 = vmatpush1.msra.mxu0 %v77
    %1226 = vmatprep.subr.mxu0 0.0
    %1227 = vmatpush1.msra.mxu0 %v78
    %1228 = vmatprep.subr.mxu0 0.0
    %1229 = vmatpush1.msra.mxu0 %v79
    %1230 = vmatprep.subr.mxu0 0.0
    %1231 = vmatpush1.msra.mxu0 %v80
    %1232 = vmatprep.subr.mxu0 0.0
    %1233 = vmatpush1.msra.mxu0 %v81
    %1234 = vmatprep.subr.mxu0 0.0
    %1235 = vmatpush1.msra.mxu0 %v82
    %1236 = vmatprep.subr.mxu0 0.0
    %1237 = vmatpush1.msra.mxu0 %v83
    %1238 = vmatprep.subr.mxu0 0.0
    %1239 = vmatpush1.msra.mxu0 %v84
    %1240 = vmatprep.subr.mxu0 0.0
    %1241 = vmatpush1.msra.mxu0 %v85
    %1242 = vmatprep.subr.mxu0 0.0
    %1243 = vmatpush1.msra.mxu0 %v86
    %1244 = vmatprep.subr.mxu0 0.0
    %1245 = vmatpush1.msra.mxu0 %v87
    %1246 = vmatprep.subr.mxu0 0.0
    %1247 = vmatpush1.msra.mxu0 %v88
    %1248 = vmatprep.subr.mxu0 0.0
    %1249 = vmatpush1.msra.mxu0 %v89
    %1250 = vmatprep.subr.mxu0 0.0
    %1251 = vmatpush1.msra.mxu0 %v90
    %1252 = vmatprep.subr.mxu0 0.0
    %1253 = vmatpush1.msra.mxu0 %v91
    %1254 = vmatprep.subr.mxu0 0.0
    %1255 = vmatpush1.msra.mxu0 %v92
    %1256 = vmatprep.subr.mxu0 0.0
    %1257 = vmatpush1.msra.mxu0 %v93
    %1258 = vmatprep.subr.mxu0 0.0
    %1259 = vmatpush1.msra.mxu0 %v94
    %1260 = vmatprep.subr.mxu0 0.0
    %1261 = vmatpush1.msra.mxu0 %v95
    %1262 = vmatprep.subr.mxu0 0.0
    %1263 = vmatpush1.msra.mxu0 %v96
    %1264 = vmatprep.subr.mxu0 0.0
    %1265 = vmatpush1.msra.mxu0 %v97
    %1266 = vmatprep.subr.mxu0 0.0
    %1267 = vmatpush1.msra.mxu0 %v98
    %1268 = vmatprep.subr.mxu0 0.0
    %1269 = vmatpush1.msra.mxu0 %v99
    %1270 = vmatprep.subr.mxu0 0.0
    %1271 = vmatpush1.msra.mxu0 %v100
    %1272 = vmatprep.subr.mxu0 0.0
    %1273 = vmatpush1.msra.mxu0 %v101
    %1274 = vmatprep.subr.mxu0 0.0
    %1275 = vmatpush1.msra.mxu0 %v102
    %1276 = vmatprep.subr.mxu0 0.0
    %1277 = vmatpush1.msra.mxu0 %v103
    %1278 = vmatprep.subr.mxu0 0.0
    %1279 = vmatpush1.msra.mxu0 %v104
    %1280 = vmatprep.mubr.f32.mxu0 %v1204
    %1281 = vmatmul.mubr.f32.gmra.mrb[0].mxu0 %v1208
    %v1282 = vpop.f32.mrb[0].mxu0
    %v1283 = vadd.f32 0.0, %v1282
    %v1284 = vpop.f32.mrb[0].mxu0
    %1285 = vmatprep.mubr.f32.mxu0 %v1205
    %1286 = vmatmul.mubr.f32.gmra.mrb[0].mxu0 %v1209
    %v1287 = vpop.f32.mrb[0].mxu0
    %v1288 = vadd.f32 0.0, %v1287
    %v1289 = vpop.f32.mrb[0].mxu0
    %1290 = vmatprep.mubr.f32.mxu0 %v1206
    %1291 = vmatmul.mubr.f32.gmra.mrb[0].mxu0 %v1210
    %v1292 = vpop.f32.mrb[0].mxu0
    %v1293 = vadd.f32 0.0, %v1292
    %v1294 = vpop.f32.mrb[0].mxu0
    %1295 = vmatprep.mubr.f32.mxu0 %v1207
    %1296 = vmatmul.mubr.f32.gmra.mrb[0].mxu0 %v1211
    %v1297 = vpop.f32.mrb[0].mxu0
    %v1298 = vadd.f32 0.0, %v1297
    %v1299 = vpop.f32.mrb[0].mxu0
    %1300 = vdwg.mxu0
    %1301 = vmatprep.subr.mxu0 0.0
    %1302 = vmatpush1.msra.mxu0 %v105
    %1303 = vmatprep.subr.mxu0 0.0
    %1304 = vmatpush1.msra.mxu0 %v106
    %1305 = vmatprep.subr.mxu0 0.0
    %1306 = vmatpush1.msra.mxu0 %v107
    %1307 = vmatprep.subr.mxu0 0.0
    %1308 = vmatpush1.msra.mxu0 %v108
    %1309 = vmatprep.subr.mxu0 0.0
    %1310 = vmatpush1.msra.mxu0 %v109
    %1311 = vmatprep.subr.mxu0 0.0
    %1312 = vmatpush1.msra.mxu0 %v110
    %1313 = vmatprep.subr.mxu0 0.0
    %1314 = vmatpush1.msra.mxu0 %v111
    %1315 = vmatprep.subr.mxu0 0.0
    %1316 = vmatpush1.msra.mxu0 %v112
    %1317 = vmatprep.subr.mxu0 0.0
    %1318 = vmatpush1.msra.mxu0 %v113
    %1319 = vmatprep.subr.mxu0 0.0
    %1320 = vmatpush1.msra.mxu0 %v114
    %1321 = vmatprep.subr.mxu0 0.0
    %1322 = vmatpush1.msra.mxu0 %v115
    %1323 = vmatprep.subr.mxu0 0.0
    %1324 = vmatpush1.msra.mxu0 %v116
    %1325 = vmatprep.subr.mxu0 0.0
    %1326 = vmatpush1.msra.mxu0 %v117
    %1327 = vmatprep.subr.mxu0 0.0
    %1328 = vmatpush1.msra.mxu0 %v118
    %1329 = vmatprep.subr.mxu0 0.0
    %1330 = vmatpush1.msra.mxu0 %v119
    %1331 = vmatprep.subr.mxu0 0.0
    %1332 = vmatpush1.msra.mxu0 %v120
    %1333 = vmatprep.subr.mxu0 0.0
    %1334 = vmatpush1.msra.mxu0 %v121
    %1335 = vmatprep.subr.mxu0 0.0
    %1336 = vmatpush1.msra.mxu0 %v122
    %1337 = vmatprep.subr.mxu0 0.0
    %1338 = vmatpush1.msra.mxu0 %v123
    %1339 = vmatprep.subr.mxu0 0.0
    %1340 = vmatpush1.msra.mxu0 %v124
    %1341 = vmatprep.subr.mxu0 0.0
    %1342 = vmatpush1.msra.mxu0 %v125
    %1343 = vmatprep.subr.mxu0 0.0
    %1344 = vmatpush1.msra.mxu0 %v126
    %1345 = vmatprep.subr.mxu0 0.0
    %1346 = vmatpush1.msra.mxu0 %v127
    %1347 = vmatprep.subr.mxu0 0.0
    %1348 = vmatpush1.msra.mxu0 %v128
    %1349 = vmatprep.subr.mxu0 0.0
    %1350 = vmatpush1.msra.mxu0 %v129
    %1351 = vmatprep.subr.mxu0 0.0
    %1352 = vmatpush1.msra.mxu0 %v130
    %1353 = vmatprep.subr.mxu0 0.0
    %1354 = vmatpush1.msra.mxu0 %v131
    %1355 = vmatprep.subr.mxu0 0.0
    %1356 = vmatpush1.msra.mxu0 %v132
    %1357 = vmatprep.subr.mxu0 0.0
    %1358 = vmatpush1.msra.mxu0 %v133
    %1359 = vmatprep.subr.mxu0 0.0
    %1360 = vmatpush1.msra.mxu0 %v134
    %1361 = vmatprep.subr.mxu0 0.0
    %1362 = vmatpush1.msra.mxu0 %v135
    %1363 = vmatprep.subr.mxu0 0.0
    %1364 = vmatpush1.msra.mxu0 %v136
    %1365 = vmatprep.mubr.f32.mxu0 %v1212
    %1366 = vmatmul.mubr.f32.gmra.mrb[0].mxu0 %v1200
    %v1367 = vpop.f32.mrb[0].mxu0
    %v1368 = vadd.f32 %v1283, %v1367
    %v1369 = vpop.f32.mrb[0].mxu0
    %1370 = vmatprep.mubr.f32.mxu0 %v1213
    %1371 = vmatmul.mubr.f32.gmra.mrb[0].mxu0 %v1201
    %v1372 = vpop.f32.mrb[0].mxu0
    %v1373 = vadd.f32 %v1288, %v1372
    %v1374 = vpop.f32.mrb[0].mxu0
    %1375 = vmatprep.mubr.f32.mxu0 %v1214
    %1376 = vmatmul.mubr.f32.gmra.mrb[0].mxu0 %v1202
    %v1377 = vpop.f32.mrb[0].mxu0
    %v1378 = vadd.f32 %v1293, %v1377
    %v1379 = vpop.f32.mrb[0].mxu0
    %1380 = vmatprep.mubr.f32.mxu0 %v1215
    %1381 = vmatmul.mubr.f32.gmra.mrb[0].mxu0 %v1203
    %v1382 = vpop.f32.mrb[0].mxu0
    %v1383 = vadd.f32 %v1298, %v1382
    %v1384 = vpop.f32.mrb[0].mxu0
    %1385 = vdwg.mxu0
    %v1386 = vld [vmem:[%s2 + $0xc0] sm:$0xff]
    %v1387 = vld [vmem:[%s2 + $0xc8] sm:$0xff]
    %v1388 = vld [vmem:[%s2 + $0xd0] sm:$0xff]
    %v1389 = vld [vmem:[%s2 + $0xd8] sm:$0xff]
    %v1390 = vld [vmem:[%s2 + $0xe0] sm:$0xff]
    %v1391 = vld [vmem:[%s2 + $0xe8] sm:$0xff]
    %v1392 = vld [vmem:[%s2 + $0xf0] sm:$0xff]
    %v1393 = vld [vmem:[%s2 + $0xf8] sm:$0xff]
    %v1395 = vsel %vm544, %v1386, 0
    %v1398 = vsel %vm544, %v1387, 0
    %v1401 = vsel %vm544, %v1388, 0
    %v1404 = vsel %vm544, %v1389, 0
    %v1407 = vsel %vm544, %v1390, 0
    %v1410 = vsel %vm544, %v1391, 0
    %v1413 = vsel %vm544, %v1392, 0
    %v1416 = vsel %vm544, %v1393, 0
    %1418 = vmatprep.subr.mxu0 0.0
    %1419 = vmatpush1.msra.mxu0 %v1368
    %1420 = vmatprep.subr.mxu0 0.0
    %1421 = vmatpush1.msra.mxu0 %v1373
    %1422 = vmatprep.subr.mxu0 0.0
    %1423 = vmatpush1.msra.mxu0 %v1378
    %1424 = vmatprep.subr.mxu0 0.0
    %1425 = vmatpush1.msra.mxu0 %v1383
    %1426 = vmatprep.subr.mxu0 0.0
    %1427 = vmatpush1.msra.mxu0 0.0
    %1428 = vmatprep.subr.mxu0 0.0
    %1429 = vmatpush1.msra.mxu0 0.0
    %1430 = vmatprep.subr.mxu0 0.0
    %1431 = vmatpush1.msra.mxu0 0.0
    %1432 = vmatprep.subr.mxu0 0.0
    %1433 = vmatpush1.msra.mxu0 0.0
    %1434 = vmatprep.subr.mxu0 0.0
    %1435 = vmatpush1.msra.mxu0 0.0
    %1436 = vmatprep.subr.mxu0 0.0
    %1437 = vmatpush1.msra.mxu0 0.0
    %1438 = vmatprep.subr.mxu0 0.0
    %1439 = vmatpush1.msra.mxu0 0.0
    %1440 = vmatprep.subr.mxu0 0.0
    %1441 = vmatpush1.msra.mxu0 0.0
    %1442 = vmatprep.subr.mxu0 0.0
    %1443 = vmatpush1.msra.mxu0 0.0
    %1444 = vmatprep.subr.mxu0 0.0
    %1445 = vmatpush1.msra.mxu0 0.0
    %1446 = vmatprep.subr.mxu0 0.0
    %1447 = vmatpush1.msra.mxu0 0.0
    %1448 = vmatprep.subr.mxu0 0.0
    %1449 = vmatpush1.msra.mxu0 0.0
    %1450 = vmatprep.subr.mxu0 0.0
    %1451 = vmatpush1.msra.mxu0 0.0
    %1452 = vmatprep.subr.mxu0 0.0
    %1453 = vmatpush1.msra.mxu0 0.0
    %1454 = vmatprep.subr.mxu0 0.0
    %1455 = vmatpush1.msra.mxu0 0.0
    %1456 = vmatprep.subr.mxu0 0.0
    %1457 = vmatpush1.msra.mxu0 0.0
    %1458 = vmatprep.subr.mxu0 0.0
    %1459 = vmatpush1.msra.mxu0 0.0
    %1460 = vmatprep.subr.mxu0 0.0
    %1461 = vmatpush1.msra.mxu0 0.0
    %1462 = vmatprep.subr.mxu0 0.0
    %1463 = vmatpush1.msra.mxu0 0.0
    %1464 = vmatprep.subr.mxu0 0.0
    %1465 = vmatpush1.msra.mxu0 0.0
    %1466 = vmatprep.subr.mxu0 0.0
    %1467 = vmatpush1.msra.mxu0 0.0
    %1468 = vmatprep.subr.mxu0 0.0
    %1469 = vmatpush1.msra.mxu0 0.0
    %1470 = vmatprep.subr.mxu0 0.0
    %1471 = vmatpush1.msra.mxu0 0.0
    %1472 = vmatprep.subr.mxu0 0.0
    %1473 = vmatpush1.msra.mxu0 0.0
    %1474 = vmatprep.subr.mxu0 0.0
    %1475 = vmatpush1.msra.mxu0 0.0
    %1476 = vmatprep.subr.mxu0 0.0
    %1477 = vmatpush1.msra.mxu0 0.0
    %1478 = vmatprep.subr.mxu0 0.0
    %1479 = vmatpush1.msra.mxu0 0.0
    %1480 = vmatprep.subr.mxu0 0.0
    %1481 = vmatpush1.msra.mxu0 0.0
    %1482 = vmatprep.mubr.f32.mxu0 0.0
    %1483 = vmatmul.mubr.f32.gmra.mrb[0].mxu0 %v1395
    %v1484 = vpop.f32.mrb[0].mxu0
    %v1485 = vadd.f32 0.0, %v1484
    %v1486 = vpop.f32.mrb[0].mxu0
    %1487 = vmatprep.mubr.f32.mxu0 0.0
    %1488 = vmatmul.mubr.f32.gmra.mrb[0].mxu0 %v1398
    %v1489 = vpop.f32.mrb[0].mxu0
    %v1490 = vadd.f32 0.0, %v1489
    %v1491 = vpop.f32.mrb[0].mxu0
    %1492 = vmatprep.mubr.f32.mxu0 0.0
    %1493 = vmatmul.mubr.f32.gmra.mrb[0].mxu0 %v1401
    %v1494 = vpop.f32.mrb[0].mxu0
    %v1495 = vadd.f32 0.0, %v1494
    %v1496 = vpop.f32.mrb[0].mxu0
    %1497 = vmatprep.mubr.f32.mxu0 0.0
    %1498 = vmatmul.mubr.f32.gmra.mrb[0].mxu0 %v1404
    %v1499 = vpop.f32.mrb[0].mxu0
    %v1500 = vadd.f32 0.0, %v1499
    %v1501 = vpop.f32.mrb[0].mxu0
    %1502 = vmatprep.mubr.f32.mxu0 0.0
    %1503 = vmatmul.mubr.f32.gmra.mrb[0].mxu0 %v1407
    %v1504 = vpop.f32.mrb[0].mxu0
    %v1505 = vadd.f32 0.0, %v1504
    %v1506 = vpop.f32.mrb[0].mxu0
    %1507 = vmatprep.mubr.f32.mxu0 0.0
    %1508 = vmatmul.mubr.f32.gmra.mrb[0].mxu0 %v1410
    %v1509 = vpop.f32.mrb[0].mxu0
    %v1510 = vadd.f32 0.0, %v1509
    %v1511 = vpop.f32.mrb[0].mxu0
    %1512 = vmatprep.mubr.f32.mxu0 0.0
    %1513 = vmatmul.mubr.f32.gmra.mrb[0].mxu0 %v1413
    %v1514 = vpop.f32.mrb[0].mxu0
    %v1515 = vadd.f32 0.0, %v1514
    %v1516 = vpop.f32.mrb[0].mxu0
    %1517 = vmatprep.mubr.f32.mxu0 0.0
    %1518 = vmatmul.mubr.f32.gmra.mrb[0].mxu0 %v1416
    %v1519 = vpop.f32.mrb[0].mxu0
    %v1520 = vadd.f32 0.0, %v1519
    %v1521 = vpop.f32.mrb[0].mxu0
    %1522 = vdwg.mxu0
    %v1523 = vadd.f32 %v1159, %v1485
    %v1524 = vadd.f32 %v1160, %v1490
    %v1525 = vadd.f32 %v1161, %v1495
    %v1526 = vadd.f32 %v1162, %v1500
    %v1527 = vadd.f32 %v1163, %v1505
    %v1528 = vadd.f32 %v1164, %v1510
    %v1529 = vadd.f32 %v1165, %v1515
    %v1530 = vadd.f32 %v1166, %v1520
    %1531 = vrot.lane.b32.xlu0 %v57, 124
    %v1532 = vpop.permute.xlu0 %1531
    %1533 = vrot.lane.b32.xlu0 %v61, 124
    %v1534 = vpop.permute.xlu0 %1533
    %1535 = vrot.lane.b32.xlu0 %v65, 124
    %v1536 = vpop.permute.xlu0 %1535
    %1537 = vrot.lane.b32.xlu0 %v69, 124
    %v1538 = vpop.permute.xlu0 %1537
    %1539 = vrot.lane.b32.xlu0 %v58, 124
    %v1540 = vpop.permute.xlu0 %1539
    %1541 = vrot.lane.b32.xlu0 %v62, 124
    %v1542 = vpop.permute.xlu0 %1541
    %1543 = vrot.lane.b32.xlu0 %v66, 124
    %v1544 = vpop.permute.xlu0 %1543
    %1545 = vrot.lane.b32.xlu0 %v70, 124
    %v1546 = vpop.permute.xlu0 %1545
    %1547 = vrot.lane.b32.xlu0 %v59, 124
    %v1548 = vpop.permute.xlu0 %1547
    %1549 = vrot.lane.b32.xlu0 %v63, 124
    %v1550 = vpop.permute.xlu0 %1549
    %1551 = vrot.lane.b32.xlu0 %v67, 124
    %v1552 = vpop.permute.xlu0 %1551
    %1553 = vrot.lane.b32.xlu0 %v71, 124
    %v1554 = vpop.permute.xlu0 %1553
    %1555 = vrot.lane.b32.xlu0 %v60, 124
    %v1556 = vpop.permute.xlu0 %1555
    %1557 = vrot.lane.b32.xlu0 %v64, 124
    %v1558 = vpop.permute.xlu0 %1557
    %1559 = vrot.lane.b32.xlu0 %v68, 124
    %v1560 = vpop.permute.xlu0 %1559
    %1561 = vrot.lane.b32.xlu0 %v72, 124
    %v1562 = vpop.permute.xlu0 %1561
    %vm1563 = vcmp.lt.s32.totalorder %v348, 124
    %v1564 = vsel %vm1563, %v1548, %v1556
    %v1565 = vsel %vm1563, %v1550, %v1558
    %v1566 = vsel %vm1563, %v1552, %v1560
    %v1567 = vsel %vm1563, %v1554, %v1562
    %v1568 = vsel %vm1563, %v1540, %v1548
    %v1569 = vsel %vm1563, %v1542, %v1550
    %v1570 = vsel %vm1563, %v1544, %v1552
    %v1571 = vsel %vm1563, %v1546, %v1554
    %v1572 = vsel %vm1563, %v1532, %v1540
    %v1573 = vsel %vm1563, %v1534, %v1542
    %v1574 = vsel %vm1563, %v1536, %v1544
    %v1575 = vsel %vm1563, %v1538, %v1546
    %v1576 = vsel %vm1563, %v1556, %v1532
    %v1577 = vsel %vm1563, %v1558, %v1534
    %v1578 = vsel %vm1563, %v1560, %v1536
    %v1579 = vsel %vm1563, %v1562, %v1538
    %1580 = vmatprep.subr.mxu0 0.0
    %1581 = vmatpush1.msra.mxu0 %v73
    %1582 = vmatprep.subr.mxu0 0.0
    %1583 = vmatpush1.msra.mxu0 %v74
    %1584 = vmatprep.subr.mxu0 0.0
    %1585 = vmatpush1.msra.mxu0 %v75
    %1586 = vmatprep.subr.mxu0 0.0
    %1587 = vmatpush1.msra.mxu0 %v76
    %1588 = vmatprep.subr.mxu0 0.0
    %1589 = vmatpush1.msra.mxu0 %v77
    %1590 = vmatprep.subr.mxu0 0.0
    %1591 = vmatpush1.msra.mxu0 %v78
    %1592 = vmatprep.subr.mxu0 0.0
    %1593 = vmatpush1.msra.mxu0 %v79
    %1594 = vmatprep.subr.mxu0 0.0
    %1595 = vmatpush1.msra.mxu0 %v80
    %1596 = vmatprep.subr.mxu0 0.0
    %1597 = vmatpush1.msra.mxu0 %v81
    %1598 = vmatprep.subr.mxu0 0.0
    %1599 = vmatpush1.msra.mxu0 %v82
    %1600 = vmatprep.subr.mxu0 0.0
    %1601 = vmatpush1.msra.mxu0 %v83
    %1602 = vmatprep.subr.mxu0 0.0
    %1603 = vmatpush1.msra.mxu0 %v84
    %1604 = vmatprep.subr.mxu0 0.0
    %1605 = vmatpush1.msra.mxu0 %v85
    %1606 = vmatprep.subr.mxu0 0.0
    %1607 = vmatpush1.msra.mxu0 %v86
    %1608 = vmatprep.subr.mxu0 0.0
    %1609 = vmatpush1.msra.mxu0 %v87
    %1610 = vmatprep.subr.mxu0 0.0
    %1611 = vmatpush1.msra.mxu0 %v88
    %1612 = vmatprep.subr.mxu0 0.0
    %1613 = vmatpush1.msra.mxu0 %v89
    %1614 = vmatprep.subr.mxu0 0.0
    %1615 = vmatpush1.msra.mxu0 %v90
    %1616 = vmatprep.subr.mxu0 0.0
    %1617 = vmatpush1.msra.mxu0 %v91
    %1618 = vmatprep.subr.mxu0 0.0
    %1619 = vmatpush1.msra.mxu0 %v92
    %1620 = vmatprep.subr.mxu0 0.0
    %1621 = vmatpush1.msra.mxu0 %v93
    %1622 = vmatprep.subr.mxu0 0.0
    %1623 = vmatpush1.msra.mxu0 %v94
    %1624 = vmatprep.subr.mxu0 0.0
    %1625 = vmatpush1.msra.mxu0 %v95
    %1626 = vmatprep.subr.mxu0 0.0
    %1627 = vmatpush1.msra.mxu0 %v96
    %1628 = vmatprep.subr.mxu0 0.0
    %1629 = vmatpush1.msra.mxu0 %v97
    %1630 = vmatprep.subr.mxu0 0.0
    %1631 = vmatpush1.msra.mxu0 %v98
    %1632 = vmatprep.subr.mxu0 0.0
    %1633 = vmatpush1.msra.mxu0 %v99
    %1634 = vmatprep.subr.mxu0 0.0
    %1635 = vmatpush1.msra.mxu0 %v100
    %1636 = vmatprep.subr.mxu0 0.0
    %1637 = vmatpush1.msra.mxu0 %v101
    %1638 = vmatprep.subr.mxu0 0.0
    %1639 = vmatpush1.msra.mxu0 %v102
    %1640 = vmatprep.subr.mxu0 0.0
    %1641 = vmatpush1.msra.mxu0 %v103
    %1642 = vmatprep.subr.mxu0 0.0
    %1643 = vmatpush1.msra.mxu0 %v104
    %1644 = vmatprep.mubr.f32.mxu0 %v1568
    %1645 = vmatmul.mubr.f32.gmra.mrb[0].mxu0 %v1572
    %v1646 = vpop.f32.mrb[0].mxu0
    %v1647 = vadd.f32 0.0, %v1646
    %v1648 = vpop.f32.mrb[0].mxu0
    %1649 = vmatprep.mubr.f32.mxu0 %v1569
    %1650 = vmatmul.mubr.f32.gmra.mrb[0].mxu0 %v1573
    %v1651 = vpop.f32.mrb[0].mxu0
    %v1652 = vadd.f32 0.0, %v1651
    %v1653 = vpop.f32.mrb[0].mxu0
    %1654 = vmatprep.mubr.f32.mxu0 %v1570
    %1655 = vmatmul.mubr.f32.gmra.mrb[0].mxu0 %v1574
    %v1656 = vpop.f32.mrb[0].mxu0
    %v1657 = vadd.f32 0.0, %v1656
    %v1658 = vpop.f32.mrb[0].mxu0
    %1659 = vmatprep.mubr.f32.mxu0 %v1571
    %1660 = vmatmul.mubr.f32.gmra.mrb[0].mxu0 %v1575
    %v1661 = vpop.f32.mrb[0].mxu0
    %v1662 = vadd.f32 0.0, %v1661
    %v1663 = vpop.f32.mrb[0].mxu0
    %1664 = vdwg.mxu0
    %1665 = vmatprep.subr.mxu0 0.0
    %1666 = vmatpush1.msra.mxu0 %v105
    %1667 = vmatprep.subr.mxu0 0.0
    %1668 = vmatpush1.msra.mxu0 %v106
    %1669 = vmatprep.subr.mxu0 0.0
    %1670 = vmatpush1.msra.mxu0 %v107
    %1671 = vmatprep.subr.mxu0 0.0
    %1672 = vmatpush1.msra.mxu0 %v108
    %1673 = vmatprep.subr.mxu0 0.0
    %1674 = vmatpush1.msra.mxu0 %v109
    %1675 = vmatprep.subr.mxu0 0.0
    %1676 = vmatpush1.msra.mxu0 %v110
    %1677 = vmatprep.subr.mxu0 0.0
    %1678 = vmatpush1.msra.mxu0 %v111
    %1679 = vmatprep.subr.mxu0 0.0
    %1680 = vmatpush1.msra.mxu0 %v112
    %1681 = vmatprep.subr.mxu0 0.0
    %1682 = vmatpush1.msra.mxu0 %v113
    %1683 = vmatprep.subr.mxu0 0.0
    %1684 = vmatpush1.msra.mxu0 %v114
    %1685 = vmatprep.subr.mxu0 0.0
    %1686 = vmatpush1.msra.mxu0 %v115
    %1687 = vmatprep.subr.mxu0 0.0
    %1688 = vmatpush1.msra.mxu0 %v116
    %1689 = vmatprep.subr.mxu0 0.0
    %1690 = vmatpush1.msra.mxu0 %v117
    %1691 = vmatprep.subr.mxu0 0.0
    %1692 = vmatpush1.msra.mxu0 %v118
    %1693 = vmatprep.subr.mxu0 0.0
    %1694 = vmatpush1.msra.mxu0 %v119
    %1695 = vmatprep.subr.mxu0 0.0
    %1696 = vmatpush1.msra.mxu0 %v120
    %1697 = vmatprep.subr.mxu0 0.0
    %1698 = vmatpush1.msra.mxu0 %v121
    %1699 = vmatprep.subr.mxu0 0.0
    %1700 = vmatpush1.msra.mxu0 %v122
    %1701 = vmatprep.subr.mxu0 0.0
    %1702 = vmatpush1.msra.mxu0 %v123
    %1703 = vmatprep.subr.mxu0 0.0
    %1704 = vmatpush1.msra.mxu0 %v124
    %1705 = vmatprep.subr.mxu0 0.0
    %1706 = vmatpush1.msra.mxu0 %v125
    %1707 = vmatprep.subr.mxu0 0.0
    %1708 = vmatpush1.msra.mxu0 %v126
    %1709 = vmatprep.subr.mxu0 0.0
    %1710 = vmatpush1.msra.mxu0 %v127
    %1711 = vmatprep.subr.mxu0 0.0
    %1712 = vmatpush1.msra.mxu0 %v128
    %1713 = vmatprep.subr.mxu0 0.0
    %1714 = vmatpush1.msra.mxu0 %v129
    %1715 = vmatprep.subr.mxu0 0.0
    %1716 = vmatpush1.msra.mxu0 %v130
    %1717 = vmatprep.subr.mxu0 0.0
    %1718 = vmatpush1.msra.mxu0 %v131
    %1719 = vmatprep.subr.mxu0 0.0
    %1720 = vmatpush1.msra.mxu0 %v132
    %1721 = vmatprep.subr.mxu0 0.0
    %1722 = vmatpush1.msra.mxu0 %v133
    %1723 = vmatprep.subr.mxu0 0.0
    %1724 = vmatpush1.msra.mxu0 %v134
    %1725 = vmatprep.subr.mxu0 0.0
    %1726 = vmatpush1.msra.mxu0 %v135
    %1727 = vmatprep.subr.mxu0 0.0
    %1728 = vmatpush1.msra.mxu0 %v136
    %1729 = vmatprep.mubr.f32.mxu0 %v1576
    %1730 = vmatmul.mubr.f32.gmra.mrb[0].mxu0 %v1564
    %v1731 = vpop.f32.mrb[0].mxu0
    %v1732 = vadd.f32 %v1647, %v1731
    %v1733 = vpop.f32.mrb[0].mxu0
    %1734 = vmatprep.mubr.f32.mxu0 %v1577
    %1735 = vmatmul.mubr.f32.gmra.mrb[0].mxu0 %v1565
    %v1736 = vpop.f32.mrb[0].mxu0
    %v1737 = vadd.f32 %v1652, %v1736
    %v1738 = vpop.f32.mrb[0].mxu0
    %1739 = vmatprep.mubr.f32.mxu0 %v1578
    %1740 = vmatmul.mubr.f32.gmra.mrb[0].mxu0 %v1566
    %v1741 = vpop.f32.mrb[0].mxu0
    %v1742 = vadd.f32 %v1657, %v1741
    %v1743 = vpop.f32.mrb[0].mxu0
    %1744 = vmatprep.mubr.f32.mxu0 %v1579
    %1745 = vmatmul.mubr.f32.gmra.mrb[0].mxu0 %v1567
    %v1746 = vpop.f32.mrb[0].mxu0
    %v1747 = vadd.f32 %v1662, %v1746
    %v1748 = vpop.f32.mrb[0].mxu0
    %1749 = vdwg.mxu0
    %v1750 = vld [vmem:[%s2 + $0x100] sm:$0xff]
    %v1751 = vld [vmem:[%s2 + $0x108] sm:$0xff]
    %v1752 = vld [vmem:[%s2 + $0x110] sm:$0xff]
    %v1753 = vld [vmem:[%s2 + $0x118] sm:$0xff]
    %v1754 = vld [vmem:[%s2 + $0x120] sm:$0xff]
    %v1755 = vld [vmem:[%s2 + $0x128] sm:$0xff]
    %v1756 = vld [vmem:[%s2 + $0x130] sm:$0xff]
    %v1757 = vld [vmem:[%s2 + $0x138] sm:$0xff]
    %v1759 = vsel %vm544, %v1750, 0
    %v1762 = vsel %vm544, %v1751, 0
    %v1765 = vsel %vm544, %v1752, 0
    %v1768 = vsel %vm544, %v1753, 0
    %v1771 = vsel %vm544, %v1754, 0
    %v1774 = vsel %vm544, %v1755, 0
    %v1777 = vsel %vm544, %v1756, 0
    %v1780 = vsel %vm544, %v1757, 0
    %1782 = vmatprep.subr.mxu0 0.0
    %1783 = vmatpush1.msra.mxu0 %v1732
    %1784 = vmatprep.subr.mxu0 0.0
    %1785 = vmatpush1.msra.mxu0 %v1737
    %1786 = vmatprep.subr.mxu0 0.0
    %1787 = vmatpush1.msra.mxu0 %v1742
    %1788 = vmatprep.subr.mxu0 0.0
    %1789 = vmatpush1.msra.mxu0 %v1747
    %1790 = vmatprep.subr.mxu0 0.0
    %1791 = vmatpush1.msra.mxu0 0.0
    %1792 = vmatprep.subr.mxu0 0.0
    %1793 = vmatpush1.msra.mxu0 0.0
    %1794 = vmatprep.subr.mxu0 0.0
    %1795 = vmatpush1.msra.mxu0 0.0
    %1796 = vmatprep.subr.mxu0 0.0
    %1797 = vmatpush1.msra.mxu0 0.0
    %1798 = vmatprep.subr.mxu0 0.0
    %1799 = vmatpush1.msra.mxu0 0.0
    %1800 = vmatprep.subr.mxu0 0.0
    %1801 = vmatpush1.msra.mxu0 0.0
    %1802 = vmatprep.subr.mxu0 0.0
    %1803 = vmatpush1.msra.mxu0 0.0
    %1804 = vmatprep.subr.mxu0 0.0
    %1805 = vmatpush1.msra.mxu0 0.0
    %1806 = vmatprep.subr.mxu0 0.0
    %1807 = vmatpush1.msra.mxu0 0.0
    %1808 = vmatprep.subr.mxu0 0.0
    %1809 = vmatpush1.msra.mxu0 0.0
    %1810 = vmatprep.subr.mxu0 0.0
    %1811 = vmatpush1.msra.mxu0 0.0
    %1812 = vmatprep.subr.mxu0 0.0
    %1813 = vmatpush1.msra.mxu0 0.0
    %1814 = vmatprep.subr.mxu0 0.0
    %1815 = vmatpush1.msra.mxu0 0.0
    %1816 = vmatprep.subr.mxu0 0.0
    %1817 = vmatpush1.msra.mxu0 0.0
    %1818 = vmatprep.subr.mxu0 0.0
    %1819 = vmatpush1.msra.mxu0 0.0
    %1820 = vmatprep.subr.mxu0 0.0
    %1821 = vmatpush1.msra.mxu0 0.0
    %1822 = vmatprep.subr.mxu0 0.0
    %1823 = vmatpush1.msra.mxu0 0.0
    %1824 = vmatprep.subr.mxu0 0.0
    %1825 = vmatpush1.msra.mxu0 0.0
    %1826 = vmatprep.subr.mxu0 0.0
    %1827 = vmatpush1.msra.mxu0 0.0
    %1828 = vmatprep.subr.mxu0 0.0
    %1829 = vmatpush1.msra.mxu0 0.0
    %1830 = vmatprep.subr.mxu0 0.0
    %1831 = vmatpush1.msra.mxu0 0.0
    %1832 = vmatprep.subr.mxu0 0.0
    %1833 = vmatpush1.msra.mxu0 0.0
    %1834 = vmatprep.subr.mxu0 0.0
    %1835 = vmatpush1.msra.mxu0 0.0
    %1836 = vmatprep.subr.mxu0 0.0
    %1837 = vmatpush1.msra.mxu0 0.0
    %1838 = vmatprep.subr.mxu0 0.0
    %1839 = vmatpush1.msra.mxu0 0.0
    %1840 = vmatprep.subr.mxu0 0.0
    %1841 = vmatpush1.msra.mxu0 0.0
    %1842 = vmatprep.subr.mxu0 0.0
    %1843 = vmatpush1.msra.mxu0 0.0
    %1844 = vmatprep.subr.mxu0 0.0
    %1845 = vmatpush1.msra.mxu0 0.0
    %1846 = vmatprep.mubr.f32.mxu0 0.0
    %1847 = vmatmul.mubr.f32.gmra.mrb[0].mxu0 %v1759
    %v1848 = vpop.f32.mrb[0].mxu0
    %v1849 = vadd.f32 0.0, %v1848
    %v1850 = vpop.f32.mrb[0].mxu0
    %1851 = vmatprep.mubr.f32.mxu0 0.0
    %1852 = vmatmul.mubr.f32.gmra.mrb[0].mxu0 %v1762
    %v1853 = vpop.f32.mrb[0].mxu0
    %v1854 = vadd.f32 0.0, %v1853
    %v1855 = vpop.f32.mrb[0].mxu0
    %1856 = vmatprep.mubr.f32.mxu0 0.0
    %1857 = vmatmul.mubr.f32.gmra.mrb[0].mxu0 %v1765
    %v1858 = vpop.f32.mrb[0].mxu0
    %v1859 = vadd.f32 0.0, %v1858
    %v1860 = vpop.f32.mrb[0].mxu0
    %1861 = vmatprep.mubr.f32.mxu0 0.0
    %1862 = vmatmul.mubr.f32.gmra.mrb[0].mxu0 %v1768
    %v1863 = vpop.f32.mrb[0].mxu0
    %v1864 = vadd.f32 0.0, %v1863
    %v1865 = vpop.f32.mrb[0].mxu0
    %1866 = vmatprep.mubr.f32.mxu0 0.0
    %1867 = vmatmul.mubr.f32.gmra.mrb[0].mxu0 %v1771
    %v1868 = vpop.f32.mrb[0].mxu0
    %v1869 = vadd.f32 0.0, %v1868
    %v1870 = vpop.f32.mrb[0].mxu0
    %1871 = vmatprep.mubr.f32.mxu0 0.0
    %1872 = vmatmul.mubr.f32.gmra.mrb[0].mxu0 %v1774
    %v1873 = vpop.f32.mrb[0].mxu0
    %v1874 = vadd.f32 0.0, %v1873
    %v1875 = vpop.f32.mrb[0].mxu0
    %1876 = vmatprep.mubr.f32.mxu0 0.0
    %1877 = vmatmul.mubr.f32.gmra.mrb[0].mxu0 %v1777
    %v1878 = vpop.f32.mrb[0].mxu0
    %v1879 = vadd.f32 0.0, %v1878
    %v1880 = vpop.f32.mrb[0].mxu0
    %1881 = vmatprep.mubr.f32.mxu0 0.0
    %1882 = vmatmul.mubr.f32.gmra.mrb[0].mxu0 %v1780
    %v1883 = vpop.f32.mrb[0].mxu0
    %v1884 = vadd.f32 0.0, %v1883
    %v1885 = vpop.f32.mrb[0].mxu0
    %1886 = vdwg.mxu0
    %v1887 = vadd.f32 %v1523, %v1849
    %v1888 = vadd.f32 %v1524, %v1854
    %v1889 = vadd.f32 %v1525, %v1859
    %v1890 = vadd.f32 %v1526, %v1864
    %v1891 = vadd.f32 %v1527, %v1869
    %v1892 = vadd.f32 %v1528, %v1874
    %v1893 = vadd.f32 %v1529, %v1879
    %v1894 = vadd.f32 %v1530, %v1884
    %v1895 = vld [vmem:[%s3] sm:$0xff]
    %v1896 = vld [vmem:[%s3 + $0x8] sm:$0xff]
    %v1897 = vld [vmem:[%s3 + $0x10] sm:$0xff]
    %v1898 = vld [vmem:[%s3 + $0x18] sm:$0xff]
    %v1899 = vld [vmem:[%s3 + $0x20] sm:$0xff]
    %v1900 = vld [vmem:[%s3 + $0x28] sm:$0xff]
    %v1901 = vld [vmem:[%s3 + $0x30] sm:$0xff]
    %v1902 = vld [vmem:[%s3 + $0x38] sm:$0xff]
    %1904 = vset.pattern.permute.xlu0 0
    %1905 = vperm.xlu0 %1904, %v1895
    %v1906 = vpop.permute.xlu0 %1905
    %1909 = vset.pattern.permute.xlu0 0
    %1910 = vperm.xlu0 %1909, %v1896
    %v1911 = vpop.permute.xlu0 %1910
    %1914 = vset.pattern.permute.xlu0 0
    %1915 = vperm.xlu0 %1914, %v1897
    %v1916 = vpop.permute.xlu0 %1915
    %1919 = vset.pattern.permute.xlu0 0
    %1920 = vperm.xlu0 %1919, %v1898
    %v1921 = vpop.permute.xlu0 %1920
    %1924 = vset.pattern.permute.xlu0 0
    %1925 = vperm.xlu0 %1924, %v1899
    %v1926 = vpop.permute.xlu0 %1925
    %1929 = vset.pattern.permute.xlu0 0
    %1930 = vperm.xlu0 %1929, %v1900
    %v1931 = vpop.permute.xlu0 %1930
    %1934 = vset.pattern.permute.xlu0 0
    %1935 = vperm.xlu0 %1934, %v1901
    %v1936 = vpop.permute.xlu0 %1935
    %1939 = vset.pattern.permute.xlu0 0
    %1940 = vperm.xlu0 %1939, %v1902
    %v1941 = vpop.permute.xlu0 %1940
    %v1943 = vadd.f32 %v1887, %v1906
    %v1944 = vadd.f32 %v1888, %v1911
    %v1945 = vadd.f32 %v1889, %v1916
    %v1946 = vadd.f32 %v1890, %v1921
    %v1947 = vadd.f32 %v1891, %v1926
    %v1948 = vadd.f32 %v1892, %v1931
    %v1949 = vadd.f32 %v1893, %v1936
    %v1950 = vadd.f32 %v1894, %v1941
    %v1951 = vmax.f32 %v1943, 0.0
    %v1952 = vmax.f32 %v1944, 0.0
    %v1953 = vmax.f32 %v1945, 0.0
    %v1954 = vmax.f32 %v1946, 0.0
    %v1955 = vmax.f32 %v1947, 0.0
    %v1956 = vmax.f32 %v1948, 0.0
    %v1957 = vmax.f32 %v1949, 0.0
    %v1958 = vmax.f32 %v1950, 0.0
    %vm1959 = vcmp.ne.s32.totalorder %v348, 0
    %v1960 = vsel %vm1959, 1, 0
    %v1961 = vcvt.s32.f32 %v1960
    %vm1962 = vcmp.ne.s32.totalorder %v348, 127
    %v1963 = vsel %vm1962, 1, 0
    %v1964 = vcvt.s32.f32 %v1963
    %1965 = vrot.lane.b32.xlu0 %v1951, 1
    %v1966 = vpop.permute.xlu0 %1965
    %1967 = vrot.lane.b32.xlu0 %v1952, 1
    %v1968 = vpop.permute.xlu0 %1967
    %1969 = vrot.lane.b32.xlu0 %v1953, 1
    %v1970 = vpop.permute.xlu0 %1969
    %1971 = vrot.lane.b32.xlu0 %v1954, 1
    %v1972 = vpop.permute.xlu0 %1971
    %1973 = vrot.lane.b32.xlu0 %v1955, 1
    %v1974 = vpop.permute.xlu0 %1973
    %1975 = vrot.lane.b32.xlu0 %v1956, 1
    %v1976 = vpop.permute.xlu0 %1975
    %1977 = vrot.lane.b32.xlu0 %v1957, 1
    %v1978 = vpop.permute.xlu0 %1977
    %1979 = vrot.lane.b32.xlu0 %v1958, 1
    %v1980 = vpop.permute.xlu0 %1979
    %1981 = vrot.lane.b32.xlu0 %v1951, 127
    %v1982 = vpop.permute.xlu0 %1981
    %1983 = vrot.lane.b32.xlu0 %v1952, 127
    %v1984 = vpop.permute.xlu0 %1983
    %1985 = vrot.lane.b32.xlu0 %v1953, 127
    %v1986 = vpop.permute.xlu0 %1985
    %1987 = vrot.lane.b32.xlu0 %v1954, 127
    %v1988 = vpop.permute.xlu0 %1987
    %1989 = vrot.lane.b32.xlu0 %v1955, 127
    %v1990 = vpop.permute.xlu0 %1989
    %1991 = vrot.lane.b32.xlu0 %v1956, 127
    %v1992 = vpop.permute.xlu0 %1991
    %1993 = vrot.lane.b32.xlu0 %v1957, 127
    %v1994 = vpop.permute.xlu0 %1993
    %1995 = vrot.lane.b32.xlu0 %v1958, 127
    %v1996 = vpop.permute.xlu0 %1995
    %v1997 = vld [vmem:[%s4] sm:$0xff]
    %v1998 = vld [vmem:[%s4 + $0x8] sm:$0xff]
    %v1999 = vld [vmem:[%s4 + $0x10] sm:$0xff]
    %v2000 = vld [vmem:[%s4 + $0x18] sm:$0xff]
    %v2001 = vld [vmem:[%s4 + $0x20] sm:$0xff]
    %v2002 = vld [vmem:[%s4 + $0x28] sm:$0xff]
    %v2003 = vld [vmem:[%s4 + $0x30] sm:$0xff]
    %v2004 = vld [vmem:[%s4 + $0x38] sm:$0xff]
    %vm2005 = vcmask 523264
    %v2007 = vsel %vm2005, %v1997, 0
    %v2010 = vsel %vm2005, %v1998, 0
    %v2013 = vsel %vm2005, %v1999, 0
    %v2016 = vsel %vm2005, %v2000, 0
    %v2019 = vsel %vm2005, %v2001, 0
    %v2022 = vsel %vm2005, %v2002, 0
    %v2025 = vsel %vm2005, %v2003, 0
    %v2028 = vsel %vm2005, %v2004, 0
    %2030 = vmatprep.subr.mxu0 0.0
    %2031 = vmatpush1.msra.mxu0 %v1966
    %2032 = vmatprep.subr.mxu0 0.0
    %2033 = vmatpush1.msra.mxu0 %v1968
    %2034 = vmatprep.subr.mxu0 0.0
    %2035 = vmatpush1.msra.mxu0 %v1970
    %2036 = vmatprep.subr.mxu0 0.0
    %2037 = vmatpush1.msra.mxu0 %v1972
    %2038 = vmatprep.subr.mxu0 0.0
    %2039 = vmatpush1.msra.mxu0 %v1974
    %2040 = vmatprep.subr.mxu0 0.0
    %2041 = vmatpush1.msra.mxu0 %v1976
    %2042 = vmatprep.subr.mxu0 0.0
    %2043 = vmatpush1.msra.mxu0 %v1978
    %2044 = vmatprep.subr.mxu0 0.0
    %2045 = vmatpush1.msra.mxu0 %v1980
    %2046 = vmatprep.subr.mxu0 0.0
    %2047 = vmatpush1.msra.mxu0 0.0
    %2048 = vmatprep.subr.mxu0 0.0
    %2049 = vmatpush1.msra.mxu0 0.0
    %2050 = vmatprep.subr.mxu0 0.0
    %2051 = vmatpush1.msra.mxu0 0.0
    %2052 = vmatprep.subr.mxu0 0.0
    %2053 = vmatpush1.msra.mxu0 0.0
    %2054 = vmatprep.subr.mxu0 0.0
    %2055 = vmatpush1.msra.mxu0 0.0
    %2056 = vmatprep.subr.mxu0 0.0
    %2057 = vmatpush1.msra.mxu0 0.0
    %2058 = vmatprep.subr.mxu0 0.0
    %2059 = vmatpush1.msra.mxu0 0.0
    %2060 = vmatprep.subr.mxu0 0.0
    %2061 = vmatpush1.msra.mxu0 0.0
    %2062 = vmatprep.subr.mxu0 0.0
    %2063 = vmatpush1.msra.mxu0 0.0
    %2064 = vmatprep.subr.mxu0 0.0
    %2065 = vmatpush1.msra.mxu0 0.0
    %2066 = vmatprep.subr.mxu0 0.0
    %2067 = vmatpush1.msra.mxu0 0.0
    %2068 = vmatprep.subr.mxu0 0.0
    %2069 = vmatpush1.msra.mxu0 0.0
    %2070 = vmatprep.subr.mxu0 0.0
    %2071 = vmatpush1.msra.mxu0 0.0
    %2072 = vmatprep.subr.mxu0 0.0
    %2073 = vmatpush1.msra.mxu0 0.0
    %2074 = vmatprep.subr.mxu0 0.0
    %2075 = vmatpush1.msra.mxu0 0.0
    %2076 = vmatprep.subr.mxu0 0.0
    %2077 = vmatpush1.msra.mxu0 0.0
    %2078 = vmatprep.subr.mxu0 0.0
    %2079 = vmatpush1.msra.mxu0 0.0
    %2080 = vmatprep.subr.mxu0 0.0
    %2081 = vmatpush1.msra.mxu0 0.0
    %2082 = vmatprep.subr.mxu0 0.0
    %2083 = vmatpush1.msra.mxu0 0.0
    %2084 = vmatprep.subr.mxu0 0.0
    %2085 = vmatpush1.msra.mxu0 0.0
    %2086 = vmatprep.subr.mxu0 0.0
    %2087 = vmatpush1.msra.mxu0 0.0
    %2088 = vmatprep.subr.mxu0 0.0
    %2089 = vmatpush1.msra.mxu0 0.0
    %2090 = vmatprep.subr.mxu0 0.0
    %2091 = vmatpush1.msra.mxu0 0.0
    %2092 = vmatprep.subr.mxu0 0.0
    %2093 = vmatpush1.msra.mxu0 0.0
    %2094 = vmatprep.mubr.f32.mxu0 0.0
    %2095 = vmatmul.mubr.f32.gmra.mrb[0].mxu0 %v2007
    %v2096 = vpop.f32.mrb[0].mxu0
    %v2097 = vadd.f32 0.0, %v2096
    %v2098 = vpop.f32.mrb[0].mxu0
    %2099 = vmatprep.mubr.f32.mxu0 0.0
    %2100 = vmatmul.mubr.f32.gmra.mrb[0].mxu0 %v2010
    %v2101 = vpop.f32.mrb[0].mxu0
    %v2102 = vadd.f32 0.0, %v2101
    %v2103 = vpop.f32.mrb[0].mxu0
    %2104 = vmatprep.mubr.f32.mxu0 0.0
    %2105 = vmatmul.mubr.f32.gmra.mrb[0].mxu0 %v2013
    %v2106 = vpop.f32.mrb[0].mxu0
    %v2107 = vadd.f32 0.0, %v2106
    %v2108 = vpop.f32.mrb[0].mxu0
    %2109 = vmatprep.mubr.f32.mxu0 0.0
    %2110 = vmatmul.mubr.f32.gmra.mrb[0].mxu0 %v2016
    %v2111 = vpop.f32.mrb[0].mxu0
    %v2112 = vadd.f32 0.0, %v2111
    %v2113 = vpop.f32.mrb[0].mxu0
    %2114 = vmatprep.mubr.f32.mxu0 0.0
    %2115 = vmatmul.mubr.f32.gmra.mrb[0].mxu0 %v2019
    %v2116 = vpop.f32.mrb[0].mxu0
    %v2117 = vadd.f32 0.0, %v2116
    %v2118 = vpop.f32.mrb[0].mxu0
    %2119 = vmatprep.mubr.f32.mxu0 0.0
    %2120 = vmatmul.mubr.f32.gmra.mrb[0].mxu0 %v2022
    %v2121 = vpop.f32.mrb[0].mxu0
    %v2122 = vadd.f32 0.0, %v2121
    %v2123 = vpop.f32.mrb[0].mxu0
    %2124 = vmatprep.mubr.f32.mxu0 0.0
    %2125 = vmatmul.mubr.f32.gmra.mrb[0].mxu0 %v2025
    %v2126 = vpop.f32.mrb[0].mxu0
    %v2127 = vadd.f32 0.0, %v2126
    %v2128 = vpop.f32.mrb[0].mxu0
    %2129 = vmatprep.mubr.f32.mxu0 0.0
    %2130 = vmatmul.mubr.f32.gmra.mrb[0].mxu0 %v2028
    %v2131 = vpop.f32.mrb[0].mxu0
    %v2132 = vadd.f32 0.0, %v2131
    %v2133 = vpop.f32.mrb[0].mxu0
    %2134 = vdwg.mxu0
    %v2135 = vmul.f32 %v2097, %v1961
    %v2136 = vmul.f32 %v2102, %v1961
    %v2137 = vmul.f32 %v2107, %v1961
    %v2138 = vmul.f32 %v2112, %v1961
    %v2139 = vmul.f32 %v2117, %v1961
    %v2140 = vmul.f32 %v2122, %v1961
    %v2141 = vmul.f32 %v2127, %v1961
    %v2142 = vmul.f32 %v2132, %v1961
    %v2143 = vld [vmem:[%s5] sm:$0xff]
    %v2144 = vld [vmem:[%s5 + $0x8] sm:$0xff]
    %v2145 = vld [vmem:[%s5 + $0x10] sm:$0xff]
    %v2146 = vld [vmem:[%s5 + $0x18] sm:$0xff]
    %v2147 = vld [vmem:[%s5 + $0x20] sm:$0xff]
    %v2148 = vld [vmem:[%s5 + $0x28] sm:$0xff]
    %v2149 = vld [vmem:[%s5 + $0x30] sm:$0xff]
    %v2150 = vld [vmem:[%s5 + $0x38] sm:$0xff]
    %v2152 = vsel %vm2005, %v2143, 0
    %v2155 = vsel %vm2005, %v2144, 0
    %v2158 = vsel %vm2005, %v2145, 0
    %v2161 = vsel %vm2005, %v2146, 0
    %v2164 = vsel %vm2005, %v2147, 0
    %v2167 = vsel %vm2005, %v2148, 0
    %v2170 = vsel %vm2005, %v2149, 0
    %v2173 = vsel %vm2005, %v2150, 0
    %2175 = vmatprep.subr.mxu0 0.0
    %2176 = vmatpush1.msra.mxu0 %v1951
    %2177 = vmatprep.subr.mxu0 0.0
    %2178 = vmatpush1.msra.mxu0 %v1952
    %2179 = vmatprep.subr.mxu0 0.0
    %2180 = vmatpush1.msra.mxu0 %v1953
    %2181 = vmatprep.subr.mxu0 0.0
    %2182 = vmatpush1.msra.mxu0 %v1954
    %2183 = vmatprep.subr.mxu0 0.0
    %2184 = vmatpush1.msra.mxu0 %v1955
    %2185 = vmatprep.subr.mxu0 0.0
    %2186 = vmatpush1.msra.mxu0 %v1956
    %2187 = vmatprep.subr.mxu0 0.0
    %2188 = vmatpush1.msra.mxu0 %v1957
    %2189 = vmatprep.subr.mxu0 0.0
    %2190 = vmatpush1.msra.mxu0 %v1958
    %2191 = vmatprep.subr.mxu0 0.0
    %2192 = vmatpush1.msra.mxu0 0.0
    %2193 = vmatprep.subr.mxu0 0.0
    %2194 = vmatpush1.msra.mxu0 0.0
    %2195 = vmatprep.subr.mxu0 0.0
    %2196 = vmatpush1.msra.mxu0 0.0
    %2197 = vmatprep.subr.mxu0 0.0
    %2198 = vmatpush1.msra.mxu0 0.0
    %2199 = vmatprep.subr.mxu0 0.0
    %2200 = vmatpush1.msra.mxu0 0.0
    %2201 = vmatprep.subr.mxu0 0.0
    %2202 = vmatpush1.msra.mxu0 0.0
    %2203 = vmatprep.subr.mxu0 0.0
    %2204 = vmatpush1.msra.mxu0 0.0
    %2205 = vmatprep.subr.mxu0 0.0
    %2206 = vmatpush1.msra.mxu0 0.0
    %2207 = vmatprep.subr.mxu0 0.0
    %2208 = vmatpush1.msra.mxu0 0.0
    %2209 = vmatprep.subr.mxu0 0.0
    %2210 = vmatpush1.msra.mxu0 0.0
    %2211 = vmatprep.subr.mxu0 0.0
    %2212 = vmatpush1.msra.mxu0 0.0
    %2213 = vmatprep.subr.mxu0 0.0
    %2214 = vmatpush1.msra.mxu0 0.0
    %2215 = vmatprep.subr.mxu0 0.0
    %2216 = vmatpush1.msra.mxu0 0.0
    %2217 = vmatprep.subr.mxu0 0.0
    %2218 = vmatpush1.msra.mxu0 0.0
    %2219 = vmatprep.subr.mxu0 0.0
    %2220 = vmatpush1.msra.mxu0 0.0
    %2221 = vmatprep.subr.mxu0 0.0
    %2222 = vmatpush1.msra.mxu0 0.0
    %2223 = vmatprep.subr.mxu0 0.0
    %2224 = vmatpush1.msra.mxu0 0.0
    %2225 = vmatprep.subr.mxu0 0.0
    %2226 = vmatpush1.msra.mxu0 0.0
    %2227 = vmatprep.subr.mxu0 0.0
    %2228 = vmatpush1.msra.mxu0 0.0
    %2229 = vmatprep.subr.mxu0 0.0
    %2230 = vmatpush1.msra.mxu0 0.0
    %2231 = vmatprep.subr.mxu0 0.0
    %2232 = vmatpush1.msra.mxu0 0.0
    %2233 = vmatprep.subr.mxu0 0.0
    %2234 = vmatpush1.msra.mxu0 0.0
    %2235 = vmatprep.subr.mxu0 0.0
    %2236 = vmatpush1.msra.mxu0 0.0
    %2237 = vmatprep.subr.mxu0 0.0
    %2238 = vmatpush1.msra.mxu0 0.0
    %2239 = vmatprep.mubr.f32.mxu0 0.0
    %2240 = vmatmul.mubr.f32.gmra.mrb[0].mxu0 %v2152
    %v2241 = vpop.f32.mrb[0].mxu0
    %v2242 = vadd.f32 0.0, %v2241
    %v2243 = vpop.f32.mrb[0].mxu0
    %2244 = vmatprep.mubr.f32.mxu0 0.0
    %2245 = vmatmul.mubr.f32.gmra.mrb[0].mxu0 %v2155
    %v2246 = vpop.f32.mrb[0].mxu0
    %v2247 = vadd.f32 0.0, %v2246
    %v2248 = vpop.f32.mrb[0].mxu0
    %2249 = vmatprep.mubr.f32.mxu0 0.0
    %2250 = vmatmul.mubr.f32.gmra.mrb[0].mxu0 %v2158
    %v2251 = vpop.f32.mrb[0].mxu0
    %v2252 = vadd.f32 0.0, %v2251
    %v2253 = vpop.f32.mrb[0].mxu0
    %2254 = vmatprep.mubr.f32.mxu0 0.0
    %2255 = vmatmul.mubr.f32.gmra.mrb[0].mxu0 %v2161
    %v2256 = vpop.f32.mrb[0].mxu0
    %v2257 = vadd.f32 0.0, %v2256
    %v2258 = vpop.f32.mrb[0].mxu0
    %2259 = vmatprep.mubr.f32.mxu0 0.0
    %2260 = vmatmul.mubr.f32.gmra.mrb[0].mxu0 %v2164
    %v2261 = vpop.f32.mrb[0].mxu0
    %v2262 = vadd.f32 0.0, %v2261
    %v2263 = vpop.f32.mrb[0].mxu0
    %2264 = vmatprep.mubr.f32.mxu0 0.0
    %2265 = vmatmul.mubr.f32.gmra.mrb[0].mxu0 %v2167
    %v2266 = vpop.f32.mrb[0].mxu0
    %v2267 = vadd.f32 0.0, %v2266
    %v2268 = vpop.f32.mrb[0].mxu0
    %2269 = vmatprep.mubr.f32.mxu0 0.0
    %2270 = vmatmul.mubr.f32.gmra.mrb[0].mxu0 %v2170
    %v2271 = vpop.f32.mrb[0].mxu0
    %v2272 = vadd.f32 0.0, %v2271
    %v2273 = vpop.f32.mrb[0].mxu0
    %2274 = vmatprep.mubr.f32.mxu0 0.0
    %2275 = vmatmul.mubr.f32.gmra.mrb[0].mxu0 %v2173
    %v2276 = vpop.f32.mrb[0].mxu0
    %v2277 = vadd.f32 0.0, %v2276
    %v2278 = vpop.f32.mrb[0].mxu0
    %2279 = vdwg.mxu0
    %v2280 = vadd.f32 %v2135, %v2242
    %v2281 = vadd.f32 %v2136, %v2247
    %v2282 = vadd.f32 %v2137, %v2252
    %v2283 = vadd.f32 %v2138, %v2257
    %v2284 = vadd.f32 %v2139, %v2262
    %v2285 = vadd.f32 %v2140, %v2267
    %v2286 = vadd.f32 %v2141, %v2272
    %v2287 = vadd.f32 %v2142, %v2277
    %v2288 = vld [vmem:[%s6] sm:$0xff]
    %v2289 = vld [vmem:[%s6 + $0x8] sm:$0xff]
    %v2290 = vld [vmem:[%s6 + $0x10] sm:$0xff]
    %v2291 = vld [vmem:[%s6 + $0x18] sm:$0xff]
    %v2292 = vld [vmem:[%s6 + $0x20] sm:$0xff]
    %v2293 = vld [vmem:[%s6 + $0x28] sm:$0xff]
    %v2294 = vld [vmem:[%s6 + $0x30] sm:$0xff]
    %v2295 = vld [vmem:[%s6 + $0x38] sm:$0xff]
    %v2297 = vsel %vm2005, %v2288, 0
    %v2300 = vsel %vm2005, %v2289, 0
    %v2303 = vsel %vm2005, %v2290, 0
    %v2306 = vsel %vm2005, %v2291, 0
    %v2309 = vsel %vm2005, %v2292, 0
    %v2312 = vsel %vm2005, %v2293, 0
    %v2315 = vsel %vm2005, %v2294, 0
    %v2318 = vsel %vm2005, %v2295, 0
    %2320 = vmatprep.subr.mxu0 0.0
    %2321 = vmatpush1.msra.mxu0 %v1982
    %2322 = vmatprep.subr.mxu0 0.0
    %2323 = vmatpush1.msra.mxu0 %v1984
    %2324 = vmatprep.subr.mxu0 0.0
    %2325 = vmatpush1.msra.mxu0 %v1986
    %2326 = vmatprep.subr.mxu0 0.0
    %2327 = vmatpush1.msra.mxu0 %v1988
    %2328 = vmatprep.subr.mxu0 0.0
    %2329 = vmatpush1.msra.mxu0 %v1990
    %2330 = vmatprep.subr.mxu0 0.0
    %2331 = vmatpush1.msra.mxu0 %v1992
    %2332 = vmatprep.subr.mxu0 0.0
    %2333 = vmatpush1.msra.mxu0 %v1994
    %2334 = vmatprep.subr.mxu0 0.0
    %2335 = vmatpush1.msra.mxu0 %v1996
    %2336 = vmatprep.subr.mxu0 0.0
    %2337 = vmatpush1.msra.mxu0 0.0
    %2338 = vmatprep.subr.mxu0 0.0
    %2339 = vmatpush1.msra.mxu0 0.0
    %2340 = vmatprep.subr.mxu0 0.0
    %2341 = vmatpush1.msra.mxu0 0.0
    %2342 = vmatprep.subr.mxu0 0.0
    %2343 = vmatpush1.msra.mxu0 0.0
    %2344 = vmatprep.subr.mxu0 0.0
    %2345 = vmatpush1.msra.mxu0 0.0
    %2346 = vmatprep.subr.mxu0 0.0
    %2347 = vmatpush1.msra.mxu0 0.0
    %2348 = vmatprep.subr.mxu0 0.0
    %2349 = vmatpush1.msra.mxu0 0.0
    %2350 = vmatprep.subr.mxu0 0.0
    %2351 = vmatpush1.msra.mxu0 0.0
    %2352 = vmatprep.subr.mxu0 0.0
    %2353 = vmatpush1.msra.mxu0 0.0
    %2354 = vmatprep.subr.mxu0 0.0
    %2355 = vmatpush1.msra.mxu0 0.0
    %2356 = vmatprep.subr.mxu0 0.0
    %2357 = vmatpush1.msra.mxu0 0.0
    %2358 = vmatprep.subr.mxu0 0.0
    %2359 = vmatpush1.msra.mxu0 0.0
    %2360 = vmatprep.subr.mxu0 0.0
    %2361 = vmatpush1.msra.mxu0 0.0
    %2362 = vmatprep.subr.mxu0 0.0
    %2363 = vmatpush1.msra.mxu0 0.0
    %2364 = vmatprep.subr.mxu0 0.0
    %2365 = vmatpush1.msra.mxu0 0.0
    %2366 = vmatprep.subr.mxu0 0.0
    %2367 = vmatpush1.msra.mxu0 0.0
    %2368 = vmatprep.subr.mxu0 0.0
    %2369 = vmatpush1.msra.mxu0 0.0
    %2370 = vmatprep.subr.mxu0 0.0
    %2371 = vmatpush1.msra.mxu0 0.0
    %2372 = vmatprep.subr.mxu0 0.0
    %2373 = vmatpush1.msra.mxu0 0.0
    %2374 = vmatprep.subr.mxu0 0.0
    %2375 = vmatpush1.msra.mxu0 0.0
    %2376 = vmatprep.subr.mxu0 0.0
    %2377 = vmatpush1.msra.mxu0 0.0
    %2378 = vmatprep.subr.mxu0 0.0
    %2379 = vmatpush1.msra.mxu0 0.0
    %2380 = vmatprep.subr.mxu0 0.0
    %2381 = vmatpush1.msra.mxu0 0.0
    %2382 = vmatprep.subr.mxu0 0.0
    %2383 = vmatpush1.msra.mxu0 0.0
    %2384 = vmatprep.mubr.f32.mxu0 0.0
    %2385 = vmatmul.mubr.f32.gmra.mrb[0].mxu0 %v2297
    %v2386 = vpop.f32.mrb[0].mxu0
    %v2387 = vadd.f32 0.0, %v2386
    %v2388 = vpop.f32.mrb[0].mxu0
    %2389 = vmatprep.mubr.f32.mxu0 0.0
    %2390 = vmatmul.mubr.f32.gmra.mrb[0].mxu0 %v2300
    %v2391 = vpop.f32.mrb[0].mxu0
    %v2392 = vadd.f32 0.0, %v2391
    %v2393 = vpop.f32.mrb[0].mxu0
    %2394 = vmatprep.mubr.f32.mxu0 0.0
    %2395 = vmatmul.mubr.f32.gmra.mrb[0].mxu0 %v2303
    %v2396 = vpop.f32.mrb[0].mxu0
    %v2397 = vadd.f32 0.0, %v2396
    %v2398 = vpop.f32.mrb[0].mxu0
    %2399 = vmatprep.mubr.f32.mxu0 0.0
    %2400 = vmatmul.mubr.f32.gmra.mrb[0].mxu0 %v2306
    %v2401 = vpop.f32.mrb[0].mxu0
    %v2402 = vadd.f32 0.0, %v2401
    %v2403 = vpop.f32.mrb[0].mxu0
    %2404 = vmatprep.mubr.f32.mxu0 0.0
    %2405 = vmatmul.mubr.f32.gmra.mrb[0].mxu0 %v2309
    %v2406 = vpop.f32.mrb[0].mxu0
    %v2407 = vadd.f32 0.0, %v2406
    %v2408 = vpop.f32.mrb[0].mxu0
    %2409 = vmatprep.mubr.f32.mxu0 0.0
    %2410 = vmatmul.mubr.f32.gmra.mrb[0].mxu0 %v2312
    %v2411 = vpop.f32.mrb[0].mxu0
    %v2412 = vadd.f32 0.0, %v2411
    %v2413 = vpop.f32.mrb[0].mxu0
    %2414 = vmatprep.mubr.f32.mxu0 0.0
    %2415 = vmatmul.mubr.f32.gmra.mrb[0].mxu0 %v2315
    %v2416 = vpop.f32.mrb[0].mxu0
    %v2417 = vadd.f32 0.0, %v2416
    %v2418 = vpop.f32.mrb[0].mxu0
    %2419 = vmatprep.mubr.f32.mxu0 0.0
    %2420 = vmatmul.mubr.f32.gmra.mrb[0].mxu0 %v2318
    %v2421 = vpop.f32.mrb[0].mxu0
    %v2422 = vadd.f32 0.0, %v2421
    %v2423 = vpop.f32.mrb[0].mxu0
    %2424 = vdwg.mxu0
    %v2425 = vmul.f32 %v2387, %v1964
    %v2426 = vmul.f32 %v2392, %v1964
    %v2427 = vmul.f32 %v2397, %v1964
    %v2428 = vmul.f32 %v2402, %v1964
    %v2429 = vmul.f32 %v2407, %v1964
    %v2430 = vmul.f32 %v2412, %v1964
    %v2431 = vmul.f32 %v2417, %v1964
    %v2432 = vmul.f32 %v2422, %v1964
    %v2433 = vadd.f32 %v2280, %v2425
    %v2434 = vadd.f32 %v2281, %v2426
    %v2435 = vadd.f32 %v2282, %v2427
    %v2436 = vadd.f32 %v2283, %v2428
    %v2437 = vadd.f32 %v2284, %v2429
    %v2438 = vadd.f32 %v2285, %v2430
    %v2439 = vadd.f32 %v2286, %v2431
    %v2440 = vadd.f32 %v2287, %v2432
    %v2441 = vld [vmem:[%s7] sm:$0xff]
    %v2442 = vld [vmem:[%s7 + $0x8] sm:$0xff]
    %v2443 = vld [vmem:[%s7 + $0x10] sm:$0xff]
    %v2444 = vld [vmem:[%s7 + $0x18] sm:$0xff]
    %v2445 = vld [vmem:[%s7 + $0x20] sm:$0xff]
    %v2446 = vld [vmem:[%s7 + $0x28] sm:$0xff]
    %v2447 = vld [vmem:[%s7 + $0x30] sm:$0xff]
    %v2448 = vld [vmem:[%s7 + $0x38] sm:$0xff]
    %2450 = vset.pattern.permute.xlu0 0
    %2451 = vperm.xlu0 %2450, %v2441
    %v2452 = vpop.permute.xlu0 %2451
    %2455 = vset.pattern.permute.xlu0 0
    %2456 = vperm.xlu0 %2455, %v2442
    %v2457 = vpop.permute.xlu0 %2456
    %2460 = vset.pattern.permute.xlu0 0
    %2461 = vperm.xlu0 %2460, %v2443
    %v2462 = vpop.permute.xlu0 %2461
    %2465 = vset.pattern.permute.xlu0 0
    %2466 = vperm.xlu0 %2465, %v2444
    %v2467 = vpop.permute.xlu0 %2466
    %2470 = vset.pattern.permute.xlu0 0
    %2471 = vperm.xlu0 %2470, %v2445
    %v2472 = vpop.permute.xlu0 %2471
    %2475 = vset.pattern.permute.xlu0 0
    %2476 = vperm.xlu0 %2475, %v2446
    %v2477 = vpop.permute.xlu0 %2476
    %2480 = vset.pattern.permute.xlu0 0
    %2481 = vperm.xlu0 %2480, %v2447
    %v2482 = vpop.permute.xlu0 %2481
    %2485 = vset.pattern.permute.xlu0 0
    %2486 = vperm.xlu0 %2485, %v2448
    %v2487 = vpop.permute.xlu0 %2486
    %v2489 = vadd.f32 %v2433, %v2452
    %v2490 = vadd.f32 %v2434, %v2457
    %v2491 = vadd.f32 %v2435, %v2462
    %v2492 = vadd.f32 %v2436, %v2467
    %v2493 = vadd.f32 %v2437, %v2472
    %v2494 = vadd.f32 %v2438, %v2477
    %v2495 = vadd.f32 %v2439, %v2482
    %v2496 = vadd.f32 %v2440, %v2487
    %v2497 = vmax.f32 %v2489, 0.0
    %v2498 = vmax.f32 %v2490, 0.0
    %v2499 = vmax.f32 %v2491, 0.0
    %v2500 = vmax.f32 %v2492, 0.0
    %v2501 = vmax.f32 %v2493, 0.0
    %v2502 = vmax.f32 %v2494, 0.0
    %v2503 = vmax.f32 %v2495, 0.0
    %v2504 = vmax.f32 %v2496, 0.0
    %2505 = vrot.lane.b32.xlu0 %v2497, 1
    %v2506 = vpop.permute.xlu0 %2505
    %2507 = vrot.lane.b32.xlu0 %v2498, 1
    %v2508 = vpop.permute.xlu0 %2507
    %2509 = vrot.lane.b32.xlu0 %v2499, 1
    %v2510 = vpop.permute.xlu0 %2509
    %2511 = vrot.lane.b32.xlu0 %v2500, 1
    %v2512 = vpop.permute.xlu0 %2511
    %2513 = vrot.lane.b32.xlu0 %v2501, 1
    %v2514 = vpop.permute.xlu0 %2513
    %2515 = vrot.lane.b32.xlu0 %v2502, 1
    %v2516 = vpop.permute.xlu0 %2515
    %2517 = vrot.lane.b32.xlu0 %v2503, 1
    %v2518 = vpop.permute.xlu0 %2517
    %2519 = vrot.lane.b32.xlu0 %v2504, 1
    %v2520 = vpop.permute.xlu0 %2519
    %2521 = vrot.lane.b32.xlu0 %v2497, 127
    %v2522 = vpop.permute.xlu0 %2521
    %2523 = vrot.lane.b32.xlu0 %v2498, 127
    %v2524 = vpop.permute.xlu0 %2523
    %2525 = vrot.lane.b32.xlu0 %v2499, 127
    %v2526 = vpop.permute.xlu0 %2525
    %2527 = vrot.lane.b32.xlu0 %v2500, 127
    %v2528 = vpop.permute.xlu0 %2527
    %2529 = vrot.lane.b32.xlu0 %v2501, 127
    %v2530 = vpop.permute.xlu0 %2529
    %2531 = vrot.lane.b32.xlu0 %v2502, 127
    %v2532 = vpop.permute.xlu0 %2531
    %2533 = vrot.lane.b32.xlu0 %v2503, 127
    %v2534 = vpop.permute.xlu0 %2533
    %2535 = vrot.lane.b32.xlu0 %v2504, 127
    %v2536 = vpop.permute.xlu0 %2535
    %v2537 = vld [vmem:[%s8] sm:$0xff]
    %v2538 = vld [vmem:[%s8 + $0x8] sm:$0xff]
    %v2539 = vld [vmem:[%s8 + $0x10] sm:$0xff]
    %v2540 = vld [vmem:[%s8 + $0x18] sm:$0xff]
    %v2541 = vld [vmem:[%s8 + $0x20] sm:$0xff]
    %v2542 = vld [vmem:[%s8 + $0x28] sm:$0xff]
    %v2543 = vld [vmem:[%s8 + $0x30] sm:$0xff]
    %v2544 = vld [vmem:[%s8 + $0x38] sm:$0xff]
    %v2546 = vsel %vm2005, %v2537, 0
    %v2549 = vsel %vm2005, %v2538, 0
    %v2552 = vsel %vm2005, %v2539, 0
    %v2555 = vsel %vm2005, %v2540, 0
    %v2558 = vsel %vm2005, %v2541, 0
    %v2561 = vsel %vm2005, %v2542, 0
    %v2564 = vsel %vm2005, %v2543, 0
    %v2567 = vsel %vm2005, %v2544, 0
    %2569 = vmatprep.subr.mxu0 0.0
    %2570 = vmatpush1.msra.mxu0 %v2506
    %2571 = vmatprep.subr.mxu0 0.0
    %2572 = vmatpush1.msra.mxu0 %v2508
    %2573 = vmatprep.subr.mxu0 0.0
    %2574 = vmatpush1.msra.mxu0 %v2510
    %2575 = vmatprep.subr.mxu0 0.0
    %2576 = vmatpush1.msra.mxu0 %v2512
    %2577 = vmatprep.subr.mxu0 0.0
    %2578 = vmatpush1.msra.mxu0 %v2514
    %2579 = vmatprep.subr.mxu0 0.0
    %2580 = vmatpush1.msra.mxu0 %v2516
    %2581 = vmatprep.subr.mxu0 0.0
    %2582 = vmatpush1.msra.mxu0 %v2518
    %2583 = vmatprep.subr.mxu0 0.0
    %2584 = vmatpush1.msra.mxu0 %v2520
    %2585 = vmatprep.subr.mxu0 0.0
    %2586 = vmatpush1.msra.mxu0 0.0
    %2587 = vmatprep.subr.mxu0 0.0
    %2588 = vmatpush1.msra.mxu0 0.0
    %2589 = vmatprep.subr.mxu0 0.0
    %2590 = vmatpush1.msra.mxu0 0.0
    %2591 = vmatprep.subr.mxu0 0.0
    %2592 = vmatpush1.msra.mxu0 0.0
    %2593 = vmatprep.subr.mxu0 0.0
    %2594 = vmatpush1.msra.mxu0 0.0
    %2595 = vmatprep.subr.mxu0 0.0
    %2596 = vmatpush1.msra.mxu0 0.0
    %2597 = vmatprep.subr.mxu0 0.0
    %2598 = vmatpush1.msra.mxu0 0.0
    %2599 = vmatprep.subr.mxu0 0.0
    %2600 = vmatpush1.msra.mxu0 0.0
    %2601 = vmatprep.subr.mxu0 0.0
    %2602 = vmatpush1.msra.mxu0 0.0
    %2603 = vmatprep.subr.mxu0 0.0
    %2604 = vmatpush1.msra.mxu0 0.0
    %2605 = vmatprep.subr.mxu0 0.0
    %2606 = vmatpush1.msra.mxu0 0.0
    %2607 = vmatprep.subr.mxu0 0.0
    %2608 = vmatpush1.msra.mxu0 0.0
    %2609 = vmatprep.subr.mxu0 0.0
    %2610 = vmatpush1.msra.mxu0 0.0
    %2611 = vmatprep.subr.mxu0 0.0
    %2612 = vmatpush1.msra.mxu0 0.0
    %2613 = vmatprep.subr.mxu0 0.0
    %2614 = vmatpush1.msra.mxu0 0.0
    %2615 = vmatprep.subr.mxu0 0.0
    %2616 = vmatpush1.msra.mxu0 0.0
    %2617 = vmatprep.subr.mxu0 0.0
    %2618 = vmatpush1.msra.mxu0 0.0
    %2619 = vmatprep.subr.mxu0 0.0
    %2620 = vmatpush1.msra.mxu0 0.0
    %2621 = vmatprep.subr.mxu0 0.0
    %2622 = vmatpush1.msra.mxu0 0.0
    %2623 = vmatprep.subr.mxu0 0.0
    %2624 = vmatpush1.msra.mxu0 0.0
    %2625 = vmatprep.subr.mxu0 0.0
    %2626 = vmatpush1.msra.mxu0 0.0
    %2627 = vmatprep.subr.mxu0 0.0
    %2628 = vmatpush1.msra.mxu0 0.0
    %2629 = vmatprep.subr.mxu0 0.0
    %2630 = vmatpush1.msra.mxu0 0.0
    %2631 = vmatprep.subr.mxu0 0.0
    %2632 = vmatpush1.msra.mxu0 0.0
    %2633 = vmatprep.mubr.f32.mxu0 0.0
    %2634 = vmatmul.mubr.f32.gmra.mrb[0].mxu0 %v2546
    %v2635 = vpop.f32.mrb[0].mxu0
    %v2636 = vadd.f32 0.0, %v2635
    %v2637 = vpop.f32.mrb[0].mxu0
    %2638 = vmatprep.mubr.f32.mxu0 0.0
    %2639 = vmatmul.mubr.f32.gmra.mrb[0].mxu0 %v2549
    %v2640 = vpop.f32.mrb[0].mxu0
    %v2641 = vadd.f32 0.0, %v2640
    %v2642 = vpop.f32.mrb[0].mxu0
    %2643 = vmatprep.mubr.f32.mxu0 0.0
    %2644 = vmatmul.mubr.f32.gmra.mrb[0].mxu0 %v2552
    %v2645 = vpop.f32.mrb[0].mxu0
    %v2646 = vadd.f32 0.0, %v2645
    %v2647 = vpop.f32.mrb[0].mxu0
    %2648 = vmatprep.mubr.f32.mxu0 0.0
    %2649 = vmatmul.mubr.f32.gmra.mrb[0].mxu0 %v2555
    %v2650 = vpop.f32.mrb[0].mxu0
    %v2651 = vadd.f32 0.0, %v2650
    %v2652 = vpop.f32.mrb[0].mxu0
    %2653 = vmatprep.mubr.f32.mxu0 0.0
    %2654 = vmatmul.mubr.f32.gmra.mrb[0].mxu0 %v2558
    %v2655 = vpop.f32.mrb[0].mxu0
    %v2656 = vadd.f32 0.0, %v2655
    %v2657 = vpop.f32.mrb[0].mxu0
    %2658 = vmatprep.mubr.f32.mxu0 0.0
    %2659 = vmatmul.mubr.f32.gmra.mrb[0].mxu0 %v2561
    %v2660 = vpop.f32.mrb[0].mxu0
    %v2661 = vadd.f32 0.0, %v2660
    %v2662 = vpop.f32.mrb[0].mxu0
    %2663 = vmatprep.mubr.f32.mxu0 0.0
    %2664 = vmatmul.mubr.f32.gmra.mrb[0].mxu0 %v2564
    %v2665 = vpop.f32.mrb[0].mxu0
    %v2666 = vadd.f32 0.0, %v2665
    %v2667 = vpop.f32.mrb[0].mxu0
    %2668 = vmatprep.mubr.f32.mxu0 0.0
    %2669 = vmatmul.mubr.f32.gmra.mrb[0].mxu0 %v2567
    %v2670 = vpop.f32.mrb[0].mxu0
    %v2671 = vadd.f32 0.0, %v2670
    %v2672 = vpop.f32.mrb[0].mxu0
    %2673 = vdwg.mxu0
    %v2674 = vmul.f32 %v2636, %v1961
    %v2675 = vmul.f32 %v2641, %v1961
    %v2676 = vmul.f32 %v2646, %v1961
    %v2677 = vmul.f32 %v2651, %v1961
    %v2678 = vmul.f32 %v2656, %v1961
    %v2679 = vmul.f32 %v2661, %v1961
    %v2680 = vmul.f32 %v2666, %v1961
    %v2681 = vmul.f32 %v2671, %v1961
    %v2682 = vld [vmem:[%s9] sm:$0xff]
    %v2683 = vld [vmem:[%s9 + $0x8] sm:$0xff]
    %v2684 = vld [vmem:[%s9 + $0x10] sm:$0xff]
    %v2685 = vld [vmem:[%s9 + $0x18] sm:$0xff]
    %v2686 = vld [vmem:[%s9 + $0x20] sm:$0xff]
    %v2687 = vld [vmem:[%s9 + $0x28] sm:$0xff]
    %v2688 = vld [vmem:[%s9 + $0x30] sm:$0xff]
    %v2689 = vld [vmem:[%s9 + $0x38] sm:$0xff]
    %v2691 = vsel %vm2005, %v2682, 0
    %v2694 = vsel %vm2005, %v2683, 0
    %v2697 = vsel %vm2005, %v2684, 0
    %v2700 = vsel %vm2005, %v2685, 0
    %v2703 = vsel %vm2005, %v2686, 0
    %v2706 = vsel %vm2005, %v2687, 0
    %v2709 = vsel %vm2005, %v2688, 0
    %v2712 = vsel %vm2005, %v2689, 0
    %2714 = vmatprep.subr.mxu0 0.0
    %2715 = vmatpush1.msra.mxu0 %v2497
    %2716 = vmatprep.subr.mxu0 0.0
    %2717 = vmatpush1.msra.mxu0 %v2498
    %2718 = vmatprep.subr.mxu0 0.0
    %2719 = vmatpush1.msra.mxu0 %v2499
    %2720 = vmatprep.subr.mxu0 0.0
    %2721 = vmatpush1.msra.mxu0 %v2500
    %2722 = vmatprep.subr.mxu0 0.0
    %2723 = vmatpush1.msra.mxu0 %v2501
    %2724 = vmatprep.subr.mxu0 0.0
    %2725 = vmatpush1.msra.mxu0 %v2502
    %2726 = vmatprep.subr.mxu0 0.0
    %2727 = vmatpush1.msra.mxu0 %v2503
    %2728 = vmatprep.subr.mxu0 0.0
    %2729 = vmatpush1.msra.mxu0 %v2504
    %2730 = vmatprep.subr.mxu0 0.0
    %2731 = vmatpush1.msra.mxu0 0.0
    %2732 = vmatprep.subr.mxu0 0.0
    %2733 = vmatpush1.msra.mxu0 0.0
    %2734 = vmatprep.subr.mxu0 0.0
    %2735 = vmatpush1.msra.mxu0 0.0
    %2736 = vmatprep.subr.mxu0 0.0
    %2737 = vmatpush1.msra.mxu0 0.0
    %2738 = vmatprep.subr.mxu0 0.0
    %2739 = vmatpush1.msra.mxu0 0.0
    %2740 = vmatprep.subr.mxu0 0.0
    %2741 = vmatpush1.msra.mxu0 0.0
    %2742 = vmatprep.subr.mxu0 0.0
    %2743 = vmatpush1.msra.mxu0 0.0
    %2744 = vmatprep.subr.mxu0 0.0
    %2745 = vmatpush1.msra.mxu0 0.0
    %2746 = vmatprep.subr.mxu0 0.0
    %2747 = vmatpush1.msra.mxu0 0.0
    %2748 = vmatprep.subr.mxu0 0.0
    %2749 = vmatpush1.msra.mxu0 0.0
    %2750 = vmatprep.subr.mxu0 0.0
    %2751 = vmatpush1.msra.mxu0 0.0
    %2752 = vmatprep.subr.mxu0 0.0
    %2753 = vmatpush1.msra.mxu0 0.0
    %2754 = vmatprep.subr.mxu0 0.0
    %2755 = vmatpush1.msra.mxu0 0.0
    %2756 = vmatprep.subr.mxu0 0.0
    %2757 = vmatpush1.msra.mxu0 0.0
    %2758 = vmatprep.subr.mxu0 0.0
    %2759 = vmatpush1.msra.mxu0 0.0
    %2760 = vmatprep.subr.mxu0 0.0
    %2761 = vmatpush1.msra.mxu0 0.0
    %2762 = vmatprep.subr.mxu0 0.0
    %2763 = vmatpush1.msra.mxu0 0.0
    %2764 = vmatprep.subr.mxu0 0.0
    %2765 = vmatpush1.msra.mxu0 0.0
    %2766 = vmatprep.subr.mxu0 0.0
    %2767 = vmatpush1.msra.mxu0 0.0
    %2768 = vmatprep.subr.mxu0 0.0
    %2769 = vmatpush1.msra.mxu0 0.0
    %2770 = vmatprep.subr.mxu0 0.0
    %2771 = vmatpush1.msra.mxu0 0.0
    %2772 = vmatprep.subr.mxu0 0.0
    %2773 = vmatpush1.msra.mxu0 0.0
    %2774 = vmatprep.subr.mxu0 0.0
    %2775 = vmatpush1.msra.mxu0 0.0
    %2776 = vmatprep.subr.mxu0 0.0
    %2777 = vmatpush1.msra.mxu0 0.0
    %2778 = vmatprep.mubr.f32.mxu0 0.0
    %2779 = vmatmul.mubr.f32.gmra.mrb[0].mxu0 %v2691
    %v2780 = vpop.f32.mrb[0].mxu0
    %v2781 = vadd.f32 0.0, %v2780
    %v2782 = vpop.f32.mrb[0].mxu0
    %2783 = vmatprep.mubr.f32.mxu0 0.0
    %2784 = vmatmul.mubr.f32.gmra.mrb[0].mxu0 %v2694
    %v2785 = vpop.f32.mrb[0].mxu0
    %v2786 = vadd.f32 0.0, %v2785
    %v2787 = vpop.f32.mrb[0].mxu0
    %2788 = vmatprep.mubr.f32.mxu0 0.0
    %2789 = vmatmul.mubr.f32.gmra.mrb[0].mxu0 %v2697
    %v2790 = vpop.f32.mrb[0].mxu0
    %v2791 = vadd.f32 0.0, %v2790
    %v2792 = vpop.f32.mrb[0].mxu0
    %2793 = vmatprep.mubr.f32.mxu0 0.0
    %2794 = vmatmul.mubr.f32.gmra.mrb[0].mxu0 %v2700
    %v2795 = vpop.f32.mrb[0].mxu0
    %v2796 = vadd.f32 0.0, %v2795
    %v2797 = vpop.f32.mrb[0].mxu0
    %2798 = vmatprep.mubr.f32.mxu0 0.0
    %2799 = vmatmul.mubr.f32.gmra.mrb[0].mxu0 %v2703
    %v2800 = vpop.f32.mrb[0].mxu0
    %v2801 = vadd.f32 0.0, %v2800
    %v2802 = vpop.f32.mrb[0].mxu0
    %2803 = vmatprep.mubr.f32.mxu0 0.0
    %2804 = vmatmul.mubr.f32.gmra.mrb[0].mxu0 %v2706
    %v2805 = vpop.f32.mrb[0].mxu0
    %v2806 = vadd.f32 0.0, %v2805
    %v2807 = vpop.f32.mrb[0].mxu0
    %2808 = vmatprep.mubr.f32.mxu0 0.0
    %2809 = vmatmul.mubr.f32.gmra.mrb[0].mxu0 %v2709
    %v2810 = vpop.f32.mrb[0].mxu0
    %v2811 = vadd.f32 0.0, %v2810
    %v2812 = vpop.f32.mrb[0].mxu0
    %2813 = vmatprep.mubr.f32.mxu0 0.0
    %2814 = vmatmul.mubr.f32.gmra.mrb[0].mxu0 %v2712
    %v2815 = vpop.f32.mrb[0].mxu0
    %v2816 = vadd.f32 0.0, %v2815
    %v2817 = vpop.f32.mrb[0].mxu0
    %2818 = vdwg.mxu0
    %v2819 = vadd.f32 %v2674, %v2781
    %v2820 = vadd.f32 %v2675, %v2786
    %v2821 = vadd.f32 %v2676, %v2791
    %v2822 = vadd.f32 %v2677, %v2796
    %v2823 = vadd.f32 %v2678, %v2801
    %v2824 = vadd.f32 %v2679, %v2806
    %v2825 = vadd.f32 %v2680, %v2811
    %v2826 = vadd.f32 %v2681, %v2816
    %v2827 = vld [vmem:[%s10] sm:$0xff]
    %v2828 = vld [vmem:[%s10 + $0x8] sm:$0xff]
    %v2829 = vld [vmem:[%s10 + $0x10] sm:$0xff]
    %v2830 = vld [vmem:[%s10 + $0x18] sm:$0xff]
    %v2831 = vld [vmem:[%s10 + $0x20] sm:$0xff]
    %v2832 = vld [vmem:[%s10 + $0x28] sm:$0xff]
    %v2833 = vld [vmem:[%s10 + $0x30] sm:$0xff]
    %v2834 = vld [vmem:[%s10 + $0x38] sm:$0xff]
    %v2836 = vsel %vm2005, %v2827, 0
    %v2839 = vsel %vm2005, %v2828, 0
    %v2842 = vsel %vm2005, %v2829, 0
    %v2845 = vsel %vm2005, %v2830, 0
    %v2848 = vsel %vm2005, %v2831, 0
    %v2851 = vsel %vm2005, %v2832, 0
    %v2854 = vsel %vm2005, %v2833, 0
    %v2857 = vsel %vm2005, %v2834, 0
    %2859 = vmatprep.subr.mxu0 0.0
    %2860 = vmatpush1.msra.mxu0 %v2522
    %2861 = vmatprep.subr.mxu0 0.0
    %2862 = vmatpush1.msra.mxu0 %v2524
    %2863 = vmatprep.subr.mxu0 0.0
    %2864 = vmatpush1.msra.mxu0 %v2526
    %2865 = vmatprep.subr.mxu0 0.0
    %2866 = vmatpush1.msra.mxu0 %v2528
    %2867 = vmatprep.subr.mxu0 0.0
    %2868 = vmatpush1.msra.mxu0 %v2530
    %2869 = vmatprep.subr.mxu0 0.0
    %2870 = vmatpush1.msra.mxu0 %v2532
    %2871 = vmatprep.subr.mxu0 0.0
    %2872 = vmatpush1.msra.mxu0 %v2534
    %2873 = vmatprep.subr.mxu0 0.0
    %2874 = vmatpush1.msra.mxu0 %v2536
    %2875 = vmatprep.subr.mxu0 0.0
    %2876 = vmatpush1.msra.mxu0 0.0
    %2877 = vmatprep.subr.mxu0 0.0
    %2878 = vmatpush1.msra.mxu0 0.0
    %2879 = vmatprep.subr.mxu0 0.0
    %2880 = vmatpush1.msra.mxu0 0.0
    %2881 = vmatprep.subr.mxu0 0.0
    %2882 = vmatpush1.msra.mxu0 0.0
    %2883 = vmatprep.subr.mxu0 0.0
    %2884 = vmatpush1.msra.mxu0 0.0
    %2885 = vmatprep.subr.mxu0 0.0
    %2886 = vmatpush1.msra.mxu0 0.0
    %2887 = vmatprep.subr.mxu0 0.0
    %2888 = vmatpush1.msra.mxu0 0.0
    %2889 = vmatprep.subr.mxu0 0.0
    %2890 = vmatpush1.msra.mxu0 0.0
    %2891 = vmatprep.subr.mxu0 0.0
    %2892 = vmatpush1.msra.mxu0 0.0
    %2893 = vmatprep.subr.mxu0 0.0
    %2894 = vmatpush1.msra.mxu0 0.0
    %2895 = vmatprep.subr.mxu0 0.0
    %2896 = vmatpush1.msra.mxu0 0.0
    %2897 = vmatprep.subr.mxu0 0.0
    %2898 = vmatpush1.msra.mxu0 0.0
    %2899 = vmatprep.subr.mxu0 0.0
    %2900 = vmatpush1.msra.mxu0 0.0
    %2901 = vmatprep.subr.mxu0 0.0
    %2902 = vmatpush1.msra.mxu0 0.0
    %2903 = vmatprep.subr.mxu0 0.0
    %2904 = vmatpush1.msra.mxu0 0.0
    %2905 = vmatprep.subr.mxu0 0.0
    %2906 = vmatpush1.msra.mxu0 0.0
    %2907 = vmatprep.subr.mxu0 0.0
    %2908 = vmatpush1.msra.mxu0 0.0
    %2909 = vmatprep.subr.mxu0 0.0
    %2910 = vmatpush1.msra.mxu0 0.0
    %2911 = vmatprep.subr.mxu0 0.0
    %2912 = vmatpush1.msra.mxu0 0.0
    %2913 = vmatprep.subr.mxu0 0.0
    %2914 = vmatpush1.msra.mxu0 0.0
    %2915 = vmatprep.subr.mxu0 0.0
    %2916 = vmatpush1.msra.mxu0 0.0
    %2917 = vmatprep.subr.mxu0 0.0
    %2918 = vmatpush1.msra.mxu0 0.0
    %2919 = vmatprep.subr.mxu0 0.0
    %2920 = vmatpush1.msra.mxu0 0.0
    %2921 = vmatprep.subr.mxu0 0.0
    %2922 = vmatpush1.msra.mxu0 0.0
    %2923 = vmatprep.mubr.f32.mxu0 0.0
    %2924 = vmatmul.mubr.f32.gmra.mrb[0].mxu0 %v2836
    %v2925 = vpop.f32.mrb[0].mxu0
    %v2926 = vadd.f32 0.0, %v2925
    %v2927 = vpop.f32.mrb[0].mxu0
    %2928 = vmatprep.mubr.f32.mxu0 0.0
    %2929 = vmatmul.mubr.f32.gmra.mrb[0].mxu0 %v2839
    %v2930 = vpop.f32.mrb[0].mxu0
    %v2931 = vadd.f32 0.0, %v2930
    %v2932 = vpop.f32.mrb[0].mxu0
    %2933 = vmatprep.mubr.f32.mxu0 0.0
    %2934 = vmatmul.mubr.f32.gmra.mrb[0].mxu0 %v2842
    %v2935 = vpop.f32.mrb[0].mxu0
    %v2936 = vadd.f32 0.0, %v2935
    %v2937 = vpop.f32.mrb[0].mxu0
    %2938 = vmatprep.mubr.f32.mxu0 0.0
    %2939 = vmatmul.mubr.f32.gmra.mrb[0].mxu0 %v2845
    %v2940 = vpop.f32.mrb[0].mxu0
    %v2941 = vadd.f32 0.0, %v2940
    %v2942 = vpop.f32.mrb[0].mxu0
    %2943 = vmatprep.mubr.f32.mxu0 0.0
    %2944 = vmatmul.mubr.f32.gmra.mrb[0].mxu0 %v2848
    %v2945 = vpop.f32.mrb[0].mxu0
    %v2946 = vadd.f32 0.0, %v2945
    %v2947 = vpop.f32.mrb[0].mxu0
    %2948 = vmatprep.mubr.f32.mxu0 0.0
    %2949 = vmatmul.mubr.f32.gmra.mrb[0].mxu0 %v2851
    %v2950 = vpop.f32.mrb[0].mxu0
    %v2951 = vadd.f32 0.0, %v2950
    %v2952 = vpop.f32.mrb[0].mxu0
    %2953 = vmatprep.mubr.f32.mxu0 0.0
    %2954 = vmatmul.mubr.f32.gmra.mrb[0].mxu0 %v2854
    %v2955 = vpop.f32.mrb[0].mxu0
    %v2956 = vadd.f32 0.0, %v2955
    %v2957 = vpop.f32.mrb[0].mxu0
    %2958 = vmatprep.mubr.f32.mxu0 0.0
    %2959 = vmatmul.mubr.f32.gmra.mrb[0].mxu0 %v2857
    %v2960 = vpop.f32.mrb[0].mxu0
    %v2961 = vadd.f32 0.0, %v2960
    %v2962 = vpop.f32.mrb[0].mxu0
    %2963 = vdwg.mxu0
    %v2964 = vmul.f32 %v2926, %v1964
    %v2965 = vmul.f32 %v2931, %v1964
    %v2966 = vmul.f32 %v2936, %v1964
    %v2967 = vmul.f32 %v2941, %v1964
    %v2968 = vmul.f32 %v2946, %v1964
    %v2969 = vmul.f32 %v2951, %v1964
    %v2970 = vmul.f32 %v2956, %v1964
    %v2971 = vmul.f32 %v2961, %v1964
    %v2972 = vadd.f32 %v2819, %v2964
    %v2973 = vadd.f32 %v2820, %v2965
    %v2974 = vadd.f32 %v2821, %v2966
    %v2975 = vadd.f32 %v2822, %v2967
    %v2976 = vadd.f32 %v2823, %v2968
    %v2977 = vadd.f32 %v2824, %v2969
    %v2978 = vadd.f32 %v2825, %v2970
    %v2979 = vadd.f32 %v2826, %v2971
    %v2980 = vld [vmem:[%s11] sm:$0xff]
    %v2981 = vld [vmem:[%s11 + $0x8] sm:$0xff]
    %v2982 = vld [vmem:[%s11 + $0x10] sm:$0xff]
    %v2983 = vld [vmem:[%s11 + $0x18] sm:$0xff]
    %v2984 = vld [vmem:[%s11 + $0x20] sm:$0xff]
    %v2985 = vld [vmem:[%s11 + $0x28] sm:$0xff]
    %v2986 = vld [vmem:[%s11 + $0x30] sm:$0xff]
    %v2987 = vld [vmem:[%s11 + $0x38] sm:$0xff]
    %2989 = vset.pattern.permute.xlu0 0
    %2990 = vperm.xlu0 %2989, %v2980
    %v2991 = vpop.permute.xlu0 %2990
    %2994 = vset.pattern.permute.xlu0 0
    %2995 = vperm.xlu0 %2994, %v2981
    %v2996 = vpop.permute.xlu0 %2995
    %2999 = vset.pattern.permute.xlu0 0
    %3000 = vperm.xlu0 %2999, %v2982
    %v3001 = vpop.permute.xlu0 %3000
    %3004 = vset.pattern.permute.xlu0 0
    %3005 = vperm.xlu0 %3004, %v2983
    %v3006 = vpop.permute.xlu0 %3005
    %3009 = vset.pattern.permute.xlu0 0
    %3010 = vperm.xlu0 %3009, %v2984
    %v3011 = vpop.permute.xlu0 %3010
    %3014 = vset.pattern.permute.xlu0 0
    %3015 = vperm.xlu0 %3014, %v2985
    %v3016 = vpop.permute.xlu0 %3015
    %3019 = vset.pattern.permute.xlu0 0
    %3020 = vperm.xlu0 %3019, %v2986
    %v3021 = vpop.permute.xlu0 %3020
    %3024 = vset.pattern.permute.xlu0 0
    %3025 = vperm.xlu0 %3024, %v2987
    %v3026 = vpop.permute.xlu0 %3025
    %v3028 = vadd.f32 %v2972, %v2991
    %v3029 = vadd.f32 %v2973, %v2996
    %v3030 = vadd.f32 %v2974, %v3001
    %v3031 = vadd.f32 %v2975, %v3006
    %v3032 = vadd.f32 %v2976, %v3011
    %v3033 = vadd.f32 %v2977, %v3016
    %v3034 = vadd.f32 %v2978, %v3021
    %v3035 = vadd.f32 %v2979, %v3026
    %v3036 = vmax.f32 %v3028, 0.0
    %v3037 = vmax.f32 %v3029, 0.0
    %v3038 = vmax.f32 %v3030, 0.0
    %v3039 = vmax.f32 %v3031, 0.0
    %v3040 = vmax.f32 %v3032, 0.0
    %v3041 = vmax.f32 %v3033, 0.0
    %v3042 = vmax.f32 %v3034, 0.0
    %v3043 = vmax.f32 %v3035, 0.0
    %3044 = vrot.lane.b32.xlu0 %v3036, 127
    %v3045 = vpop.permute.xlu0 %3044
    %3046 = vrot.lane.b32.xlu0 %v3037, 127
    %v3047 = vpop.permute.xlu0 %3046
    %3048 = vrot.lane.b32.xlu0 %v3038, 127
    %v3049 = vpop.permute.xlu0 %3048
    %3050 = vrot.lane.b32.xlu0 %v3039, 127
    %v3051 = vpop.permute.xlu0 %3050
    %3052 = vrot.lane.b32.xlu0 %v3040, 127
    %v3053 = vpop.permute.xlu0 %3052
    %3054 = vrot.lane.b32.xlu0 %v3041, 127
    %v3055 = vpop.permute.xlu0 %3054
    %3056 = vrot.lane.b32.xlu0 %v3042, 127
    %v3057 = vpop.permute.xlu0 %3056
    %3058 = vrot.lane.b32.xlu0 %v3043, 127
    %v3059 = vpop.permute.xlu0 %3058
    %v3060 = vmax.f32 %v3036, %v3045
    %v3061 = vmax.f32 %v3037, %v3047
    %v3062 = vmax.f32 %v3038, %v3049
    %v3063 = vmax.f32 %v3039, %v3051
    %v3064 = vmax.f32 %v3040, %v3053
    %v3065 = vmax.f32 %v3041, %v3055
    %v3066 = vmax.f32 %v3042, %v3057
    %v3067 = vmax.f32 %v3043, %v3059
    %v3068 = vld [vmem:[%s12] sm:$0xff]
    %v3069 = vld [vmem:[%s12 + $0x8] sm:$0xff]
    %v3070 = vld [vmem:[%s12 + $0x10] sm:$0xff]
    %v3071 = vld [vmem:[%s12 + $0x18] sm:$0xff]
    %v3072 = vld [vmem:[%s12 + $0x20] sm:$0xff]
    %v3073 = vld [vmem:[%s12 + $0x28] sm:$0xff]
    %v3074 = vld [vmem:[%s12 + $0x30] sm:$0xff]
    %v3075 = vld [vmem:[%s12 + $0x38] sm:$0xff]
    %v3076 = vld [vmem:[%s12 + $0x40] sm:$0xff]
    %v3077 = vld [vmem:[%s12 + $0x48] sm:$0xff]
    %v3078 = vld [vmem:[%s12 + $0x50] sm:$0xff]
    %v3079 = vld [vmem:[%s12 + $0x58] sm:$0xff]
    %v3080 = vld [vmem:[%s12 + $0x60] sm:$0xff]
    %v3081 = vld [vmem:[%s12 + $0x68] sm:$0xff]
    %v3082 = vld [vmem:[%s12 + $0x70] sm:$0xff]
    %v3083 = vld [vmem:[%s12 + $0x78] sm:$0xff]
    %v3084 = vld [vmem:[%s12 + $0x80] sm:$0xff]
    %v3085 = vld [vmem:[%s12 + $0x88] sm:$0xff]
    %v3086 = vld [vmem:[%s12 + $0x90] sm:$0xff]
    %v3087 = vld [vmem:[%s12 + $0x98] sm:$0xff]
    %v3088 = vld [vmem:[%s12 + $0xa0] sm:$0xff]
    %v3089 = vld [vmem:[%s12 + $0xa8] sm:$0xff]
    %v3090 = vld [vmem:[%s12 + $0xb0] sm:$0xff]
    %v3091 = vld [vmem:[%s12 + $0xb8] sm:$0xff]
    %v3092 = vld [vmem:[%s12 + $0xc0] sm:$0xff]
    %v3093 = vld [vmem:[%s12 + $0xc8] sm:$0xff]
    %v3094 = vld [vmem:[%s12 + $0xd0] sm:$0xff]
    %v3095 = vld [vmem:[%s12 + $0xd8] sm:$0xff]
    %v3096 = vld [vmem:[%s12 + $0xe0] sm:$0xff]
    %v3097 = vld [vmem:[%s12 + $0xe8] sm:$0xff]
    %v3098 = vld [vmem:[%s12 + $0xf0] sm:$0xff]
    %v3099 = vld [vmem:[%s12 + $0xf8] sm:$0xff]
    %3100 = vmatprep.subr.mxu0 %v3069
    %3101 = vmatpush1.msra.mxu0 %v3068
    %3102 = vmatprep.subr.mxu0 %v3071
    %3103 = vmatpush1.msra.mxu0 %v3070
    %3104 = vmatprep.subr.mxu0 %v3073
    %3105 = vmatpush1.msra.mxu0 %v3072
    %3106 = vmatprep.subr.mxu0 %v3075
    %3107 = vmatpush1.msra.mxu0 %v3074
    %3108 = vmatprep.subr.mxu0 %v3077
    %3109 = vmatpush1.msra.mxu0 %v3076
    %3110 = vmatprep.subr.mxu0 %v3079
    %3111 = vmatpush1.msra.mxu0 %v3078
    %3112 = vmatprep.subr.mxu0 %v3081
    %3113 = vmatpush1.msra.mxu0 %v3080
    %3114 = vmatprep.subr.mxu0 %v3083
    %3115 = vmatpush1.msra.mxu0 %v3082
    %3116 = vmatprep.subr.mxu0 %v3085
    %3117 = vmatpush1.msra.mxu0 %v3084
    %3118 = vmatprep.subr.mxu0 %v3087
    %3119 = vmatpush1.msra.mxu0 %v3086
    %3120 = vmatprep.subr.mxu0 %v3089
    %3121 = vmatpush1.msra.mxu0 %v3088
    %3122 = vmatprep.subr.mxu0 %v3091
    %3123 = vmatpush1.msra.mxu0 %v3090
    %3124 = vmatprep.subr.mxu0 %v3093
    %3125 = vmatpush1.msra.mxu0 %v3092
    %3126 = vmatprep.subr.mxu0 %v3095
    %3127 = vmatpush1.msra.mxu0 %v3094
    %3128 = vmatprep.subr.mxu0 %v3097
    %3129 = vmatpush1.msra.mxu0 %v3096
    %3130 = vmatprep.subr.mxu0 %v3099
    %3131 = vmatpush1.msra.mxu0 %v3098
    %3132 = vmatprep.subr.mxu0 0.0
    %3133 = vmatpush1.msra.mxu0 0.0
    %3134 = vmatprep.subr.mxu0 0.0
    %3135 = vmatpush1.msra.mxu0 0.0
    %3136 = vmatprep.subr.mxu0 0.0
    %3137 = vmatpush1.msra.mxu0 0.0
    %3138 = vmatprep.subr.mxu0 0.0
    %3139 = vmatpush1.msra.mxu0 0.0
    %3140 = vmatprep.subr.mxu0 0.0
    %3141 = vmatpush1.msra.mxu0 0.0
    %3142 = vmatprep.subr.mxu0 0.0
    %3143 = vmatpush1.msra.mxu0 0.0
    %3144 = vmatprep.subr.mxu0 0.0
    %3145 = vmatpush1.msra.mxu0 0.0
    %3146 = vmatprep.subr.mxu0 0.0
    %3147 = vmatpush1.msra.mxu0 0.0
    %3148 = vmatprep.subr.mxu0 0.0
    %3149 = vmatpush1.msra.mxu0 0.0
    %3150 = vmatprep.subr.mxu0 0.0
    %3151 = vmatpush1.msra.mxu0 0.0
    %3152 = vmatprep.subr.mxu0 0.0
    %3153 = vmatpush1.msra.mxu0 0.0
    %3154 = vmatprep.subr.mxu0 0.0
    %3155 = vmatpush1.msra.mxu0 0.0
    %3156 = vmatprep.subr.mxu0 0.0
    %3157 = vmatpush1.msra.mxu0 0.0
    %3158 = vmatprep.subr.mxu0 0.0
    %3159 = vmatpush1.msra.mxu0 0.0
    %3160 = vmatprep.subr.mxu0 0.0
    %3161 = vmatpush1.msra.mxu0 0.0
    %3162 = vmatprep.subr.mxu0 0.0
    %3163 = vmatpush1.msra.mxu0 0.0
    %3164 = vmatprep.mubr.f32.mxu0 0.0
    %3165 = vmatmul.mubr.f32.gmra.mrb[0].mxu0 %v3060
    %v3166 = vpop.f32.mrb[0].mxu0
    %v3167 = vadd.f32 0.0, %v3166
    %v3168 = vpop.f32.mrb[0].mxu0
    %v3169 = vadd.f32 0.0, %v3168
    %3170 = vmatprep.mubr.f32.mxu0 0.0
    %3171 = vmatmul.mubr.f32.gmra.mrb[0].mxu0 %v3061
    %v3172 = vpop.f32.mrb[0].mxu0
    %v3173 = vadd.f32 0.0, %v3172
    %v3174 = vpop.f32.mrb[0].mxu0
    %v3175 = vadd.f32 0.0, %v3174
    %3176 = vmatprep.mubr.f32.mxu0 0.0
    %3177 = vmatmul.mubr.f32.gmra.mrb[0].mxu0 %v3062
    %v3178 = vpop.f32.mrb[0].mxu0
    %v3179 = vadd.f32 0.0, %v3178
    %v3180 = vpop.f32.mrb[0].mxu0
    %v3181 = vadd.f32 0.0, %v3180
    %3182 = vmatprep.mubr.f32.mxu0 0.0
    %3183 = vmatmul.mubr.f32.gmra.mrb[0].mxu0 %v3063
    %v3184 = vpop.f32.mrb[0].mxu0
    %v3185 = vadd.f32 0.0, %v3184
    %v3186 = vpop.f32.mrb[0].mxu0
    %v3187 = vadd.f32 0.0, %v3186
    %3188 = vmatprep.mubr.f32.mxu0 0.0
    %3189 = vmatmul.mubr.f32.gmra.mrb[0].mxu0 %v3064
    %v3190 = vpop.f32.mrb[0].mxu0
    %v3191 = vadd.f32 0.0, %v3190
    %v3192 = vpop.f32.mrb[0].mxu0
    %v3193 = vadd.f32 0.0, %v3192
    %3194 = vmatprep.mubr.f32.mxu0 0.0
    %3195 = vmatmul.mubr.f32.gmra.mrb[0].mxu0 %v3065
    %v3196 = vpop.f32.mrb[0].mxu0
    %v3197 = vadd.f32 0.0, %v3196
    %v3198 = vpop.f32.mrb[0].mxu0
    %v3199 = vadd.f32 0.0, %v3198
    %3200 = vmatprep.mubr.f32.mxu0 0.0
    %3201 = vmatmul.mubr.f32.gmra.mrb[0].mxu0 %v3066
    %v3202 = vpop.f32.mrb[0].mxu0
    %v3203 = vadd.f32 0.0, %v3202
    %v3204 = vpop.f32.mrb[0].mxu0
    %v3205 = vadd.f32 0.0, %v3204
    %3206 = vmatprep.mubr.f32.mxu0 0.0
    %3207 = vmatmul.mubr.f32.gmra.mrb[0].mxu0 %v3067
    %v3208 = vpop.f32.mrb[0].mxu0
    %v3209 = vadd.f32 0.0, %v3208
    %v3210 = vpop.f32.mrb[0].mxu0
    %v3211 = vadd.f32 0.0, %v3210
    %3212 = vdwg.mxu0
    %v3213 = vld [vmem:[%s13] sm:$0xff]
    %v3214 = vld [vmem:[%s13 + $0x8] sm:$0xff]
    %v3215 = vld [vmem:[%s13 + $0x10] sm:$0xff]
    %v3216 = vld [vmem:[%s13 + $0x18] sm:$0xff]
    %v3217 = vld [vmem:[%s13 + $0x20] sm:$0xff]
    %v3218 = vld [vmem:[%s13 + $0x28] sm:$0xff]
    %v3219 = vld [vmem:[%s13 + $0x30] sm:$0xff]
    %v3220 = vld [vmem:[%s13 + $0x38] sm:$0xff]
    %v3221 = vld [vmem:[%s13 + $0x40] sm:$0xff]
    %v3222 = vld [vmem:[%s13 + $0x48] sm:$0xff]
    %v3223 = vld [vmem:[%s13 + $0x50] sm:$0xff]
    %v3224 = vld [vmem:[%s13 + $0x58] sm:$0xff]
    %v3225 = vld [vmem:[%s13 + $0x60] sm:$0xff]
    %v3226 = vld [vmem:[%s13 + $0x68] sm:$0xff]
    %v3227 = vld [vmem:[%s13 + $0x70] sm:$0xff]
    %v3228 = vld [vmem:[%s13 + $0x78] sm:$0xff]
    %v3229 = vmul.f32 %v3167, %v3213
    %v3230 = vmul.f32 %v3169, %v3214
    %v3231 = vmul.f32 %v3173, %v3215
    %v3232 = vmul.f32 %v3175, %v3216
    %v3233 = vmul.f32 %v3179, %v3217
    %v3234 = vmul.f32 %v3181, %v3218
    %v3235 = vmul.f32 %v3185, %v3219
    %v3236 = vmul.f32 %v3187, %v3220
    %v3237 = vmul.f32 %v3191, %v3221
    %v3238 = vmul.f32 %v3193, %v3222
    %v3239 = vmul.f32 %v3197, %v3223
    %v3240 = vmul.f32 %v3199, %v3224
    %v3241 = vmul.f32 %v3203, %v3225
    %v3242 = vmul.f32 %v3205, %v3226
    %v3243 = vmul.f32 %v3209, %v3227
    %v3244 = vmul.f32 %v3211, %v3228
    %v3245 = vld [vmem:[%s15] sm:$0x3]
    %v3247 = vsel %vm2005, %v3245, 0
    %3249 = vmatprep.subr.mxu0 %v3230
    %3250 = vmatpush1.msra.mxu0 %v3229
    %3251 = vmatprep.subr.mxu0 %v3232
    %3252 = vmatpush1.msra.mxu0 %v3231
    %3253 = vmatprep.subr.mxu0 %v3234
    %3254 = vmatpush1.msra.mxu0 %v3233
    %3255 = vmatprep.subr.mxu0 %v3236
    %3256 = vmatpush1.msra.mxu0 %v3235
    %3257 = vmatprep.subr.mxu0 %v3238
    %3258 = vmatpush1.msra.mxu0 %v3237
    %3259 = vmatprep.subr.mxu0 %v3240
    %3260 = vmatpush1.msra.mxu0 %v3239
    %3261 = vmatprep.subr.mxu0 %v3242
    %3262 = vmatpush1.msra.mxu0 %v3241
    %3263 = vmatprep.subr.mxu0 %v3244
    %3264 = vmatpush1.msra.mxu0 %v3243
    %3265 = vmatprep.subr.mxu0 0.0
    %3266 = vmatpush1.msra.mxu0 0.0
    %3267 = vmatprep.subr.mxu0 0.0
    %3268 = vmatpush1.msra.mxu0 0.0
    %3269 = vmatprep.subr.mxu0 0.0
    %3270 = vmatpush1.msra.mxu0 0.0
    %3271 = vmatprep.subr.mxu0 0.0
    %3272 = vmatpush1.msra.mxu0 0.0
    %3273 = vmatprep.subr.mxu0 0.0
    %3274 = vmatpush1.msra.mxu0 0.0
    %3275 = vmatprep.subr.mxu0 0.0
    %3276 = vmatpush1.msra.mxu0 0.0
    %3277 = vmatprep.subr.mxu0 0.0
    %3278 = vmatpush1.msra.mxu0 0.0
    %3279 = vmatprep.subr.mxu0 0.0
    %3280 = vmatpush1.msra.mxu0 0.0
    %3281 = vmatprep.subr.mxu0 0.0
    %3282 = vmatpush1.msra.mxu0 0.0
    %3283 = vmatprep.subr.mxu0 0.0
    %3284 = vmatpush1.msra.mxu0 0.0
    %3285 = vmatprep.subr.mxu0 0.0
    %3286 = vmatpush1.msra.mxu0 0.0
    %3287 = vmatprep.subr.mxu0 0.0
    %3288 = vmatpush1.msra.mxu0 0.0
    %3289 = vmatprep.subr.mxu0 0.0
    %3290 = vmatpush1.msra.mxu0 0.0
    %3291 = vmatprep.subr.mxu0 0.0
    %3292 = vmatpush1.msra.mxu0 0.0
    %3293 = vmatprep.subr.mxu0 0.0
    %3294 = vmatpush1.msra.mxu0 0.0
    %3295 = vmatprep.subr.mxu0 0.0
    %3296 = vmatpush1.msra.mxu0 0.0
    %3297 = vmatprep.subr.mxu0 0.0
    %3298 = vmatpush1.msra.mxu0 0.0
    %3299 = vmatprep.subr.mxu0 0.0
    %3300 = vmatpush1.msra.mxu0 0.0
    %3301 = vmatprep.subr.mxu0 0.0
    %3302 = vmatpush1.msra.mxu0 0.0
    %3303 = vmatprep.subr.mxu0 0.0
    %3304 = vmatpush1.msra.mxu0 0.0
    %3305 = vmatprep.subr.mxu0 0.0
    %3306 = vmatpush1.msra.mxu0 0.0
    %3307 = vmatprep.subr.mxu0 0.0
    %3308 = vmatpush1.msra.mxu0 0.0
    %3309 = vmatprep.subr.mxu0 0.0
    %3310 = vmatpush1.msra.mxu0 0.0
    %3311 = vmatprep.subr.mxu0 0.0
    %3312 = vmatpush1.msra.mxu0 0.0
    %3313 = vmatprep.mubr.f32.mxu0 0.0
    %3314 = vmatmul.mubr.f32.gmra.mrb[0].mxu0 %v3247
    %v3315 = vpop.f32.mrb[0].mxu0
    %v3316 = vadd.f32 0.0, %v3315
    %v3317 = vpop.f32.mrb[0].mxu0
    %v3318 = vadd.f32 0.0, %v3317
    %3319 = vdwg.mxu0
    %v3320 = vld [vmem:[%s14] sm:$0xff]
    %v3321 = vld [vmem:[%s14 + $0x8] sm:$0xff]
    %v3322 = vld [vmem:[%s14 + $0x10] sm:$0xff]
    %v3323 = vld [vmem:[%s14 + $0x18] sm:$0xff]
    %v3324 = vld [vmem:[%s14 + $0x20] sm:$0xff]
    %v3325 = vld [vmem:[%s14 + $0x28] sm:$0xff]
    %v3326 = vld [vmem:[%s14 + $0x30] sm:$0xff]
    %v3327 = vld [vmem:[%s14 + $0x38] sm:$0xff]
    %v3328 = vld [vmem:[%s14 + $0x40] sm:$0xff]
    %v3329 = vld [vmem:[%s14 + $0x48] sm:$0xff]
    %v3330 = vld [vmem:[%s14 + $0x50] sm:$0xff]
    %v3331 = vld [vmem:[%s14 + $0x58] sm:$0xff]
    %v3332 = vld [vmem:[%s14 + $0x60] sm:$0xff]
    %v3333 = vld [vmem:[%s14 + $0x68] sm:$0xff]
    %v3334 = vld [vmem:[%s14 + $0x70] sm:$0xff]
    %v3335 = vld [vmem:[%s14 + $0x78] sm:$0xff]
    %v3336 = vld [vmem:[%s14 + $0x80] sm:$0xff]
    %v3337 = vld [vmem:[%s14 + $0x88] sm:$0xff]
    %v3338 = vld [vmem:[%s14 + $0x90] sm:$0xff]
    %v3339 = vld [vmem:[%s14 + $0x98] sm:$0xff]
    %v3340 = vld [vmem:[%s14 + $0xa0] sm:$0xff]
    %v3341 = vld [vmem:[%s14 + $0xa8] sm:$0xff]
    %v3342 = vld [vmem:[%s14 + $0xb0] sm:$0xff]
    %v3343 = vld [vmem:[%s14 + $0xb8] sm:$0xff]
    %v3344 = vld [vmem:[%s16] sm:$0x1]
    %v3346 = vlaneseq
    %v3347 = vshrl.u32 %v3346, 7
    %v3348 = vsub.s32 0, %v3347
    %v3349 = vrot.slane %v3344, %v3348
    %v3352 = vsel %vm2005, %v3318, 0
    %3354 = vmatprep.subr.mxu0 0.0
    %3355 = vmatpush1.msra.mxu0 %v3320
    %3356 = vmatprep.subr.mxu0 0.0
    %3357 = vmatpush1.msra.mxu0 %v3321
    %3358 = vmatprep.subr.mxu0 0.0
    %3359 = vmatpush1.msra.mxu0 %v3322
    %3360 = vmatprep.subr.mxu0 0.0
    %3361 = vmatpush1.msra.mxu0 %v3323
    %3362 = vmatprep.subr.mxu0 0.0
    %3363 = vmatpush1.msra.mxu0 %v3324
    %3364 = vmatprep.subr.mxu0 0.0
    %3365 = vmatpush1.msra.mxu0 %v3325
    %3366 = vmatprep.subr.mxu0 0.0
    %3367 = vmatpush1.msra.mxu0 %v3326
    %3368 = vmatprep.subr.mxu0 0.0
    %3369 = vmatpush1.msra.mxu0 %v3327
    %3370 = vmatprep.subr.mxu0 0.0
    %3371 = vmatpush1.msra.mxu0 %v3328
    %3372 = vmatprep.subr.mxu0 0.0
    %3373 = vmatpush1.msra.mxu0 %v3329
    %3374 = vmatprep.subr.mxu0 0.0
    %3375 = vmatpush1.msra.mxu0 %v3330
    %3376 = vmatprep.subr.mxu0 0.0
    %3377 = vmatpush1.msra.mxu0 %v3331
    %3378 = vmatprep.subr.mxu0 0.0
    %3379 = vmatpush1.msra.mxu0 %v3332
    %3380 = vmatprep.subr.mxu0 0.0
    %3381 = vmatpush1.msra.mxu0 %v3333
    %3382 = vmatprep.subr.mxu0 0.0
    %3383 = vmatpush1.msra.mxu0 %v3334
    %3384 = vmatprep.subr.mxu0 0.0
    %3385 = vmatpush1.msra.mxu0 %v3335
    %3386 = vmatprep.subr.mxu0 0.0
    %3387 = vmatpush1.msra.mxu0 %v3336
    %3388 = vmatprep.subr.mxu0 0.0
    %3389 = vmatpush1.msra.mxu0 %v3337
    %3390 = vmatprep.subr.mxu0 0.0
    %3391 = vmatpush1.msra.mxu0 %v3338
    %3392 = vmatprep.subr.mxu0 0.0
    %3393 = vmatpush1.msra.mxu0 %v3339
    %3394 = vmatprep.subr.mxu0 0.0
    %3395 = vmatpush1.msra.mxu0 %v3340
    %3396 = vmatprep.subr.mxu0 0.0
    %3397 = vmatpush1.msra.mxu0 %v3341
    %3398 = vmatprep.subr.mxu0 0.0
    %3399 = vmatpush1.msra.mxu0 %v3342
    %3400 = vmatprep.subr.mxu0 0.0
    %3401 = vmatpush1.msra.mxu0 %v3343
    %3402 = vmatprep.subr.mxu0 0.0
    %3403 = vmatpush1.msra.mxu0 0.0
    %3404 = vmatprep.subr.mxu0 0.0
    %3405 = vmatpush1.msra.mxu0 0.0
    %3406 = vmatprep.subr.mxu0 0.0
    %3407 = vmatpush1.msra.mxu0 0.0
    %3408 = vmatprep.subr.mxu0 0.0
    %3409 = vmatpush1.msra.mxu0 0.0
    %3410 = vmatprep.subr.mxu0 0.0
    %3411 = vmatpush1.msra.mxu0 0.0
    %3412 = vmatprep.subr.mxu0 0.0
    %3413 = vmatpush1.msra.mxu0 0.0
    %3414 = vmatprep.subr.mxu0 0.0
    %3415 = vmatpush1.msra.mxu0 0.0
    %3416 = vmatprep.subr.mxu0 0.0
    %3417 = vmatpush1.msra.mxu0 0.0
    %3418 = vmatprep.mubr.f32.mxu0 %v3352
    %3419 = vmatmul.mubr.f32.gmra.mrb[0].mxu0 %v3316
    %v3420 = vpop.f32.mrb[0].mxu0
    %v3421 = vadd.f32 %v3349, %v3420
    %v3422 = vpop.f32.mrb[0].mxu0
    %3423 = vdwg.mxu0
    %vm3424 = vcmask 41984
    %v3425 = vsel %vm3424, %v3421, -inf
    %3426 = vmax.xlane.f32.xlu0 %v3425
    %v3427 = vpop.xlane.xlu0 %3426
    %v3428 = vsub.f32 %v3421, %v3427
    %v3429 = vmul.f32 %v3428, 1.442695
    %v3430 = vpow.pop %v3429
    %v3431 = vsel %vm3424, %v3430, 0.0
    %3432 = vadd.xlane.f32.xlu0 %v3431
    %v3433 = vpop.xlane.xlu0 %3432
    %v3434 = vrcp.pop %v3433
    %v3435 = vmul.f32 %v3430, %v3434
    %3436 = vst.msk [vmem:[#allocation2] sm:$0x3] %vm3424, %v3435
    // Predicated region
    $region70: #{_lambda_.1} parent=1 // pred_check
      _
    $region71: #{_lambda_.1} parent=1 // pred_check_branch
      %3438 = sbr.rel (0) target = $region73
    $region72: #{_lambda_.1} parent=1 // pred_region
      %s3440 = ssub.s32 32, 32
      %3441 = vsyncadd [#allocation3], %s3440
      %s3443 = sshll.u32 [#allocation2], 4
      %s3444 = int_to_ptr.vmem [resolvable:$true] %s3443
      %3446 = dma.vmem_to_hbm [thread:$0]  %s3444, 32, %s17, [#allocation3]
    $region73: #{_lambda_.1} parent=1 // pred_fallthru
      _
    // Predicated region
    $region74: #{_lambda_.1} parent=1 // pred_check
      _
    $region75: #{_lambda_.1} parent=1 // pred_check_branch
      %3448 = sbr.rel (0) target = $region77
    $region76: #{_lambda_.1} parent=1 // pred_region
      %3449 = dma.done [#allocation3], 32
    $region77: #{_lambda_.1} parent=1 // pred_fallthru
      _
    %3450 = vsyncpa [#allocation3], 1

</llo_original>
